<compile_context>
chip_gen: v7x
topology: tpu7x:2x2x1
jax: 0.10.0
libtpu: 0.0.40
codegen_flags: <defaults>
</compile_context>

<pallas_src>
import math
import random

import numpy as np
import jax
import jax.numpy as jnp
from jax.experimental import pallas as pl
from jax.experimental.pallas import tpu as pltpu

kernel_size_layer = [7, 7]
KERNEL_SIZE = 7
S_NUM = int(math.ceil(KERNEL_SIZE / 2))       # 4 scales (7,5,3,1)
OUT_CH = 12
NS = int(math.ceil(OUT_CH / S_NUM))           # 3 sampled channels per scale


def Calculate_ImageSize_AfterConvBlocks(input_size, kernel_size=3, stride=1, padding=1):
    conv_size = (input_size - kernel_size + 2 * padding) // stride + 1
    after_pool = math.ceil((conv_size - 2) / 2) + 1
    return after_pool


def _round_up(v, m):
    return ((v + m - 1) // m) * m


# ------------------------- fused Pallas kernel -------------------------

def _fused_kernel_factory(n_batch, s1, s1p, q2p):
    """n_batch: batch; s1: pooled-1 spatial (h2*h2); s1p: s1 rounded to 128;
    q2p: pooled-2 feature count (12*3*3) rounded to 128."""
    q1 = n_batch * s1p

    def kernel(p1_ref, w1b_ref, b1_ref, t2_ref, b2_ref, wfc_ref, bfc_ref,
               out_ref, x2_ref):
        # ---- layer 1: all 4 versatile-filter scales as ONE block matmul (bf16 in, f32 acc)
        y1 = jnp.dot(w1b_ref[...], p1_ref[...],
                     preferred_element_type=jnp.float32)            # (12, 4*q1)
        # ---- fused MaxPool2d(2,2): pool-window offset d is the outermost column group
        m1 = jnp.maximum(jnp.maximum(y1[:, 0:q1], y1[:, q1:2 * q1]),
                         jnp.maximum(y1[:, 2 * q1:3 * q1], y1[:, 3 * q1:4 * q1]))
        # bias + ReLU after the max (bias is per-channel constant, ReLU monotone)
        h1 = jnp.maximum(m1 + b1_ref[...], 0.0)                     # (12, n*s1p)

        # ---- re-orient (channel rows, (n,h,w) lanes) -> (n rows, (channel,h,w) lanes)
        # 128-aligned slab stores into a VMEM scratch; pad lanes stay zero.
        x2_ref[...] = jnp.zeros_like(x2_ref)
        for b in range(n_batch):
            for c in range(OUT_CH):
                x2_ref[pl.ds(b, 1), pl.ds(c * s1p, s1)] = \
                    h1[c:c + 1, b * s1p:b * s1p + s1].astype(x2_ref.dtype)

        # ---- layer 2: VConv2d as one precomputed block-Toeplitz matmul
        # (per-scale crop/pad + channel selection baked into t2 at init)
        y2 = jnp.dot(x2_ref[...], t2_ref[...],
                     preferred_element_type=jnp.float32)            # (n, 4*q2p)
        m2 = jnp.maximum(jnp.maximum(y2[:, 0:q2p], y2[:, q2p:2 * q2p]),
                         jnp.maximum(y2[:, 2 * q2p:3 * q2p], y2[:, 3 * q2p:4 * q2p]))
        h2 = jnp.maximum(m2 + b2_ref[...], 0.0)                     # (n, q2p)

        # ---- classifier (FC weight pre-transposed + zero-padded at init)
        out_ref[...] = (jnp.dot(h2, wfc_ref[...],
                                preferred_element_type=jnp.float32)
                        + bfc_ref[...])

    return kernel


# ------------------------- wrapper-side patch builder (layer 1 only) -------------------------

def _build_patches_l1(x, s1p):
    """im2col for layer 1 (external input), columns ordered (pool-offset d, n, ph, pw),
    each (d, n) block zero-padded to s1p lanes so all in-kernel slices are 128-aligned."""
    n, ic, h, w = x.shape
    oh, ow = h - 4, w - 4                      # identical output window for every scale
    assert oh % 2 == 0 and ow % 2 == 0
    ph, pw = oh // 2, ow // 2
    segs = []
    for s in range(S_NUM):
        k = KERNEL_SIZE - 2 * s
        pad = 1 - s                            # self.padding[0] - s
        if pad >= 0:
            xp = jnp.pad(x, ((0, 0), (0, 0), (pad, pad), (pad, pad)))
        else:                                  # crop then pad 1 (PyTorch branch)
            xc = x[:, :, s:h - s, s:w - s]
            xp = jnp.pad(xc, ((0, 0), (0, 0), (1, 1), (1, 1)))
        cols = [xp[:, :, kh:kh + oh, kw:kw + ow]
                for kh in range(k) for kw in range(k)]
        segs.append(jnp.stack(cols, axis=2).reshape(n, ic * k * k, oh, ow))
    p = jnp.concatenate(segs, axis=1)                               # (n, 252, oh, ow)
    r = p.shape[1]
    p = p.reshape(n, r, ph, 2, pw, 2).transpose(1, 3, 5, 0, 2, 4)   # (r, dh, dw, n, ph, pw)
    p = p.reshape(r, 2, 2, n, ph * pw)
    p = jnp.pad(p, ((0, 0), (0, 0), (0, 0), (0, 0), (0, s1p - ph * pw)))
    return p.reshape(r, 4 * n * s1p).astype(jnp.bfloat16)


# ------------------------- init-time weight packing -------------------------

def _build_w1b(w1, idx1, in_ch):
    """(12, sum_s in_ch*K_s^2) block weight; zeros outside each scale's segment."""
    total = sum(in_ch * (KERNEL_SIZE - 2 * s) ** 2 for s in range(S_NUM))
    wb = np.zeros((OUT_CH, total), np.float32)
    off = 0
    for s in range(S_NUM):
        k = KERNEL_SIZE - 2 * s
        seg = in_ch * k * k
        sel = w1[np.asarray(idx1[s]), :, s:KERNEL_SIZE - s, s:KERNEL_SIZE - s]
        wb[s * NS:(s + 1) * NS, off:off + seg] = sel.reshape(NS, seg)
        off += seg
    return wb


def _build_t2(w2, idx2, h2, row_stride, col_stride):
    """Layer-2 VConv2d as a dense operator on the flattened (ic, h, w) pooled-1 map.
    Rows: ic*row_stride + h*h2 + w.  Cols: d*col_stride + ocp*p2^2 + ph*p2 + pw
    (pool-window offset d outermost so pool2 is a 4-way max of aligned slices).
    Per-scale crop/pad (zeros inside the image for s>=2) is baked in here."""
    oh = h2 - 4
    p2 = oh // 2
    t = np.zeros((OUT_CH * row_stride, 4 * col_stride), np.float32)
    for s in range(S_NUM):
        k = KERNEL_SIZE - 2 * s
        lo = 0 if s <= 1 else s
        hi = (h2 - 1) if s <= 1 else (h2 - 1 - s)
        for j, oc in enumerate(idx2[s]):
            ocp = s * NS + j
            for a in range(oh):
                ph_, dh = a // 2, a % 2
                for b in range(oh):
                    pw_, dw = b // 2, b % 2
                    col = (dh * 2 + dw) * col_stride + ocp * (p2 * p2) + ph_ * p2 + pw_
                    for kh in range(k):
                        hh = a + kh + s - 1
                        if hh < lo or hh > hi:
                            continue
                        for kw in range(k):
                            ww = b + kw + s - 1
                            if ww < lo or ww > hi:
                                continue
                            rows = np.arange(OUT_CH) * row_stride + hh * h2 + ww
                            t[rows, col] = w2[oc, :, s + kh, s + kw]
    return t


def prepare_kernel_params(params, idx1, idx2, in_channels, input_image_size):
    h2 = Calculate_ImageSize_AfterConvBlocks(input_image_size, KERNEL_SIZE)
    oh1 = input_image_size - 4
    assert oh1 % 2 == 0 and h2 == oh1 // 2, "fused pool path assumes even spatial dims"
    oh2 = h2 - 4
    p2 = Calculate_ImageSize_AfterConvBlocks(h2, KERNEL_SIZE)
    assert oh2 % 2 == 0 and p2 == oh2 // 2

    s1 = h2 * h2
    s1p = _round_up(s1, 128)
    q2 = OUT_CH * p2 * p2
    q2p = _round_up(q2, 128)

    w1 = np.asarray(params['w_conv1'], np.float32)
    b1 = np.asarray(params['b_conv1'], np.float32)
    w2 = np.asarray(params['w_conv2'], np.float32)
    b2 = np.asarray(params['b_conv2'], np.float32)
    wfc = np.asarray(params['w_fc'], np.float32)
    bfc = np.asarray(params['b_fc'], np.float32)
    num_classes = wfc.shape[0]
    assert wfc.shape[1] == q2

    w1b = _build_w1b(w1, idx1, in_channels)
    b1sel = np.concatenate([b1[np.asarray(idx1[s])] for s in range(S_NUM)]).reshape(OUT_CH, 1)

    t2 = _build_t2(w2, idx2, h2, s1p, q2p)
    b2sel = np.concatenate([b2[np.asarray(idx2[s])] for s in range(S_NUM)])
    b2row = np.zeros((1, q2p), np.float32)
    b2row[0, :q2] = np.repeat(b2sel, p2 * p2)

    wfc_p = np.zeros((q2p, num_classes), np.float32)
    wfc_p[:q2, :] = wfc.T      # transposed ONCE at init; no per-forward w.T

    return dict(
        w1b=jnp.asarray(w1b, jnp.bfloat16),
        b1=jnp.asarray(b1sel, jnp.float32),
        t2=jnp.asarray(t2, jnp.bfloat16),
        b2=jnp.asarray(b2row, jnp.float32),
        wfc=jnp.asarray(wfc_p, jnp.float32),
        bfc=jnp.asarray(bfc.reshape(1, num_classes), jnp.float32),
    )


def init_params(key, in_channels, input_image_size, num_classes=12):
    fs = input_image_size
    for ks in kernel_size_layer:
        fs = Calculate_ImageSize_AfterConvBlocks(fs, kernel_size=ks)
    k1, k2, k3 = jax.random.split(key, 3)
    # kaiming_normal_(mode='fan_out', nonlinearity='relu'); conv biases = 0
    std = math.sqrt(2.0 / (OUT_CH * KERNEL_SIZE * KERNEL_SIZE))
    params = dict(
        w_conv1=jax.random.normal(
            k1, (OUT_CH, in_channels, KERNEL_SIZE, KERNEL_SIZE), jnp.float32) * std,
        b_conv1=jnp.zeros((OUT_CH,), jnp.float32),
        w_conv2=jax.random.normal(
            k2, (OUT_CH, OUT_CH, KERNEL_SIZE, KERNEL_SIZE), jnp.float32) * std,
        b_conv2=jnp.zeros((OUT_CH,), jnp.float32),
        # nn.Linear: normal(0, 0.01), bias 0
        w_fc=jax.random.normal(k3, (num_classes, fs * fs * OUT_CH), jnp.float32) * 0.01,
        b_fc=jnp.zeros((num_classes,), jnp.float32),
    )
    return params, fs


# ------------------------- forward -------------------------

def student_net9_forward(kparams, x):
    n, _, img, _ = x.shape
    h2 = Calculate_ImageSize_AfterConvBlocks(img, KERNEL_SIZE)
    s1 = h2 * h2
    s1p = _round_up(s1, 128)
    p2 = Calculate_ImageSize_AfterConvBlocks(h2, KERNEL_SIZE)
    q2p = _round_up(OUT_CH * p2 * p2, 128)
    ncls = kparams['bfc'].shape[1]

    p1 = _build_patches_l1(x, s1p)                       # (252, 4*n*s1p) bf16

    kernel = _fused_kernel_factory(n, s1, s1p, q2p)
    operands = (p1, kparams['w1b'], kparams['b1'], kparams['t2'],
                kparams['b2'], kparams['wfc'], kparams['bfc'])
    in_specs = [pl.BlockSpec(op.shape, lambda i: (0, 0)) for op in operands]

    return pl.pallas_call(
        kernel,
        out_shape=jax.ShapeDtypeStruct((n, ncls), jnp.float32),
        grid=(1,),
        in_specs=in_specs,
        out_specs=pl.BlockSpec((n, ncls), lambda i: (0, 0)),
        scratch_shapes=[pltpu.VMEM((n, OUT_CH * s1p), jnp.bfloat16)],
        compiler_params=pltpu.CompilerParams(dimension_semantics=("arbitrary",)),
    )(*operands)


if __name__ == "__main__":
    IMG = 24
    BATCH = 2
    IN_CH = 3
    NUM_CLASSES = 12

    key = jax.random.PRNGKey(0)
    kp_key, kx = jax.random.split(key)
    params, fs = init_params(kp_key, IN_CH, IMG, num_classes=NUM_CLASSES)

    # VConv2d samples ceil(12/4)=3 output channels per scale with Python's `random`;
    # replicate deterministically (static indices, layer-1 scales then layer-2 scales).
    random.seed(0)
    idx_layer1 = [random.sample(range(OUT_CH), NS) for _ in range(S_NUM)]
    idx_layer2 = [random.sample(range(OUT_CH), NS) for _ in range(S_NUM)]

    kparams = prepare_kernel_params(params, idx_layer1, idx_layer2, IN_CH, IMG)

    x = jax.random.normal(kx, (BATCH, IN_CH, IMG, IMG), jnp.float32)

    fwd = jax.jit(student_net9_forward)
    logits = jax.block_until_ready(fwd(kparams, x))
    assert logits.shape == (BATCH, NUM_CLASSES)
    assert bool(jnp.all(jnp.isfinite(logits)))
    print("KERNEL_OK")
</pallas_src>

<mosaic_0001>
module attributes {stable_mosaic.version = 11 : i64} {
  func.func @kernel(%arg0: i32, %arg1: memref<252x1024xbf16, #tpu.memory_space<vmem>>, %arg2: memref<12x252xbf16, #tpu.memory_space<vmem>>, %arg3: memref<12x1xf32, #tpu.memory_space<vmem>>, %arg4: memref<1536x512xbf16, #tpu.memory_space<vmem>>, %arg5: memref<1x128xf32, #tpu.memory_space<vmem>>, %arg6: memref<128x12xf32, #tpu.memory_space<vmem>>, %arg7: memref<1x12xf32, #tpu.memory_space<vmem>>, %arg8: memref<2x12xf32, #tpu.memory_space<vmem>>, %arg9: memref<2x1536xbf16, #tpu.memory_space<vmem>>) attributes {dimension_semantics = [#tpu.dimension_semantics<arbitrary>], iteration_bounds = array<i64: 1>, scalar_prefetch = 0 : i64, scratch_operands = 1 : i64, tpu.core_type = #tpu.core_type<tc>, window_params = [{pipeline_mode = #tpu.pipeline_mode<synchronous>, transform_indices = @transform_0, window_bounds = array<i64: 252, 1024>}, {pipeline_mode = #tpu.pipeline_mode<synchronous>, transform_indices = @transform_1, window_bounds = array<i64: 12, 252>}, {pipeline_mode = #tpu.pipeline_mode<synchronous>, transform_indices = @transform_2, window_bounds = array<i64: 12, 1>}, {pipeline_mode = #tpu.pipeline_mode<synchronous>, transform_indices = @transform_3, window_bounds = array<i64: 1536, 512>}, {pipeline_mode = #tpu.pipeline_mode<synchronous>, transform_indices = @transform_4, window_bounds = array<i64: 1, 128>}, {pipeline_mode = #tpu.pipeline_mode<synchronous>, transform_indices = @transform_5, window_bounds = array<i64: 128, 12>}, {pipeline_mode = #tpu.pipeline_mode<synchronous>, transform_indices = @transform_6, window_bounds = array<i64: 1, 12>}, {pipeline_mode = #tpu.pipeline_mode<synchronous>, transform_indices = @transform_7, window_bounds = array<i64: 2, 12>}]} {
    %c0 = arith.constant 0 : index
    %c0_0 = arith.constant 0 : index
    %0 = vector.load %arg2[%c0, %c0_0] : memref<12x252xbf16, #tpu.memory_space<vmem>>, vector<12x252xbf16>
    %c0_1 = arith.constant 0 : index
    %c0_2 = arith.constant 0 : index
    %1 = vector.load %arg1[%c0_1, %c0_2] : memref<252x1024xbf16, #tpu.memory_space<vmem>>, vector<252x1024xbf16>
    %cst = arith.constant dense<0.000000e+00> : vector<12x1024xf32>
    %2 = tpu.matmul %0, %1, %cst {dimension_numbers = #tpu.dot_dimension_numbers<[1], [0], [0], [1], [0, 0, 1, 1], [], []>} : vector<12x252xbf16>, vector<252x1024xbf16>, vector<12x1024xf32> -> vector<12x1024xf32>
    %3 = vector.extract_strided_slice %2 {offsets = [0, 0], sizes = [12, 256], strides = [1, 1]} : vector<12x1024xf32> to vector<12x256xf32>
    %4 = vector.extract_strided_slice %2 {offsets = [0, 256], sizes = [12, 256], strides = [1, 1]} : vector<12x1024xf32> to vector<12x256xf32>
    %5 = arith.maximumf %3, %4 : vector<12x256xf32>
    %6 = vector.extract_strided_slice %2 {offsets = [0, 512], sizes = [12, 256], strides = [1, 1]} : vector<12x1024xf32> to vector<12x256xf32>
    %7 = vector.extract_strided_slice %2 {offsets = [0, 768], sizes = [12, 256], strides = [1, 1]} : vector<12x1024xf32> to vector<12x256xf32>
    %8 = arith.maximumf %6, %7 : vector<12x256xf32>
    %9 = arith.maximumf %5, %8 : vector<12x256xf32>
    %c0_3 = arith.constant 0 : index
    %c0_4 = arith.constant 0 : index
    %10 = vector.load %arg3[%c0_3, %c0_4] : memref<12x1xf32, #tpu.memory_space<vmem>>, vector<12x1xf32>
    %11 = vector.broadcast %10 : vector<12x1xf32> to vector<12x256xf32>
    %12 = arith.addf %9, %11 : vector<12x256xf32>
    %cst_5 = arith.constant 0.000000e+00 : f32
    %13 = vector.broadcast %cst_5 : f32 to vector<12x256xf32>
    %14 = arith.maximumf %12, %13 : vector<12x256xf32>
    %cst_6 = arith.constant 0.000000e+00 : bf16
    %15 = vector.broadcast %cst_6 : bf16 to vector<2x1536xbf16>
    %c0_7 = arith.constant 0 : index
    %c0_8 = arith.constant 0 : index
    %16 = vector.load %arg9[%c0_7, %c0_8] : memref<2x1536xbf16, #tpu.memory_space<vmem>>, vector<2x1536xbf16>
    tpu.vector_store %arg9[%c0_7, %c0_8], %15 {strides = array<i32>} : memref<2x1536xbf16, #tpu.memory_space<vmem>>, vector<2x1536xbf16>,
    %17 = vector.extract_strided_slice %14 {offsets = [0, 0], sizes = [1, 100], strides = [1, 1]} : vector<12x256xf32> to vector<1x100xf32>
    %18 = arith.truncf %17 : vector<1x100xf32> to vector<1x100xbf16>
    %c0_9 = arith.constant 0 : index
    %c0_10 = arith.constant 0 : index
    %19 = vector.load %arg9[%c0_9, %c0_10] : memref<2x1536xbf16, #tpu.memory_space<vmem>>, vector<1x100xbf16>
    tpu.vector_store %arg9[%c0_9, %c0_10], %18 {strides = array<i32>} : memref<2x1536xbf16, #tpu.memory_space<vmem>>, vector<1x100xbf16>,
    %20 = vector.extract_strided_slice %14 {offsets = [1, 0], sizes = [1, 100], strides = [1, 1]} : vector<12x256xf32> to vector<1x100xf32>
    %21 = arith.truncf %20 : vector<1x100xf32> to vector<1x100xbf16>
    %c0_11 = arith.constant 0 : index
    %c128 = arith.constant 128 : index
    %22 = vector.load %arg9[%c0_11, %c128] : memref<2x1536xbf16, #tpu.memory_space<vmem>>, vector<1x100xbf16>
    tpu.vector_store %arg9[%c0_11, %c128], %21 {strides = array<i32>} : memref<2x1536xbf16, #tpu.memory_space<vmem>>, vector<1x100xbf16>,
    %23 = vector.extract_strided_slice %14 {offsets = [2, 0], sizes = [1, 100], strides = [1, 1]} : vector<12x256xf32> to vector<1x100xf32>
    %24 = arith.truncf %23 : vector<1x100xf32> to vector<1x100xbf16>
    %c0_12 = arith.constant 0 : index
    %c256 = arith.constant 256 : index
    %25 = vector.load %arg9[%c0_12, %c256] : memref<2x1536xbf16, #tpu.memory_space<vmem>>, vector<1x100xbf16>
    tpu.vector_store %arg9[%c0_12, %c256], %24 {strides = array<i32>} : memref<2x1536xbf16, #tpu.memory_space<vmem>>, vector<1x100xbf16>,
    %26 = vector.extract_strided_slice %14 {offsets = [3, 0], sizes = [1, 100], strides = [1, 1]} : vector<12x256xf32> to vector<1x100xf32>
    %27 = arith.truncf %26 : vector<1x100xf32> to vector<1x100xbf16>
    %c0_13 = arith.constant 0 : index
    %c384 = arith.constant 384 : index
    %28 = vector.load %arg9[%c0_13, %c384] : memref<2x1536xbf16, #tpu.memory_space<vmem>>, vector<1x100xbf16>
    tpu.vector_store %arg9[%c0_13, %c384], %27 {strides = array<i32>} : memref<2x1536xbf16, #tpu.memory_space<vmem>>, vector<1x100xbf16>,
    %29 = vector.extract_strided_slice %14 {offsets = [4, 0], sizes = [1, 100], strides = [1, 1]} : vector<12x256xf32> to vector<1x100xf32>
    %30 = arith.truncf %29 : vector<1x100xf32> to vector<1x100xbf16>
    %c0_14 = arith.constant 0 : index
    %c512 = arith.constant 512 : index
    %31 = vector.load %arg9[%c0_14, %c512] : memref<2x1536xbf16, #tpu.memory_space<vmem>>, vector<1x100xbf16>
    tpu.vector_store %arg9[%c0_14, %c512], %30 {strides = array<i32>} : memref<2x1536xbf16, #tpu.memory_space<vmem>>, vector<1x100xbf16>,
    %32 = vector.extract_strided_slice %14 {offsets = [5, 0], sizes = [1, 100], strides = [1, 1]} : vector<12x256xf32> to vector<1x100xf32>
    %33 = arith.truncf %32 : vector<1x100xf32> to vector<1x100xbf16>
    %c0_15 = arith.constant 0 : index
    %c640 = arith.constant 640 : index
    %34 = vector.load %arg9[%c0_15, %c640] : memref<2x1536xbf16, #tpu.memory_space<vmem>>, vector<1x100xbf16>
    tpu.vector_store %arg9[%c0_15, %c640], %33 {strides = array<i32>} : memref<2x1536xbf16, #tpu.memory_space<vmem>>, vector<1x100xbf16>,
    %35 = vector.extract_strided_slice %14 {offsets = [6, 0], sizes = [1, 100], strides = [1, 1]} : vector<12x256xf32> to vector<1x100xf32>
    %36 = arith.truncf %35 : vector<1x100xf32> to vector<1x100xbf16>
    %c0_16 = arith.constant 0 : index
    %c768 = arith.constant 768 : index
    %37 = vector.load %arg9[%c0_16, %c768] : memref<2x1536xbf16, #tpu.memory_space<vmem>>, vector<1x100xbf16>
    tpu.vector_store %arg9[%c0_16, %c768], %36 {strides = array<i32>} : memref<2x1536xbf16, #tpu.memory_space<vmem>>, vector<1x100xbf16>,
    %38 = vector.extract_strided_slice %14 {offsets = [7, 0], sizes = [1, 100], strides = [1, 1]} : vector<12x256xf32> to vector<1x100xf32>
    %39 = arith.truncf %38 : vector<1x100xf32> to vector<1x100xbf16>
    %c0_17 = arith.constant 0 : index
    %c896 = arith.constant 896 : index
    %40 = vector.load %arg9[%c0_17, %c896] : memref<2x1536xbf16, #tpu.memory_space<vmem>>, vector<1x100xbf16>
    tpu.vector_store %arg9[%c0_17, %c896], %39 {strides = array<i32>} : memref<2x1536xbf16, #tpu.memory_space<vmem>>, vector<1x100xbf16>,
    %41 = vector.extract_strided_slice %14 {offsets = [8, 0], sizes = [1, 100], strides = [1, 1]} : vector<12x256xf32> to vector<1x100xf32>
    %42 = arith.truncf %41 : vector<1x100xf32> to vector<1x100xbf16>
    %c0_18 = arith.constant 0 : index
    %c1024 = arith.constant 1024 : index
    %43 = vector.load %arg9[%c0_18, %c1024] : memref<2x1536xbf16, #tpu.memory_space<vmem>>, vector<1x100xbf16>
    tpu.vector_store %arg9[%c0_18, %c1024], %42 {strides = array<i32>} : memref<2x1536xbf16, #tpu.memory_space<vmem>>, vector<1x100xbf16>,
    %44 = vector.extract_strided_slice %14 {offsets = [9, 0], sizes = [1, 100], strides = [1, 1]} : vector<12x256xf32> to vector<1x100xf32>
    %45 = arith.truncf %44 : vector<1x100xf32> to vector<1x100xbf16>
    %c0_19 = arith.constant 0 : index
    %c1152 = arith.constant 1152 : index
    %46 = vector.load %arg9[%c0_19, %c1152] : memref<2x1536xbf16, #tpu.memory_space<vmem>>, vector<1x100xbf16>
    tpu.vector_store %arg9[%c0_19, %c1152], %45 {strides = array<i32>} : memref<2x1536xbf16, #tpu.memory_space<vmem>>, vector<1x100xbf16>,
    %47 = vector.extract_strided_slice %14 {offsets = [10, 0], sizes = [1, 100], strides = [1, 1]} : vector<12x256xf32> to vector<1x100xf32>
    %48 = arith.truncf %47 : vector<1x100xf32> to vector<1x100xbf16>
    %c0_20 = arith.constant 0 : index
    %c1280 = arith.constant 1280 : index
    %49 = vector.load %arg9[%c0_20, %c1280] : memref<2x1536xbf16, #tpu.memory_space<vmem>>, vector<1x100xbf16>
    tpu.vector_store %arg9[%c0_20, %c1280], %48 {strides = array<i32>} : memref<2x1536xbf16, #tpu.memory_space<vmem>>, vector<1x100xbf16>,
    %50 = vector.extract_strided_slice %14 {offsets = [11, 0], sizes = [1, 100], strides = [1, 1]} : vector<12x256xf32> to vector<1x100xf32>
    %51 = arith.truncf %50 : vector<1x100xf32> to vector<1x100xbf16>
    %c0_21 = arith.constant 0 : index
    %c1408 = arith.constant 1408 : index
    %52 = vector.load %arg9[%c0_21, %c1408] : memref<2x1536xbf16, #tpu.memory_space<vmem>>, vector<1x100xbf16>
    tpu.vector_store %arg9[%c0_21, %c1408], %51 {strides = array<i32>} : memref<2x1536xbf16, #tpu.memory_space<vmem>>, vector<1x100xbf16>,
    %53 = vector.extract_strided_slice %14 {offsets = [0, 128], sizes = [1, 100], strides = [1, 1]} : vector<12x256xf32> to vector<1x100xf32>
    %54 = arith.truncf %53 : vector<1x100xf32> to vector<1x100xbf16>
    %c1 = arith.constant 1 : index
    %c0_22 = arith.constant 0 : index
    %55 = vector.load %arg9[%c1, %c0_22] : memref<2x1536xbf16, #tpu.memory_space<vmem>>, vector<1x100xbf16>
    tpu.vector_store %arg9[%c1, %c0_22], %54 {strides = array<i32>} : memref<2x1536xbf16, #tpu.memory_space<vmem>>, vector<1x100xbf16>,
    %56 = vector.extract_strided_slice %14 {offsets = [1, 128], sizes = [1, 100], strides = [1, 1]} : vector<12x256xf32> to vector<1x100xf32>
    %57 = arith.truncf %56 : vector<1x100xf32> to vector<1x100xbf16>
    %c1_23 = arith.constant 1 : index
    %c128_24 = arith.constant 128 : index
    %58 = vector.load %arg9[%c1_23, %c128_24] : memref<2x1536xbf16, #tpu.memory_space<vmem>>, vector<1x100xbf16>
    tpu.vector_store %arg9[%c1_23, %c128_24], %57 {strides = array<i32>} : memref<2x1536xbf16, #tpu.memory_space<vmem>>, vector<1x100xbf16>,
    %59 = vector.extract_strided_slice %14 {offsets = [2, 128], sizes = [1, 100], strides = [1, 1]} : vector<12x256xf32> to vector<1x100xf32>
    %60 = arith.truncf %59 : vector<1x100xf32> to vector<1x100xbf16>
    %c1_25 = arith.constant 1 : index
    %c256_26 = arith.constant 256 : index
    %61 = vector.load %arg9[%c1_25, %c256_26] : memref<2x1536xbf16, #tpu.memory_space<vmem>>, vector<1x100xbf16>
    tpu.vector_store %arg9[%c1_25, %c256_26], %60 {strides = array<i32>} : memref<2x1536xbf16, #tpu.memory_space<vmem>>, vector<1x100xbf16>,
    %62 = vector.extract_strided_slice %14 {offsets = [3, 128], sizes = [1, 100], strides = [1, 1]} : vector<12x256xf32> to vector<1x100xf32>
    %63 = arith.truncf %62 : vector<1x100xf32> to vector<1x100xbf16>
    %c1_27 = arith.constant 1 : index
    %c384_28 = arith.constant 384 : index
    %64 = vector.load %arg9[%c1_27, %c384_28] : memref<2x1536xbf16, #tpu.memory_space<vmem>>, vector<1x100xbf16>
    tpu.vector_store %arg9[%c1_27, %c384_28], %63 {strides = array<i32>} : memref<2x1536xbf16, #tpu.memory_space<vmem>>, vector<1x100xbf16>,
    %65 = vector.extract_strided_slice %14 {offsets = [4, 128], sizes = [1, 100], strides = [1, 1]} : vector<12x256xf32> to vector<1x100xf32>
    %66 = arith.truncf %65 : vector<1x100xf32> to vector<1x100xbf16>
    %c1_29 = arith.constant 1 : index
    %c512_30 = arith.constant 512 : index
    %67 = vector.load %arg9[%c1_29, %c512_30] : memref<2x1536xbf16, #tpu.memory_space<vmem>>, vector<1x100xbf16>
    tpu.vector_store %arg9[%c1_29, %c512_30], %66 {strides = array<i32>} : memref<2x1536xbf16, #tpu.memory_space<vmem>>, vector<1x100xbf16>,
    %68 = vector.extract_strided_slice %14 {offsets = [5, 128], sizes = [1, 100], strides = [1, 1]} : vector<12x256xf32> to vector<1x100xf32>
    %69 = arith.truncf %68 : vector<1x100xf32> to vector<1x100xbf16>
    %c1_31 = arith.constant 1 : index
    %c640_32 = arith.constant 640 : index
    %70 = vector.load %arg9[%c1_31, %c640_32] : memref<2x1536xbf16, #tpu.memory_space<vmem>>, vector<1x100xbf16>
    tpu.vector_store %arg9[%c1_31, %c640_32], %69 {strides = array<i32>} : memref<2x1536xbf16, #tpu.memory_space<vmem>>, vector<1x100xbf16>,
    %71 = vector.extract_strided_slice %14 {offsets = [6, 128], sizes = [1, 100], strides = [1, 1]} : vector<12x256xf32> to vector<1x100xf32>
    %72 = arith.truncf %71 : vector<1x100xf32> to vector<1x100xbf16>
    %c1_33 = arith.constant 1 : index
    %c768_34 = arith.constant 768 : index
    %73 = vector.load %arg9[%c1_33, %c768_34] : memref<2x1536xbf16, #tpu.memory_space<vmem>>, vector<1x100xbf16>
    tpu.vector_store %arg9[%c1_33, %c768_34], %72 {strides = array<i32>} : memref<2x1536xbf16, #tpu.memory_space<vmem>>, vector<1x100xbf16>,
    %74 = vector.extract_strided_slice %14 {offsets = [7, 128], sizes = [1, 100], strides = [1, 1]} : vector<12x256xf32> to vector<1x100xf32>
    %75 = arith.truncf %74 : vector<1x100xf32> to vector<1x100xbf16>
    %c1_35 = arith.constant 1 : index
    %c896_36 = arith.constant 896 : index
    %76 = vector.load %arg9[%c1_35, %c896_36] : memref<2x1536xbf16, #tpu.memory_space<vmem>>, vector<1x100xbf16>
    tpu.vector_store %arg9[%c1_35, %c896_36], %75 {strides = array<i32>} : memref<2x1536xbf16, #tpu.memory_space<vmem>>, vector<1x100xbf16>,
    %77 = vector.extract_strided_slice %14 {offsets = [8, 128], sizes = [1, 100], strides = [1, 1]} : vector<12x256xf32> to vector<1x100xf32>
    %78 = arith.truncf %77 : vector<1x100xf32> to vector<1x100xbf16>
    %c1_37 = arith.constant 1 : index
    %c1024_38 = arith.constant 1024 : index
    %79 = vector.load %arg9[%c1_37, %c1024_38] : memref<2x1536xbf16, #tpu.memory_space<vmem>>, vector<1x100xbf16>
    tpu.vector_store %arg9[%c1_37, %c1024_38], %78 {strides = array<i32>} : memref<2x1536xbf16, #tpu.memory_space<vmem>>, vector<1x100xbf16>,
    %80 = vector.extract_strided_slice %14 {offsets = [9, 128], sizes = [1, 100], strides = [1, 1]} : vector<12x256xf32> to vector<1x100xf32>
    %81 = arith.truncf %80 : vector<1x100xf32> to vector<1x100xbf16>
    %c1_39 = arith.constant 1 : index
    %c1152_40 = arith.constant 1152 : index
    %82 = vector.load %arg9[%c1_39, %c1152_40] : memref<2x1536xbf16, #tpu.memory_space<vmem>>, vector<1x100xbf16>
    tpu.vector_store %arg9[%c1_39, %c1152_40], %81 {strides = array<i32>} : memref<2x1536xbf16, #tpu.memory_space<vmem>>, vector<1x100xbf16>,
    %83 = vector.extract_strided_slice %14 {offsets = [10, 128], sizes = [1, 100], strides = [1, 1]} : vector<12x256xf32> to vector<1x100xf32>
    %84 = arith.truncf %83 : vector<1x100xf32> to vector<1x100xbf16>
    %c1_41 = arith.constant 1 : index
    %c1280_42 = arith.constant 1280 : index
    %85 = vector.load %arg9[%c1_41, %c1280_42] : memref<2x1536xbf16, #tpu.memory_space<vmem>>, vector<1x100xbf16>
    tpu.vector_store %arg9[%c1_41, %c1280_42], %84 {strides = array<i32>} : memref<2x1536xbf16, #tpu.memory_space<vmem>>, vector<1x100xbf16>,
    %86 = vector.extract_strided_slice %14 {offsets = [11, 128], sizes = [1, 100], strides = [1, 1]} : vector<12x256xf32> to vector<1x100xf32>
    %87 = arith.truncf %86 : vector<1x100xf32> to vector<1x100xbf16>
    %c1_43 = arith.constant 1 : index
    %c1408_44 = arith.constant 1408 : index
    %88 = vector.load %arg9[%c1_43, %c1408_44] : memref<2x1536xbf16, #tpu.memory_space<vmem>>, vector<1x100xbf16>
    tpu.vector_store %arg9[%c1_43, %c1408_44], %87 {strides = array<i32>} : memref<2x1536xbf16, #tpu.memory_space<vmem>>, vector<1x100xbf16>,
    %c0_45 = arith.constant 0 : index
    %c0_46 = arith.constant 0 : index
    %89 = vector.load %arg9[%c0_45, %c0_46] : memref<2x1536xbf16, #tpu.memory_space<vmem>>, vector<2x1536xbf16>
    %c0_47 = arith.constant 0 : index
    %c0_48 = arith.constant 0 : index
    %90 = vector.load %arg4[%c0_47, %c0_48] : memref<1536x512xbf16, #tpu.memory_space<vmem>>, vector<1536x512xbf16>
    %cst_49 = arith.constant dense<0.000000e+00> : vector<2x512xf32>
    %91 = tpu.matmul %89, %90, %cst_49 {dimension_numbers = #tpu.dot_dimension_numbers<[1], [0], [0], [1], [0, 0, 1, 1], [], []>} : vector<2x1536xbf16>, vector<1536x512xbf16>, vector<2x512xf32> -> vector<2x512xf32>
    %92 = vector.extract_strided_slice %91 {offsets = [0, 0], sizes = [2, 128], strides = [1, 1]} : vector<2x512xf32> to vector<2x128xf32>
    %93 = vector.extract_strided_slice %91 {offsets = [0, 128], sizes = [2, 128], strides = [1, 1]} : vector<2x512xf32> to vector<2x128xf32>
    %94 = arith.maximumf %92, %93 : vector<2x128xf32>
    %95 = vector.extract_strided_slice %91 {offsets = [0, 256], sizes = [2, 128], strides = [1, 1]} : vector<2x512xf32> to vector<2x128xf32>
    %96 = vector.extract_strided_slice %91 {offsets = [0, 384], sizes = [2, 128], strides = [1, 1]} : vector<2x512xf32> to vector<2x128xf32>
    %97 = arith.maximumf %95, %96 : vector<2x128xf32>
    %98 = arith.maximumf %94, %97 : vector<2x128xf32>
    %c0_50 = arith.constant 0 : index
    %c0_51 = arith.constant 0 : index
    %99 = vector.load %arg5[%c0_50, %c0_51] : memref<1x128xf32, #tpu.memory_space<vmem>>, vector<1x128xf32>
    %100 = vector.broadcast %99 : vector<1x128xf32> to vector<2x128xf32>
    %101 = arith.addf %98, %100 : vector<2x128xf32>
    %cst_52 = arith.constant 0.000000e+00 : f32
    %102 = vector.broadcast %cst_52 : f32 to vector<2x128xf32>
    %103 = arith.maximumf %101, %102 : vector<2x128xf32>
    %c0_53 = arith.constant 0 : index
    %c0_54 = arith.constant 0 : index
    %104 = vector.load %arg6[%c0_53, %c0_54] : memref<128x12xf32, #tpu.memory_space<vmem>>, vector<128x12xf32>
    %cst_55 = arith.constant dense<0.000000e+00> : vector<2x12xf32>
    %105 = tpu.matmul %103, %104, %cst_55 {dimension_numbers = #tpu.dot_dimension_numbers<[1], [0], [0], [1], [0, 0, 1, 1], [], []>} : vector<2x128xf32>, vector<128x12xf32>, vector<2x12xf32> -> vector<2x12xf32>
    %c0_56 = arith.constant 0 : index
    %c0_57 = arith.constant 0 : index
    %106 = vector.load %arg7[%c0_56, %c0_57] : memref<1x12xf32, #tpu.memory_space<vmem>>, vector<1x12xf32>
    %107 = vector.broadcast %106 : vector<1x12xf32> to vector<2x12xf32>
    %108 = arith.addf %105, %107 : vector<2x12xf32>
    %c0_58 = arith.constant 0 : index
    %c0_59 = arith.constant 0 : index
    %109 = vector.load %arg8[%c0_58, %c0_59] : memref<2x12xf32, #tpu.memory_space<vmem>>, vector<2x12xf32>
    tpu.vector_store %arg8[%c0_58, %c0_59], %108 {strides = array<i32>} : memref<2x12xf32, #tpu.memory_space<vmem>>, vector<2x12xf32>,
    return
  }
  func.func @transform_0(%arg0: i32) -> (i32, i32) {
    %c0_i32 = arith.constant 0 : i32
    %c0_i32_0 = arith.constant 0 : i32
    %c0_i32_1 = arith.constant 0 : i32
    return %c0_i32, %c0_i32_0 : i32, i32
  }
  func.func @transform_1(%arg0: i32) -> (i32, i32) {
    %c0_i32 = arith.constant 0 : i32
    %c0_i32_0 = arith.constant 0 : i32
    %c0_i32_1 = arith.constant 0 : i32
    return %c0_i32, %c0_i32_0 : i32, i32
  }
  func.func @transform_2(%arg0: i32) -> (i32, i32) {
    %c0_i32 = arith.constant 0 : i32
    %c0_i32_0 = arith.constant 0 : i32
    %c0_i32_1 = arith.constant 0 : i32
    return %c0_i32, %c0_i32_0 : i32, i32
  }
  func.func @transform_3(%arg0: i32) -> (i32, i32) {
    %c0_i32 = arith.constant 0 : i32
    %c0_i32_0 = arith.constant 0 : i32
    %c0_i32_1 = arith.constant 0 : i32
    return %c0_i32, %c0_i32_0 : i32, i32
  }
  func.func @transform_4(%arg0: i32) -> (i32, i32) {
    %c0_i32 = arith.constant 0 : i32
    %c0_i32_0 = arith.constant 0 : i32
    %c0_i32_1 = arith.constant 0 : i32
    return %c0_i32, %c0_i32_0 : i32, i32
  }
  func.func @transform_5(%arg0: i32) -> (i32, i32) {
    %c0_i32 = arith.constant 0 : i32
    %c0_i32_0 = arith.constant 0 : i32
    %c0_i32_1 = arith.constant 0 : i32
    return %c0_i32, %c0_i32_0 : i32, i32
  }
  func.func @transform_6(%arg0: i32) -> (i32, i32) {
    %c0_i32 = arith.constant 0 : i32
    %c0_i32_0 = arith.constant 0 : i32
    %c0_i32_1 = arith.constant 0 : i32
    return %c0_i32, %c0_i32_0 : i32, i32
  }
  func.func @transform_7(%arg0: i32) -> (i32, i32) {
    %c0_i32 = arith.constant 0 : i32
    %c0_i32_0 = arith.constant 0 : i32
    %c0_i32_1 = arith.constant 0 : i32
    return %c0_i32, %c0_i32_0 : i32, i32
  }
}

</mosaic_0001>

<llo_original>
// kernel: student_net9_forward.1
$region0: #{student_net9_forward.1}
  #allocation0 [shape = 'u32[]', space=smem, size = 0x4, offset = 0x4, fixed_abs, tag = 'smem constant byte address 0x4 - core index']
  #allocation1 [shape = 'u32[144,128]{1,0:T(1,128)}', space=vmem, size = 0x12000, scoped, tag = 'internal scratch']
  #allocation2 [shape = 'bf16[2,1536]{1,0:T(2,128)(2,1)}', space=vmem, size = 0x1800, scoped, tag = 'scratch operand']
  %s0 = inlined_call_operand.vmem [shape: bf16[252,1024], index: 0, kind: input, shape index: {}]
  %s1 = inlined_call_operand.vmem [shape: bf16[12,252], index: 1, kind: input, shape index: {}]
  %s2 = inlined_call_operand.vmem [shape: f32[12,1], index: 2, kind: input, shape index: {}]
  %s3 = inlined_call_operand.vmem [shape: bf16[1536,512], index: 3, kind: input, shape index: {}]
  %s4 = inlined_call_operand.vmem [shape: f32[1,128], index: 4, kind: input, shape index: {}]
  %s5 = inlined_call_operand.vmem [shape: f32[128,12], index: 5, kind: input, shape index: {}]
  %s6 = inlined_call_operand.vmem [shape: f32[1,12], index: 6, kind: input, shape index: {}]
  %s7 = inlined_call_operand.hbm [shape: f32[2,12], index: 7, kind: output, shape index: {}]
  %s8 = sld [smem:[#allocation0]]
  $region38: #{student_net9_forward.1} parent=0
    _
  %s10 = ssub.s32 1, %s8
  %s11 = scalar_select 0, %s10, %s8
  $region1: #{student_net9_forward.1} parent=0
    #allocation3 [shape = 'u8[1024]{0}', space=vmem, size = 0x400, scoped, tag = 'output window, operand 0, single buffered']
    #allocation4 [shape = 's32[1]{0}', space=sflag, size = 0x4, scoped, tag = 'scoped memory for student_net9_forward.1']
    %12 = vsyncpa [#allocation4], 0
    // Predicated region
    $region2: #{student_net9_forward.1} parent=1 // pred_check
      _
    $region3: #{student_net9_forward.1} parent=1 // pred_check_branch
      %14 = sbr.rel (0) target = $region5
    $region4: #{student_net9_forward.1} parent=1 // pred_region
      _
    $region5: #{student_net9_forward.1} parent=1 // pred_fallthru
      _
    // Predicated region
    $region6: #{student_net9_forward.1} parent=1 // pred_check
      _
    $region7: #{student_net9_forward.1} parent=1 // pred_check_branch
      %16 = sbr.rel (0) target = $region9
    $region8: #{student_net9_forward.1} parent=1 // pred_region
      _
    $region9: #{student_net9_forward.1} parent=1 // pred_fallthru
      _
    // Predicated region
    $region10: #{student_net9_forward.1} parent=1 // pred_check
      _
    $region11: #{student_net9_forward.1} parent=1 // pred_check_branch
      %18 = sbr.rel (0) target = $region13
    $region12: #{student_net9_forward.1} parent=1 // pred_region
      _
    $region13: #{student_net9_forward.1} parent=1 // pred_fallthru
      _
    // Predicated region
    $region14: #{student_net9_forward.1} parent=1 // pred_check
      _
    $region15: #{student_net9_forward.1} parent=1 // pred_check_branch
      %20 = sbr.rel (0) target = $region17
    $region16: #{student_net9_forward.1} parent=1 // pred_region
      _
    $region17: #{student_net9_forward.1} parent=1 // pred_fallthru
      _
    // Predicated region
    $region18: #{student_net9_forward.1} parent=1 // pred_check
      _
    $region19: #{student_net9_forward.1} parent=1 // pred_check_branch
      %22 = sbr.rel (0) target = $region21
    $region20: #{student_net9_forward.1} parent=1 // pred_region
      _
    $region21: #{student_net9_forward.1} parent=1 // pred_fallthru
      _
    // Predicated region
    $region22: #{student_net9_forward.1} parent=1 // pred_check
      _
    $region23: #{student_net9_forward.1} parent=1 // pred_check_branch
      %24 = sbr.rel (0) target = $region25
    $region24: #{student_net9_forward.1} parent=1 // pred_region
      _
    $region25: #{student_net9_forward.1} parent=1 // pred_fallthru
      _
    // Predicated region
    $region26: #{student_net9_forward.1} parent=1 // pred_check
      _
    $region27: #{student_net9_forward.1} parent=1 // pred_check_branch
      %26 = sbr.rel (0) target = $region29
    $region28: #{student_net9_forward.1} parent=1 // pred_region
      _
    $region29: #{student_net9_forward.1} parent=1 // pred_fallthru
      _
    %v28 = vld [vmem:[%s1] sm:$0xff]
    %v29 = vld [vmem:[%s1 + $0x8] sm:$0x33]
    %v30 = vld [vmem:[%s0] sm:$0xff]
    %v31 = vld [vmem:[%s0 + $0x8] sm:$0xff]
    %v32 = vld [vmem:[%s0 + $0x10] sm:$0xff]
    %v33 = vld [vmem:[%s0 + $0x18] sm:$0xff]
    %v34 = vld [vmem:[%s0 + $0x20] sm:$0xff]
    %v35 = vld [vmem:[%s0 + $0x28] sm:$0xff]
    %v36 = vld [vmem:[%s0 + $0x30] sm:$0xff]
    %v37 = vld [vmem:[%s0 + $0x38] sm:$0xff]
    %v38 = vld [vmem:[%s0 + $0x40] sm:$0xff]
    %v39 = vld [vmem:[%s0 + $0x48] sm:$0xff]
    %v40 = vld [vmem:[%s0 + $0x50] sm:$0xff]
    %v41 = vld [vmem:[%s0 + $0x58] sm:$0xff]
    %v42 = vld [vmem:[%s0 + $0x60] sm:$0xff]
    %v43 = vld [vmem:[%s0 + $0x68] sm:$0xff]
    %v44 = vld [vmem:[%s0 + $0x70] sm:$0xff]
    %v45 = vld [vmem:[%s0 + $0x78] sm:$0xff]
    %v46 = vld [vmem:[%s0 + $0x80] sm:$0xff]
    %v47 = vld [vmem:[%s0 + $0x88] sm:$0xff]
    %v48 = vld [vmem:[%s0 + $0x90] sm:$0xff]
    %v49 = vld [vmem:[%s0 + $0x98] sm:$0xff]
    %v50 = vld [vmem:[%s0 + $0xa0] sm:$0xff]
    %v51 = vld [vmem:[%s0 + $0xa8] sm:$0xff]
    %v52 = vld [vmem:[%s0 + $0xb0] sm:$0xff]
    %v53 = vld [vmem:[%s0 + $0xb8] sm:$0xff]
    %v54 = vld [vmem:[%s0 + $0xc0] sm:$0xff]
    %v55 = vld [vmem:[%s0 + $0xc8] sm:$0xff]
    %v56 = vld [vmem:[%s0 + $0xd0] sm:$0xff]
    %v57 = vld [vmem:[%s0 + $0xd8] sm:$0xff]
    %v58 = vld [vmem:[%s0 + $0xe0] sm:$0xff]
    %v59 = vld [vmem:[%s0 + $0xe8] sm:$0xff]
    %v60 = vld [vmem:[%s0 + $0xf0] sm:$0xff]
    %v61 = vld [vmem:[%s0 + $0xf8] sm:$0xff]
    %v62 = vld [vmem:[%s0 + $0x100] sm:$0xff]
    %v63 = vld [vmem:[%s0 + $0x108] sm:$0xff]
    %v64 = vld [vmem:[%s0 + $0x110] sm:$0xff]
    %v65 = vld [vmem:[%s0 + $0x118] sm:$0xff]
    %v66 = vld [vmem:[%s0 + $0x120] sm:$0xff]
    %v67 = vld [vmem:[%s0 + $0x128] sm:$0xff]
    %v68 = vld [vmem:[%s0 + $0x130] sm:$0xff]
    %v69 = vld [vmem:[%s0 + $0x138] sm:$0xff]
    %v70 = vld [vmem:[%s0 + $0x140] sm:$0xff]
    %v71 = vld [vmem:[%s0 + $0x148] sm:$0xff]
    %v72 = vld [vmem:[%s0 + $0x150] sm:$0xff]
    %v73 = vld [vmem:[%s0 + $0x158] sm:$0xff]
    %v74 = vld [vmem:[%s0 + $0x160] sm:$0xff]
    %v75 = vld [vmem:[%s0 + $0x168] sm:$0xff]
    %v76 = vld [vmem:[%s0 + $0x170] sm:$0xff]
    %v77 = vld [vmem:[%s0 + $0x178] sm:$0xff]
    %v78 = vld [vmem:[%s0 + $0x180] sm:$0xff]
    %v79 = vld [vmem:[%s0 + $0x188] sm:$0xff]
    %v80 = vld [vmem:[%s0 + $0x190] sm:$0xff]
    %v81 = vld [vmem:[%s0 + $0x198] sm:$0xff]
    %v82 = vld [vmem:[%s0 + $0x1a0] sm:$0xff]
    %v83 = vld [vmem:[%s0 + $0x1a8] sm:$0xff]
    %v84 = vld [vmem:[%s0 + $0x1b0] sm:$0xff]
    %v85 = vld [vmem:[%s0 + $0x1b8] sm:$0xff]
    %v86 = vld [vmem:[%s0 + $0x1c0] sm:$0xff]
    %v87 = vld [vmem:[%s0 + $0x1c8] sm:$0xff]
    %v88 = vld [vmem:[%s0 + $0x1d0] sm:$0xff]
    %v89 = vld [vmem:[%s0 + $0x1d8] sm:$0xff]
    %v90 = vld [vmem:[%s0 + $0x1e0] sm:$0xff]
    %v91 = vld [vmem:[%s0 + $0x1e8] sm:$0xff]
    %v92 = vld [vmem:[%s0 + $0x1f0] sm:$0xff]
    %v93 = vld [vmem:[%s0 + $0x1f8] sm:$0xff]
    %v94 = vld [vmem:[%s0 + $0x200] sm:$0xff]
    %v95 = vld [vmem:[%s0 + $0x208] sm:$0xff]
    %v96 = vld [vmem:[%s0 + $0x210] sm:$0xff]
    %v97 = vld [vmem:[%s0 + $0x218] sm:$0xff]
    %v98 = vld [vmem:[%s0 + $0x220] sm:$0xff]
    %v99 = vld [vmem:[%s0 + $0x228] sm:$0xff]
    %v100 = vld [vmem:[%s0 + $0x230] sm:$0xff]
    %v101 = vld [vmem:[%s0 + $0x238] sm:$0xff]
    %v102 = vld [vmem:[%s0 + $0x240] sm:$0xff]
    %v103 = vld [vmem:[%s0 + $0x248] sm:$0xff]
    %v104 = vld [vmem:[%s0 + $0x250] sm:$0xff]
    %v105 = vld [vmem:[%s0 + $0x258] sm:$0xff]
    %v106 = vld [vmem:[%s0 + $0x260] sm:$0xff]
    %v107 = vld [vmem:[%s0 + $0x268] sm:$0xff]
    %v108 = vld [vmem:[%s0 + $0x270] sm:$0xff]
    %v109 = vld [vmem:[%s0 + $0x278] sm:$0xff]
    %v110 = vld [vmem:[%s0 + $0x280] sm:$0xff]
    %v111 = vld [vmem:[%s0 + $0x288] sm:$0xff]
    %v112 = vld [vmem:[%s0 + $0x290] sm:$0xff]
    %v113 = vld [vmem:[%s0 + $0x298] sm:$0xff]
    %v114 = vld [vmem:[%s0 + $0x2a0] sm:$0xff]
    %v115 = vld [vmem:[%s0 + $0x2a8] sm:$0xff]
    %v116 = vld [vmem:[%s0 + $0x2b0] sm:$0xff]
    %v117 = vld [vmem:[%s0 + $0x2b8] sm:$0xff]
    %v118 = vld [vmem:[%s0 + $0x2c0] sm:$0xff]
    %v119 = vld [vmem:[%s0 + $0x2c8] sm:$0xff]
    %v120 = vld [vmem:[%s0 + $0x2d0] sm:$0xff]
    %v121 = vld [vmem:[%s0 + $0x2d8] sm:$0xff]
    %v122 = vld [vmem:[%s0 + $0x2e0] sm:$0xff]
    %v123 = vld [vmem:[%s0 + $0x2e8] sm:$0xff]
    %v124 = vld [vmem:[%s0 + $0x2f0] sm:$0xff]
    %v125 = vld [vmem:[%s0 + $0x2f8] sm:$0xff]
    %v126 = vld [vmem:[%s0 + $0x300] sm:$0xff]
    %v127 = vld [vmem:[%s0 + $0x308] sm:$0xff]
    %v128 = vld [vmem:[%s0 + $0x310] sm:$0xff]
    %v129 = vld [vmem:[%s0 + $0x318] sm:$0xff]
    %v130 = vld [vmem:[%s0 + $0x320] sm:$0xff]
    %v131 = vld [vmem:[%s0 + $0x328] sm:$0xff]
    %v132 = vld [vmem:[%s0 + $0x330] sm:$0xff]
    %v133 = vld [vmem:[%s0 + $0x338] sm:$0xff]
    %v134 = vld [vmem:[%s0 + $0x340] sm:$0xff]
    %v135 = vld [vmem:[%s0 + $0x348] sm:$0xff]
    %v136 = vld [vmem:[%s0 + $0x350] sm:$0xff]
    %v137 = vld [vmem:[%s0 + $0x358] sm:$0xff]
    %v138 = vld [vmem:[%s0 + $0x360] sm:$0xff]
    %v139 = vld [vmem:[%s0 + $0x368] sm:$0xff]
    %v140 = vld [vmem:[%s0 + $0x370] sm:$0xff]
    %v141 = vld [vmem:[%s0 + $0x378] sm:$0xff]
    %v142 = vld [vmem:[%s0 + $0x380] sm:$0xff]
    %v143 = vld [vmem:[%s0 + $0x388] sm:$0xff]
    %v144 = vld [vmem:[%s0 + $0x390] sm:$0xff]
    %v145 = vld [vmem:[%s0 + $0x398] sm:$0xff]
    %v146 = vld [vmem:[%s0 + $0x3a0] sm:$0xff]
    %v147 = vld [vmem:[%s0 + $0x3a8] sm:$0xff]
    %v148 = vld [vmem:[%s0 + $0x3b0] sm:$0xff]
    %v149 = vld [vmem:[%s0 + $0x3b8] sm:$0xff]
    %v150 = vld [vmem:[%s0 + $0x3c0] sm:$0xff]
    %v151 = vld [vmem:[%s0 + $0x3c8] sm:$0xff]
    %v152 = vld [vmem:[%s0 + $0x3d0] sm:$0xff]
    %v153 = vld [vmem:[%s0 + $0x3d8] sm:$0xff]
    %v154 = vld [vmem:[%s0 + $0x3e0] sm:$0x33]
    %v155 = vld [vmem:[%s0 + $0x3e8] sm:$0x33]
    %v156 = vld [vmem:[%s0 + $0x3f0] sm:$0x33]
    %v157 = vld [vmem:[%s0 + $0x3f8] sm:$0x33]
    %v160 = vunpack.c.l.b16 %v28
    %v161 = vunpack.c.h.b16 %v28
    %v162 = vunpack.c.l.b16 %v29
    %v163 = vunpack.c.h.b16 %v29
    %v164 = vpack.c.b16 %v162, %v160
    %v165 = vpack.c.b16 %v163, %v161
    %v295 = vunpack.c.l.b16 %v30
    %v296 = vunpack.c.h.b16 %v30
    %v297 = vunpack.c.l.b16 %v31
    %v298 = vunpack.c.h.b16 %v31
    %v299 = vunpack.c.l.b16 %v32
    %v300 = vunpack.c.h.b16 %v32
    %v301 = vunpack.c.l.b16 %v33
    %v302 = vunpack.c.h.b16 %v33
    %v303 = vunpack.c.l.b16 %v34
    %v304 = vunpack.c.h.b16 %v34
    %v305 = vunpack.c.l.b16 %v35
    %v306 = vunpack.c.h.b16 %v35
    %v307 = vunpack.c.l.b16 %v36
    %v308 = vunpack.c.h.b16 %v36
    %v309 = vunpack.c.l.b16 %v37
    %v310 = vunpack.c.h.b16 %v37
    %v311 = vunpack.c.l.b16 %v38
    %v312 = vunpack.c.h.b16 %v38
    %v313 = vunpack.c.l.b16 %v39
    %v314 = vunpack.c.h.b16 %v39
    %v315 = vunpack.c.l.b16 %v40
    %v316 = vunpack.c.h.b16 %v40
    %v317 = vunpack.c.l.b16 %v41
    %v318 = vunpack.c.h.b16 %v41
    %v319 = vunpack.c.l.b16 %v42
    %v320 = vunpack.c.h.b16 %v42
    %v321 = vunpack.c.l.b16 %v43
    %v322 = vunpack.c.h.b16 %v43
    %v323 = vunpack.c.l.b16 %v44
    %v324 = vunpack.c.h.b16 %v44
    %v325 = vunpack.c.l.b16 %v45
    %v326 = vunpack.c.h.b16 %v45
    %v327 = vunpack.c.l.b16 %v46
    %v328 = vunpack.c.h.b16 %v46
    %v329 = vunpack.c.l.b16 %v47
    %v330 = vunpack.c.h.b16 %v47
    %v331 = vunpack.c.l.b16 %v48
    %v332 = vunpack.c.h.b16 %v48
    %v333 = vunpack.c.l.b16 %v49
    %v334 = vunpack.c.h.b16 %v49
    %v335 = vunpack.c.l.b16 %v50
    %v336 = vunpack.c.h.b16 %v50
    %v337 = vunpack.c.l.b16 %v51
    %v338 = vunpack.c.h.b16 %v51
    %v339 = vunpack.c.l.b16 %v52
    %v340 = vunpack.c.h.b16 %v52
    %v341 = vunpack.c.l.b16 %v53
    %v342 = vunpack.c.h.b16 %v53
    %v343 = vunpack.c.l.b16 %v54
    %v344 = vunpack.c.h.b16 %v54
    %v345 = vunpack.c.l.b16 %v55
    %v346 = vunpack.c.h.b16 %v55
    %v347 = vunpack.c.l.b16 %v56
    %v348 = vunpack.c.h.b16 %v56
    %v349 = vunpack.c.l.b16 %v57
    %v350 = vunpack.c.h.b16 %v57
    %v351 = vunpack.c.l.b16 %v58
    %v352 = vunpack.c.h.b16 %v58
    %v353 = vunpack.c.l.b16 %v59
    %v354 = vunpack.c.h.b16 %v59
    %v355 = vunpack.c.l.b16 %v60
    %v356 = vunpack.c.h.b16 %v60
    %v357 = vunpack.c.l.b16 %v61
    %v358 = vunpack.c.h.b16 %v61
    %v359 = vunpack.c.l.b16 %v62
    %v360 = vunpack.c.h.b16 %v62
    %v361 = vunpack.c.l.b16 %v63
    %v362 = vunpack.c.h.b16 %v63
    %v363 = vunpack.c.l.b16 %v64
    %v364 = vunpack.c.h.b16 %v64
    %v365 = vunpack.c.l.b16 %v65
    %v366 = vunpack.c.h.b16 %v65
    %v367 = vunpack.c.l.b16 %v66
    %v368 = vunpack.c.h.b16 %v66
    %v369 = vunpack.c.l.b16 %v67
    %v370 = vunpack.c.h.b16 %v67
    %v371 = vunpack.c.l.b16 %v68
    %v372 = vunpack.c.h.b16 %v68
    %v373 = vunpack.c.l.b16 %v69
    %v374 = vunpack.c.h.b16 %v69
    %v375 = vunpack.c.l.b16 %v70
    %v376 = vunpack.c.h.b16 %v70
    %v377 = vunpack.c.l.b16 %v71
    %v378 = vunpack.c.h.b16 %v71
    %v379 = vunpack.c.l.b16 %v72
    %v380 = vunpack.c.h.b16 %v72
    %v381 = vunpack.c.l.b16 %v73
    %v382 = vunpack.c.h.b16 %v73
    %v383 = vunpack.c.l.b16 %v74
    %v384 = vunpack.c.h.b16 %v74
    %v385 = vunpack.c.l.b16 %v75
    %v386 = vunpack.c.h.b16 %v75
    %v387 = vunpack.c.l.b16 %v76
    %v388 = vunpack.c.h.b16 %v76
    %v389 = vunpack.c.l.b16 %v77
    %v390 = vunpack.c.h.b16 %v77
    %v391 = vunpack.c.l.b16 %v78
    %v392 = vunpack.c.h.b16 %v78
    %v393 = vunpack.c.l.b16 %v79
    %v394 = vunpack.c.h.b16 %v79
    %v395 = vunpack.c.l.b16 %v80
    %v396 = vunpack.c.h.b16 %v80
    %v397 = vunpack.c.l.b16 %v81
    %v398 = vunpack.c.h.b16 %v81
    %v399 = vunpack.c.l.b16 %v82
    %v400 = vunpack.c.h.b16 %v82
    %v401 = vunpack.c.l.b16 %v83
    %v402 = vunpack.c.h.b16 %v83
    %v403 = vunpack.c.l.b16 %v84
    %v404 = vunpack.c.h.b16 %v84
    %v405 = vunpack.c.l.b16 %v85
    %v406 = vunpack.c.h.b16 %v85
    %v407 = vunpack.c.l.b16 %v86
    %v408 = vunpack.c.h.b16 %v86
    %v409 = vunpack.c.l.b16 %v87
    %v410 = vunpack.c.h.b16 %v87
    %v411 = vunpack.c.l.b16 %v88
    %v412 = vunpack.c.h.b16 %v88
    %v413 = vunpack.c.l.b16 %v89
    %v414 = vunpack.c.h.b16 %v89
    %v415 = vunpack.c.l.b16 %v90
    %v416 = vunpack.c.h.b16 %v90
    %v417 = vunpack.c.l.b16 %v91
    %v418 = vunpack.c.h.b16 %v91
    %v419 = vunpack.c.l.b16 %v92
    %v420 = vunpack.c.h.b16 %v92
    %v421 = vunpack.c.l.b16 %v93
    %v422 = vunpack.c.h.b16 %v93
    %v423 = vunpack.c.l.b16 %v94
    %v424 = vunpack.c.h.b16 %v94
    %v425 = vunpack.c.l.b16 %v95
    %v426 = vunpack.c.h.b16 %v95
    %v427 = vunpack.c.l.b16 %v96
    %v428 = vunpack.c.h.b16 %v96
    %v429 = vunpack.c.l.b16 %v97
    %v430 = vunpack.c.h.b16 %v97
    %v431 = vunpack.c.l.b16 %v98
    %v432 = vunpack.c.h.b16 %v98
    %v433 = vunpack.c.l.b16 %v99
    %v434 = vunpack.c.h.b16 %v99
    %v435 = vunpack.c.l.b16 %v100
    %v436 = vunpack.c.h.b16 %v100
    %v437 = vunpack.c.l.b16 %v101
    %v438 = vunpack.c.h.b16 %v101
    %v439 = vunpack.c.l.b16 %v102
    %v440 = vunpack.c.h.b16 %v102
    %v441 = vunpack.c.l.b16 %v103
    %v442 = vunpack.c.h.b16 %v103
    %v443 = vunpack.c.l.b16 %v104
    %v444 = vunpack.c.h.b16 %v104
    %v445 = vunpack.c.l.b16 %v105
    %v446 = vunpack.c.h.b16 %v105
    %v447 = vunpack.c.l.b16 %v106
    %v448 = vunpack.c.h.b16 %v106
    %v449 = vunpack.c.l.b16 %v107
    %v450 = vunpack.c.h.b16 %v107
    %v451 = vunpack.c.l.b16 %v108
    %v452 = vunpack.c.h.b16 %v108
    %v453 = vunpack.c.l.b16 %v109
    %v454 = vunpack.c.h.b16 %v109
    %v455 = vunpack.c.l.b16 %v110
    %v456 = vunpack.c.h.b16 %v110
    %v457 = vunpack.c.l.b16 %v111
    %v458 = vunpack.c.h.b16 %v111
    %v459 = vunpack.c.l.b16 %v112
    %v460 = vunpack.c.h.b16 %v112
    %v461 = vunpack.c.l.b16 %v113
    %v462 = vunpack.c.h.b16 %v113
    %v463 = vunpack.c.l.b16 %v114
    %v464 = vunpack.c.h.b16 %v114
    %v465 = vunpack.c.l.b16 %v115
    %v466 = vunpack.c.h.b16 %v115
    %v467 = vunpack.c.l.b16 %v116
    %v468 = vunpack.c.h.b16 %v116
    %v469 = vunpack.c.l.b16 %v117
    %v470 = vunpack.c.h.b16 %v117
    %v471 = vunpack.c.l.b16 %v118
    %v472 = vunpack.c.h.b16 %v118
    %v473 = vunpack.c.l.b16 %v119
    %v474 = vunpack.c.h.b16 %v119
    %v475 = vunpack.c.l.b16 %v120
    %v476 = vunpack.c.h.b16 %v120
    %v477 = vunpack.c.l.b16 %v121
    %v478 = vunpack.c.h.b16 %v121
    %v479 = vunpack.c.l.b16 %v122
    %v480 = vunpack.c.h.b16 %v122
    %v481 = vunpack.c.l.b16 %v123
    %v482 = vunpack.c.h.b16 %v123
    %v483 = vunpack.c.l.b16 %v124
    %v484 = vunpack.c.h.b16 %v124
    %v485 = vunpack.c.l.b16 %v125
    %v486 = vunpack.c.h.b16 %v125
    %v487 = vunpack.c.l.b16 %v126
    %v488 = vunpack.c.h.b16 %v126
    %v489 = vunpack.c.l.b16 %v127
    %v490 = vunpack.c.h.b16 %v127
    %v491 = vunpack.c.l.b16 %v128
    %v492 = vunpack.c.h.b16 %v128
    %v493 = vunpack.c.l.b16 %v129
    %v494 = vunpack.c.h.b16 %v129
    %v495 = vunpack.c.l.b16 %v130
    %v496 = vunpack.c.h.b16 %v130
    %v497 = vunpack.c.l.b16 %v131
    %v498 = vunpack.c.h.b16 %v131
    %v499 = vunpack.c.l.b16 %v132
    %v500 = vunpack.c.h.b16 %v132
    %v501 = vunpack.c.l.b16 %v133
    %v502 = vunpack.c.h.b16 %v133
    %v503 = vunpack.c.l.b16 %v134
    %v504 = vunpack.c.h.b16 %v134
    %v505 = vunpack.c.l.b16 %v135
    %v506 = vunpack.c.h.b16 %v135
    %v507 = vunpack.c.l.b16 %v136
    %v508 = vunpack.c.h.b16 %v136
    %v509 = vunpack.c.l.b16 %v137
    %v510 = vunpack.c.h.b16 %v137
    %v511 = vunpack.c.l.b16 %v138
    %v512 = vunpack.c.h.b16 %v138
    %v513 = vunpack.c.l.b16 %v139
    %v514 = vunpack.c.h.b16 %v139
    %v515 = vunpack.c.l.b16 %v140
    %v516 = vunpack.c.h.b16 %v140
    %v517 = vunpack.c.l.b16 %v141
    %v518 = vunpack.c.h.b16 %v141
    %v519 = vunpack.c.l.b16 %v142
    %v520 = vunpack.c.h.b16 %v142
    %v521 = vunpack.c.l.b16 %v143
    %v522 = vunpack.c.h.b16 %v143
    %v523 = vunpack.c.l.b16 %v144
    %v524 = vunpack.c.h.b16 %v144
    %v525 = vunpack.c.l.b16 %v145
    %v526 = vunpack.c.h.b16 %v145
    %v527 = vunpack.c.l.b16 %v146
    %v528 = vunpack.c.h.b16 %v146
    %v529 = vunpack.c.l.b16 %v147
    %v530 = vunpack.c.h.b16 %v147
    %v531 = vunpack.c.l.b16 %v148
    %v532 = vunpack.c.h.b16 %v148
    %v533 = vunpack.c.l.b16 %v149
    %v534 = vunpack.c.h.b16 %v149
    %v535 = vunpack.c.l.b16 %v150
    %v536 = vunpack.c.h.b16 %v150
    %v537 = vunpack.c.l.b16 %v151
    %v538 = vunpack.c.h.b16 %v151
    %v539 = vunpack.c.l.b16 %v152
    %v540 = vunpack.c.h.b16 %v152
    %v541 = vunpack.c.l.b16 %v153
    %v542 = vunpack.c.h.b16 %v153
    %v543 = vunpack.c.l.b16 %v154
    %v544 = vunpack.c.h.b16 %v154
    %v545 = vunpack.c.l.b16 %v155
    %v546 = vunpack.c.h.b16 %v155
    %v547 = vunpack.c.l.b16 %v156
    %v548 = vunpack.c.h.b16 %v156
    %v549 = vunpack.c.l.b16 %v157
    %v550 = vunpack.c.h.b16 %v157
    %v551 = vpack.c.b16 %v303, %v295
    %v552 = vpack.c.b16 %v304, %v296
    %v553 = vpack.c.b16 %v305, %v297
    %v554 = vpack.c.b16 %v306, %v298
    %v555 = vpack.c.b16 %v307, %v299
    %v556 = vpack.c.b16 %v308, %v300
    %v557 = vpack.c.b16 %v309, %v301
    %v558 = vpack.c.b16 %v310, %v302
    %v559 = vpack.c.b16 %v319, %v311
    %v560 = vpack.c.b16 %v320, %v312
    %v561 = vpack.c.b16 %v321, %v313
    %v562 = vpack.c.b16 %v322, %v314
    %v563 = vpack.c.b16 %v323, %v315
    %v564 = vpack.c.b16 %v324, %v316
    %v565 = vpack.c.b16 %v325, %v317
    %v566 = vpack.c.b16 %v326, %v318
    %v567 = vpack.c.b16 %v335, %v327
    %v568 = vpack.c.b16 %v336, %v328
    %v569 = vpack.c.b16 %v337, %v329
    %v570 = vpack.c.b16 %v338, %v330
    %v571 = vpack.c.b16 %v339, %v331
    %v572 = vpack.c.b16 %v340, %v332
    %v573 = vpack.c.b16 %v341, %v333
    %v574 = vpack.c.b16 %v342, %v334
    %v575 = vpack.c.b16 %v351, %v343
    %v576 = vpack.c.b16 %v352, %v344
    %v577 = vpack.c.b16 %v353, %v345
    %v578 = vpack.c.b16 %v354, %v346
    %v579 = vpack.c.b16 %v355, %v347
    %v580 = vpack.c.b16 %v356, %v348
    %v581 = vpack.c.b16 %v357, %v349
    %v582 = vpack.c.b16 %v358, %v350
    %v583 = vpack.c.b16 %v367, %v359
    %v584 = vpack.c.b16 %v368, %v360
    %v585 = vpack.c.b16 %v369, %v361
    %v586 = vpack.c.b16 %v370, %v362
    %v587 = vpack.c.b16 %v371, %v363
    %v588 = vpack.c.b16 %v372, %v364
    %v589 = vpack.c.b16 %v373, %v365
    %v590 = vpack.c.b16 %v374, %v366
    %v591 = vpack.c.b16 %v383, %v375
    %v592 = vpack.c.b16 %v384, %v376
    %v593 = vpack.c.b16 %v385, %v377
    %v594 = vpack.c.b16 %v386, %v378
    %v595 = vpack.c.b16 %v387, %v379
    %v596 = vpack.c.b16 %v388, %v380
    %v597 = vpack.c.b16 %v389, %v381
    %v598 = vpack.c.b16 %v390, %v382
    %v599 = vpack.c.b16 %v399, %v391
    %v600 = vpack.c.b16 %v400, %v392
    %v601 = vpack.c.b16 %v401, %v393
    %v602 = vpack.c.b16 %v402, %v394
    %v603 = vpack.c.b16 %v403, %v395
    %v604 = vpack.c.b16 %v404, %v396
    %v605 = vpack.c.b16 %v405, %v397
    %v606 = vpack.c.b16 %v406, %v398
    %v607 = vpack.c.b16 %v415, %v407
    %v608 = vpack.c.b16 %v416, %v408
    %v609 = vpack.c.b16 %v417, %v409
    %v610 = vpack.c.b16 %v418, %v410
    %v611 = vpack.c.b16 %v419, %v411
    %v612 = vpack.c.b16 %v420, %v412
    %v613 = vpack.c.b16 %v421, %v413
    %v614 = vpack.c.b16 %v422, %v414
    %v615 = vpack.c.b16 %v431, %v423
    %v616 = vpack.c.b16 %v432, %v424
    %v617 = vpack.c.b16 %v433, %v425
    %v618 = vpack.c.b16 %v434, %v426
    %v619 = vpack.c.b16 %v435, %v427
    %v620 = vpack.c.b16 %v436, %v428
    %v621 = vpack.c.b16 %v437, %v429
    %v622 = vpack.c.b16 %v438, %v430
    %v623 = vpack.c.b16 %v447, %v439
    %v624 = vpack.c.b16 %v448, %v440
    %v625 = vpack.c.b16 %v449, %v441
    %v626 = vpack.c.b16 %v450, %v442
    %v627 = vpack.c.b16 %v451, %v443
    %v628 = vpack.c.b16 %v452, %v444
    %v629 = vpack.c.b16 %v453, %v445
    %v630 = vpack.c.b16 %v454, %v446
    %v631 = vpack.c.b16 %v463, %v455
    %v632 = vpack.c.b16 %v464, %v456
    %v633 = vpack.c.b16 %v465, %v457
    %v634 = vpack.c.b16 %v466, %v458
    %v635 = vpack.c.b16 %v467, %v459
    %v636 = vpack.c.b16 %v468, %v460
    %v637 = vpack.c.b16 %v469, %v461
    %v638 = vpack.c.b16 %v470, %v462
    %v639 = vpack.c.b16 %v479, %v471
    %v640 = vpack.c.b16 %v480, %v472
    %v641 = vpack.c.b16 %v481, %v473
    %v642 = vpack.c.b16 %v482, %v474
    %v643 = vpack.c.b16 %v483, %v475
    %v644 = vpack.c.b16 %v484, %v476
    %v645 = vpack.c.b16 %v485, %v477
    %v646 = vpack.c.b16 %v486, %v478
    %v647 = vpack.c.b16 %v495, %v487
    %v648 = vpack.c.b16 %v496, %v488
    %v649 = vpack.c.b16 %v497, %v489
    %v650 = vpack.c.b16 %v498, %v490
    %v651 = vpack.c.b16 %v499, %v491
    %v652 = vpack.c.b16 %v500, %v492
    %v653 = vpack.c.b16 %v501, %v493
    %v654 = vpack.c.b16 %v502, %v494
    %v655 = vpack.c.b16 %v511, %v503
    %v656 = vpack.c.b16 %v512, %v504
    %v657 = vpack.c.b16 %v513, %v505
    %v658 = vpack.c.b16 %v514, %v506
    %v659 = vpack.c.b16 %v515, %v507
    %v660 = vpack.c.b16 %v516, %v508
    %v661 = vpack.c.b16 %v517, %v509
    %v662 = vpack.c.b16 %v518, %v510
    %v663 = vpack.c.b16 %v527, %v519
    %v664 = vpack.c.b16 %v528, %v520
    %v665 = vpack.c.b16 %v529, %v521
    %v666 = vpack.c.b16 %v530, %v522
    %v667 = vpack.c.b16 %v531, %v523
    %v668 = vpack.c.b16 %v532, %v524
    %v669 = vpack.c.b16 %v533, %v525
    %v670 = vpack.c.b16 %v534, %v526
    %v671 = vpack.c.b16 %v543, %v535
    %v672 = vpack.c.b16 %v544, %v536
    %v673 = vpack.c.b16 %v545, %v537
    %v674 = vpack.c.b16 %v546, %v538
    %v675 = vpack.c.b16 %v547, %v539
    %v676 = vpack.c.b16 %v548, %v540
    %v677 = vpack.c.b16 %v549, %v541
    %v678 = vpack.c.b16 %v550, %v542
    %vm799 = vcmask 1014784
    %v801 = vsel %vm799, %v165, 0
    %vm803 = vcmask 1045504
    %v805 = vsel %vm803, %v671, 0
    %v808 = vsel %vm803, %v672, 0
    %v811 = vsel %vm803, %v673, 0
    %v814 = vsel %vm803, %v674, 0
    %v817 = vsel %vm803, %v675, 0
    %v820 = vsel %vm803, %v676, 0
    %v823 = vsel %vm803, %v677, 0
    %v826 = vsel %vm803, %v678, 0
    %828 = vmatprep.subr.bf16.mxu0 %v552
    %829 = vmatpush1.bf16.msra.mxu0 %v551
    %830 = vmatprep.subr.bf16.mxu0 %v560
    %831 = vmatpush1.bf16.msra.mxu0 %v559
    %832 = vmatprep.subr.bf16.mxu0 %v568
    %833 = vmatpush1.bf16.msra.mxu0 %v567
    %834 = vmatprep.subr.bf16.mxu0 %v576
    %835 = vmatpush1.bf16.msra.mxu0 %v575
    %836 = vmatprep.subr.bf16.mxu0 %v584
    %837 = vmatpush1.bf16.msra.mxu0 %v583
    %838 = vmatprep.subr.bf16.mxu0 %v592
    %839 = vmatpush1.bf16.msra.mxu0 %v591
    %840 = vmatprep.subr.bf16.mxu0 %v600
    %841 = vmatpush1.bf16.msra.mxu0 %v599
    %842 = vmatprep.subr.bf16.mxu0 %v608
    %843 = vmatpush1.bf16.msra.mxu0 %v607
    %844 = vmatprep.subr.bf16.mxu0 %v616
    %845 = vmatpush1.bf16.msra.mxu0 %v615
    %846 = vmatprep.subr.bf16.mxu0 %v624
    %847 = vmatpush1.bf16.msra.mxu0 %v623
    %848 = vmatprep.subr.bf16.mxu0 %v632
    %849 = vmatpush1.bf16.msra.mxu0 %v631
    %850 = vmatprep.subr.bf16.mxu0 %v640
    %851 = vmatpush1.bf16.msra.mxu0 %v639
    %852 = vmatprep.subr.bf16.mxu0 %v648
    %853 = vmatpush1.bf16.msra.mxu0 %v647
    %854 = vmatprep.subr.bf16.mxu0 %v656
    %855 = vmatpush1.bf16.msra.mxu0 %v655
    %856 = vmatprep.subr.bf16.mxu0 %v664
    %857 = vmatpush1.bf16.msra.mxu0 %v663
    %858 = vmatprep.subr.bf16.mxu0 %v808
    %859 = vmatpush1.bf16.msra.mxu0 %v805
    %860 = vmatprep.mubr.bf16.mxu0 %v801
    %861 = vmatmul.mubr.bf16.gmra.mrb[0].mxu0 %v164
    %v862 = vpop.f32.mrb[0].mxu0
    %v863 = vadd.f32 0.0, %v862
    %v864 = vpop.f32.mrb[0].mxu0
    %v865 = vadd.f32 0.0, %v864
    %v866 = vpop.f32.mrb[0].mxu0
    %v867 = vadd.f32 0.0, %v866
    %v868 = vpop.f32.mrb[0].mxu0
    %v869 = vadd.f32 0.0, %v868
    %870 = vdwg.mxu0
    %871 = vmatprep.subr.bf16.mxu0 %v554
    %872 = vmatpush1.bf16.msra.mxu0 %v553
    %873 = vmatprep.subr.bf16.mxu0 %v562
    %874 = vmatpush1.bf16.msra.mxu0 %v561
    %875 = vmatprep.subr.bf16.mxu0 %v570
    %876 = vmatpush1.bf16.msra.mxu0 %v569
    %877 = vmatprep.subr.bf16.mxu0 %v578
    %878 = vmatpush1.bf16.msra.mxu0 %v577
    %879 = vmatprep.subr.bf16.mxu0 %v586
    %880 = vmatpush1.bf16.msra.mxu0 %v585
    %881 = vmatprep.subr.bf16.mxu0 %v594
    %882 = vmatpush1.bf16.msra.mxu0 %v593
    %883 = vmatprep.subr.bf16.mxu0 %v602
    %884 = vmatpush1.bf16.msra.mxu0 %v601
    %885 = vmatprep.subr.bf16.mxu0 %v610
    %886 = vmatpush1.bf16.msra.mxu0 %v609
    %887 = vmatprep.subr.bf16.mxu0 %v618
    %888 = vmatpush1.bf16.msra.mxu0 %v617
    %889 = vmatprep.subr.bf16.mxu0 %v626
    %890 = vmatpush1.bf16.msra.mxu0 %v625
    %891 = vmatprep.subr.bf16.mxu0 %v634
    %892 = vmatpush1.bf16.msra.mxu0 %v633
    %893 = vmatprep.subr.bf16.mxu0 %v642
    %894 = vmatpush1.bf16.msra.mxu0 %v641
    %895 = vmatprep.subr.bf16.mxu0 %v650
    %896 = vmatpush1.bf16.msra.mxu0 %v649
    %897 = vmatprep.subr.bf16.mxu0 %v658
    %898 = vmatpush1.bf16.msra.mxu0 %v657
    %899 = vmatprep.subr.bf16.mxu0 %v666
    %900 = vmatpush1.bf16.msra.mxu0 %v665
    %901 = vmatprep.subr.bf16.mxu0 %v814
    %902 = vmatpush1.bf16.msra.mxu0 %v811
    %903 = vmatprep.mubr.bf16.mxu0 %v801
    %904 = vmatmul.mubr.bf16.gmra.mrb[0].mxu0 %v164
    %v905 = vpop.f32.mrb[0].mxu0
    %v906 = vadd.f32 0.0, %v905
    %v907 = vpop.f32.mrb[0].mxu0
    %v908 = vadd.f32 0.0, %v907
    %v909 = vpop.f32.mrb[0].mxu0
    %v910 = vadd.f32 0.0, %v909
    %v911 = vpop.f32.mrb[0].mxu0
    %v912 = vadd.f32 0.0, %v911
    %913 = vdwg.mxu0
    %914 = vmatprep.subr.bf16.mxu0 %v556
    %915 = vmatpush1.bf16.msra.mxu0 %v555
    %916 = vmatprep.subr.bf16.mxu0 %v564
    %917 = vmatpush1.bf16.msra.mxu0 %v563
    %918 = vmatprep.subr.bf16.mxu0 %v572
    %919 = vmatpush1.bf16.msra.mxu0 %v571
    %920 = vmatprep.subr.bf16.mxu0 %v580
    %921 = vmatpush1.bf16.msra.mxu0 %v579
    %922 = vmatprep.subr.bf16.mxu0 %v588
    %923 = vmatpush1.bf16.msra.mxu0 %v587
    %924 = vmatprep.subr.bf16.mxu0 %v596
    %925 = vmatpush1.bf16.msra.mxu0 %v595
    %926 = vmatprep.subr.bf16.mxu0 %v604
    %927 = vmatpush1.bf16.msra.mxu0 %v603
    %928 = vmatprep.subr.bf16.mxu0 %v612
    %929 = vmatpush1.bf16.msra.mxu0 %v611
    %930 = vmatprep.subr.bf16.mxu0 %v620
    %931 = vmatpush1.bf16.msra.mxu0 %v619
    %932 = vmatprep.subr.bf16.mxu0 %v628
    %933 = vmatpush1.bf16.msra.mxu0 %v627
    %934 = vmatprep.subr.bf16.mxu0 %v636
    %935 = vmatpush1.bf16.msra.mxu0 %v635
    %936 = vmatprep.subr.bf16.mxu0 %v644
    %937 = vmatpush1.bf16.msra.mxu0 %v643
    %938 = vmatprep.subr.bf16.mxu0 %v652
    %939 = vmatpush1.bf16.msra.mxu0 %v651
    %940 = vmatprep.subr.bf16.mxu0 %v660
    %941 = vmatpush1.bf16.msra.mxu0 %v659
    %942 = vmatprep.subr.bf16.mxu0 %v668
    %943 = vmatpush1.bf16.msra.mxu0 %v667
    %944 = vmatprep.subr.bf16.mxu0 %v820
    %945 = vmatpush1.bf16.msra.mxu0 %v817
    %946 = vmatprep.mubr.bf16.mxu0 %v801
    %947 = vmatmul.mubr.bf16.gmra.mrb[0].mxu0 %v164
    %v948 = vpop.f32.mrb[0].mxu0
    %v949 = vadd.f32 0.0, %v948
    %v950 = vpop.f32.mrb[0].mxu0
    %v951 = vadd.f32 0.0, %v950
    %v952 = vpop.f32.mrb[0].mxu0
    %v953 = vadd.f32 0.0, %v952
    %v954 = vpop.f32.mrb[0].mxu0
    %v955 = vadd.f32 0.0, %v954
    %956 = vdwg.mxu0
    %957 = vmatprep.subr.bf16.mxu0 %v558
    %958 = vmatpush1.bf16.msra.mxu0 %v557
    %959 = vmatprep.subr.bf16.mxu0 %v566
    %960 = vmatpush1.bf16.msra.mxu0 %v565
    %961 = vmatprep.subr.bf16.mxu0 %v574
    %962 = vmatpush1.bf16.msra.mxu0 %v573
    %963 = vmatprep.subr.bf16.mxu0 %v582
    %964 = vmatpush1.bf16.msra.mxu0 %v581
    %965 = vmatprep.subr.bf16.mxu0 %v590
    %966 = vmatpush1.bf16.msra.mxu0 %v589
    %967 = vmatprep.subr.bf16.mxu0 %v598
    %968 = vmatpush1.bf16.msra.mxu0 %v597
    %969 = vmatprep.subr.bf16.mxu0 %v606
    %970 = vmatpush1.bf16.msra.mxu0 %v605
    %971 = vmatprep.subr.bf16.mxu0 %v614
    %972 = vmatpush1.bf16.msra.mxu0 %v613
    %973 = vmatprep.subr.bf16.mxu0 %v622
    %974 = vmatpush1.bf16.msra.mxu0 %v621
    %975 = vmatprep.subr.bf16.mxu0 %v630
    %976 = vmatpush1.bf16.msra.mxu0 %v629
    %977 = vmatprep.subr.bf16.mxu0 %v638
    %978 = vmatpush1.bf16.msra.mxu0 %v637
    %979 = vmatprep.subr.bf16.mxu0 %v646
    %980 = vmatpush1.bf16.msra.mxu0 %v645
    %981 = vmatprep.subr.bf16.mxu0 %v654
    %982 = vmatpush1.bf16.msra.mxu0 %v653
    %983 = vmatprep.subr.bf16.mxu0 %v662
    %984 = vmatpush1.bf16.msra.mxu0 %v661
    %985 = vmatprep.subr.bf16.mxu0 %v670
    %986 = vmatpush1.bf16.msra.mxu0 %v669
    %987 = vmatprep.subr.bf16.mxu0 %v826
    %988 = vmatpush1.bf16.msra.mxu0 %v823
    %989 = vmatprep.mubr.bf16.mxu0 %v801
    %990 = vmatmul.mubr.bf16.gmra.mrb[0].mxu0 %v164
    %v991 = vpop.f32.mrb[0].mxu0
    %v992 = vadd.f32 0.0, %v991
    %v993 = vpop.f32.mrb[0].mxu0
    %v994 = vadd.f32 0.0, %v993
    %v995 = vpop.f32.mrb[0].mxu0
    %v996 = vadd.f32 0.0, %v995
    %v997 = vpop.f32.mrb[0].mxu0
    %v998 = vadd.f32 0.0, %v997
    %999 = vdwg.mxu0
    %v1000 = vmax.f32 %v863, %v906
    %v1001 = vmax.f32 %v865, %v908
    %v1002 = vmax.f32 %v867, %v910
    %v1003 = vmax.f32 %v869, %v912
    %v1004 = vmax.f32 %v949, %v992
    %v1005 = vmax.f32 %v951, %v994
    %v1006 = vmax.f32 %v953, %v996
    %v1007 = vmax.f32 %v955, %v998
    %v1008 = vmax.f32 %v1000, %v1004
    %v1009 = vmax.f32 %v1001, %v1005
    %v1010 = vmax.f32 %v1002, %v1006
    %v1011 = vmax.f32 %v1003, %v1007
    %v1012 = vld [vmem:[%s2] sm:$0xff]
    %v1013 = vld [vmem:[%s2 + $0x8] sm:$0xf]
    %1015 = vset.pattern.permute.xlu0 0
    %1016 = vperm.xlu0 %1015, %v1012
    %v1017 = vpop.permute.xlu0 %1016
    %1020 = vset.pattern.permute.xlu0 0
    %1021 = vperm.xlu0 %1020, %v1013
    %v1022 = vpop.permute.xlu0 %1021
    %v1024 = vadd.f32 %v1008, %v1017
    %v1025 = vadd.f32 %v1009, %v1017
    %v1026 = vadd.f32 %v1010, %v1022
    %v1027 = vadd.f32 %v1011, %v1022
    %v1028 = vmax.f32 %v1024, 0.0
    %v1029 = vmax.f32 %v1025, 0.0
    %v1030 = vmax.f32 %v1026, 0.0
    %v1031 = vmax.f32 %v1027, 0.0
    %1032 = vst [vmem:[#allocation2] sm:$0xff] 0
    %1033 = vst [vmem:[#allocation2 + $0x8] sm:$0xf] 0
    %v1034 = vpack.c.bf16 %v1028, %v1028
    %vm1035 = vcmask 811008
    %vm1036 = vsmask.f32 256
    %vm1037 = vmand %vm1035, %vm1036
    %v1038 = vld [vmem:[#allocation2] sm:$0x1]
    %v1039 = vsel %vm1037, %v1034, %v1038
    %1040 = vst [vmem:[#allocation2] sm:$0x1] %v1039
    %v1043 = vunpack.c.l.s4 1966171168
    %v1044 = vunpack.c.0.s8 %v1043
    %v1045 = vlaneseq
    %v1046 = vshrl.u32 %v1045, 7
    %v1047 = vsub.s32 %v1044, %v1046
    %v1048 = vrot.slane %v1034, %v1047
    %v1050 = vunpack.c.l.s4 1966171168
    %v1051 = vunpack.c.0.s8 %v1050
    %v1052 = vlaneseq
    %v1053 = vshrl.u32 %v1052, 7
    %v1054 = vsub.s32 %v1051, %v1053
    %v1055 = vrot.slane %v1048, %v1054
    %v1057 = vshrl.u32 %v1055, 16
    %v1059 = vrot.slane %v1057, 7
    %v1060 = vrot.slane %v1059, 1
    %v1062 = vld [vmem:[#allocation2 + $0x1] sm:$0x1]
    %v1063 = vsel %vm1037, %v1060, %v1062
    %1064 = vst [vmem:[#allocation2 + $0x1] sm:$0x1] %v1063
    %v1065 = vcombine.high %v1048, %v1048
    %v1067 = vunpack.c.l.s4 1966171168
    %v1068 = vunpack.c.0.s8 %v1067
    %v1069 = vlaneseq
    %v1070 = vshrl.u32 %v1069, 7
    %v1071 = vsub.s32 %v1068, %v1070
    %v1072 = vrot.slane %v1065, %v1071
    %v1074 = vld [vmem:[#allocation2 + $0x2] sm:$0x1]
    %v1075 = vsel %vm1037, %v1072, %v1074
    %1076 = vst [vmem:[#allocation2 + $0x2] sm:$0x1] %v1075
    %v1078 = vshrl.u32 %v1072, 16
    %v1080 = vrot.slane %v1078, 7
    %v1081 = vrot.slane %v1080, 1
    %v1083 = vld [vmem:[#allocation2 + $0x3] sm:$0x1]
    %v1084 = vsel %vm1037, %v1081, %v1083
    %1085 = vst [vmem:[#allocation2 + $0x3] sm:$0x1] %v1084
    %v1086 = vcombine.high %v1055, %v1055
    %v1088 = vld [vmem:[#allocation2 + $0x4] sm:$0x1]
    %v1089 = vsel %vm1037, %v1086, %v1088
    %1090 = vst [vmem:[#allocation2 + $0x4] sm:$0x1] %v1089
    %v1092 = vshrl.u32 %v1086, 16
    %v1094 = vrot.slane %v1092, 7
    %v1095 = vrot.slane %v1094, 1
    %v1097 = vld [vmem:[#allocation2 + $0x5] sm:$0x1]
    %v1098 = vsel %vm1037, %v1095, %v1097
    %1099 = vst [vmem:[#allocation2 + $0x5] sm:$0x1] %v1098
    %v1100 = vcombine.high %v1072, %v1072
    %v1102 = vld [vmem:[#allocation2 + $0x6] sm:$0x1]
    %v1103 = vsel %vm1037, %v1100, %v1102
    %1104 = vst [vmem:[#allocation2 + $0x6] sm:$0x1] %v1103
    %v1106 = vshrl.u32 %v1100, 16
    %v1108 = vrot.slane %v1106, 7
    %v1109 = vrot.slane %v1108, 1
    %v1111 = vld [vmem:[#allocation2 + $0x7] sm:$0x1]
    %v1112 = vsel %vm1037, %v1109, %v1111
    %1113 = vst [vmem:[#allocation2 + $0x7] sm:$0x1] %v1112
    %v1114 = vpack.c.bf16 %v1030, %v1030
    %v1115 = vld [vmem:[#allocation2 + $0x8] sm:$0x1]
    %v1116 = vsel %vm1037, %v1114, %v1115
    %1117 = vst [vmem:[#allocation2 + $0x8] sm:$0x1] %v1116
    %v1120 = vunpack.c.l.s4 1966171168
    %v1121 = vunpack.c.0.s8 %v1120
    %v1122 = vlaneseq
    %v1123 = vshrl.u32 %v1122, 7
    %v1124 = vsub.s32 %v1121, %v1123
    %v1125 = vrot.slane %v1114, %v1124
    %v1127 = vunpack.c.l.s4 1966171168
    %v1128 = vunpack.c.0.s8 %v1127
    %v1129 = vlaneseq
    %v1130 = vshrl.u32 %v1129, 7
    %v1131 = vsub.s32 %v1128, %v1130
    %v1132 = vrot.slane %v1125, %v1131
    %v1134 = vshrl.u32 %v1132, 16
    %v1136 = vrot.slane %v1134, 7
    %v1137 = vrot.slane %v1136, 1
    %v1139 = vld [vmem:[#allocation2 + $0x9] sm:$0x1]
    %v1140 = vsel %vm1037, %v1137, %v1139
    %1141 = vst [vmem:[#allocation2 + $0x9] sm:$0x1] %v1140
    %v1142 = vcombine.high %v1125, %v1125
    %v1144 = vunpack.c.l.s4 1966171168
    %v1145 = vunpack.c.0.s8 %v1144
    %v1146 = vlaneseq
    %v1147 = vshrl.u32 %v1146, 7
    %v1148 = vsub.s32 %v1145, %v1147
    %v1149 = vrot.slane %v1142, %v1148
    %v1151 = vld [vmem:[#allocation2 + $0xa] sm:$0x1]
    %v1152 = vsel %vm1037, %v1149, %v1151
    %1153 = vst [vmem:[#allocation2 + $0xa] sm:$0x1] %v1152
    %v1155 = vshrl.u32 %v1149, 16
    %v1157 = vrot.slane %v1155, 7
    %v1158 = vrot.slane %v1157, 1
    %v1160 = vld [vmem:[#allocation2 + $0xb] sm:$0x1]
    %v1161 = vsel %vm1037, %v1158, %v1160
    %1162 = vst [vmem:[#allocation2 + $0xb] sm:$0x1] %v1161
    %v1163 = vpack.c.bf16 %v1029, %v1029
    %v1166 = vunpack.c.l.s4 1966171168
    %v1167 = vunpack.c.0.s8 %v1166
    %v1168 = vlaneseq
    %v1169 = vshrl.u32 %v1168, 7
    %v1170 = vsub.s32 %v1167, %v1169
    %v1171 = vrot.slane %v1163, %v1170
    %v1173 = vunpack.c.l.s4 1966171168
    %v1174 = vunpack.c.0.s8 %v1173
    %v1175 = vlaneseq
    %v1176 = vshrl.u32 %v1175, 7
    %v1177 = vsub.s32 %v1174, %v1176
    %v1178 = vrot.slane %v1171, %v1177
    %v1180 = vshll.u32 %v1178, 16
    %vm1183 = vsmask.f32 7938
    %vm1184 = vmand %vm1035, %vm1183
    %v1185 = vld [vmem:[#allocation2] sm:$0x1]
    %v1186 = vsel %vm1184, %v1180, %v1185
    %1187 = vst [vmem:[#allocation2] sm:$0x1] %v1186
    %v1188 = vld [vmem:[#allocation2 + $0x1] sm:$0x1]
    %v1189 = vsel %vm1184, %v1163, %v1188
    %1190 = vst [vmem:[#allocation2 + $0x1] sm:$0x1] %v1189
    %v1191 = vcombine.high %v1171, %v1171
    %v1193 = vunpack.c.l.s4 1966171168
    %v1194 = vunpack.c.0.s8 %v1193
    %v1195 = vlaneseq
    %v1196 = vshrl.u32 %v1195, 7
    %v1197 = vsub.s32 %v1194, %v1196
    %v1198 = vrot.slane %v1191, %v1197
    %v1200 = vshll.u32 %v1198, 16
    %v1203 = vld [vmem:[#allocation2 + $0x2] sm:$0x1]
    %v1204 = vsel %vm1184, %v1200, %v1203
    %1205 = vst [vmem:[#allocation2 + $0x2] sm:$0x1] %v1204
    %v1207 = vld [vmem:[#allocation2 + $0x3] sm:$0x1]
    %v1208 = vsel %vm1184, %v1198, %v1207
    %1209 = vst [vmem:[#allocation2 + $0x3] sm:$0x1] %v1208
    %v1210 = vcombine.high %v1178, %v1178
    %v1212 = vshll.u32 %v1210, 16
    %v1215 = vld [vmem:[#allocation2 + $0x4] sm:$0x1]
    %v1216 = vsel %vm1184, %v1212, %v1215
    %1217 = vst [vmem:[#allocation2 + $0x4] sm:$0x1] %v1216
    %v1219 = vld [vmem:[#allocation2 + $0x5] sm:$0x1]
    %v1220 = vsel %vm1184, %v1210, %v1219
    %1221 = vst [vmem:[#allocation2 + $0x5] sm:$0x1] %v1220
    %v1222 = vcombine.high %v1198, %v1198
    %v1224 = vshll.u32 %v1222, 16
    %v1227 = vld [vmem:[#allocation2 + $0x6] sm:$0x1]
    %v1228 = vsel %vm1184, %v1224, %v1227
    %1229 = vst [vmem:[#allocation2 + $0x6] sm:$0x1] %v1228
    %v1231 = vld [vmem:[#allocation2 + $0x7] sm:$0x1]
    %v1232 = vsel %vm1184, %v1222, %v1231
    %1233 = vst [vmem:[#allocation2 + $0x7] sm:$0x1] %v1232
    %v1234 = vpack.c.bf16 %v1031, %v1031
    %v1237 = vunpack.c.l.s4 1966171168
    %v1238 = vunpack.c.0.s8 %v1237
    %v1239 = vlaneseq
    %v1240 = vshrl.u32 %v1239, 7
    %v1241 = vsub.s32 %v1238, %v1240
    %v1242 = vrot.slane %v1234, %v1241
    %v1244 = vunpack.c.l.s4 1966171168
    %v1245 = vunpack.c.0.s8 %v1244
    %v1246 = vlaneseq
    %v1247 = vshrl.u32 %v1246, 7
    %v1248 = vsub.s32 %v1245, %v1247
    %v1249 = vrot.slane %v1242, %v1248
    %v1251 = vshll.u32 %v1249, 16
    %v1254 = vld [vmem:[#allocation2 + $0x8] sm:$0x1]
    %v1255 = vsel %vm1184, %v1251, %v1254
    %1256 = vst [vmem:[#allocation2 + $0x8] sm:$0x1] %v1255
    %v1257 = vld [vmem:[#allocation2 + $0x9] sm:$0x1]
    %v1258 = vsel %vm1184, %v1234, %v1257
    %1259 = vst [vmem:[#allocation2 + $0x9] sm:$0x1] %v1258
    %v1260 = vcombine.high %v1242, %v1242
    %v1262 = vunpack.c.l.s4 1966171168
    %v1263 = vunpack.c.0.s8 %v1262
    %v1264 = vlaneseq
    %v1265 = vshrl.u32 %v1264, 7
    %v1266 = vsub.s32 %v1263, %v1265
    %v1267 = vrot.slane %v1260, %v1266
    %v1269 = vshll.u32 %v1267, 16
    %v1272 = vld [vmem:[#allocation2 + $0xa] sm:$0x1]
    %v1273 = vsel %vm1184, %v1269, %v1272
    %1274 = vst [vmem:[#allocation2 + $0xa] sm:$0x1] %v1273
    %v1276 = vld [vmem:[#allocation2 + $0xb] sm:$0x1]
    %v1277 = vsel %vm1184, %v1267, %v1276
    %1278 = vst [vmem:[#allocation2 + $0xb] sm:$0x1] %v1277
    %v1279 = vld [vmem:[#allocation2] sm:$0xff]
    %v1280 = vld [vmem:[#allocation2 + $0x8] sm:$0xf]
    %v1281 = vld [vmem:[%s3] sm:$0xff]
    %v1282 = vld [vmem:[%s3 + $0x8] sm:$0xff]
    %v1283 = vld [vmem:[%s3 + $0x10] sm:$0xff]
    %v1284 = vld [vmem:[%s3 + $0x18] sm:$0xff]
    %v1285 = vld [vmem:[%s3 + $0x20] sm:$0xff]
    %v1286 = vld [vmem:[%s3 + $0x28] sm:$0xff]
    %v1287 = vld [vmem:[%s3 + $0x30] sm:$0xff]
    %v1288 = vld [vmem:[%s3 + $0x38] sm:$0xff]
    %v1289 = vld [vmem:[%s3 + $0x40] sm:$0xff]
    %v1290 = vld [vmem:[%s3 + $0x48] sm:$0xff]
    %v1291 = vld [vmem:[%s3 + $0x50] sm:$0xff]
    %v1292 = vld [vmem:[%s3 + $0x58] sm:$0xff]
    %v1293 = vld [vmem:[%s3 + $0x60] sm:$0xff]
    %v1294 = vld [vmem:[%s3 + $0x68] sm:$0xff]
    %v1295 = vld [vmem:[%s3 + $0x70] sm:$0xff]
    %v1296 = vld [vmem:[%s3 + $0x78] sm:$0xff]
    %v1297 = vld [vmem:[%s3 + $0x80] sm:$0xff]
    %v1298 = vld [vmem:[%s3 + $0x88] sm:$0xff]
    %v1299 = vld [vmem:[%s3 + $0x90] sm:$0xff]
    %v1300 = vld [vmem:[%s3 + $0x98] sm:$0xff]
    %v1301 = vld [vmem:[%s3 + $0xa0] sm:$0xff]
    %v1302 = vld [vmem:[%s3 + $0xa8] sm:$0xff]
    %v1303 = vld [vmem:[%s3 + $0xb0] sm:$0xff]
    %v1304 = vld [vmem:[%s3 + $0xb8] sm:$0xff]
    %v1305 = vld [vmem:[%s3 + $0xc0] sm:$0xff]
    %v1306 = vld [vmem:[%s3 + $0xc8] sm:$0xff]
    %v1307 = vld [vmem:[%s3 + $0xd0] sm:$0xff]
    %v1308 = vld [vmem:[%s3 + $0xd8] sm:$0xff]
    %v1309 = vld [vmem:[%s3 + $0xe0] sm:$0xff]
    %v1310 = vld [vmem:[%s3 + $0xe8] sm:$0xff]
    %v1311 = vld [vmem:[%s3 + $0xf0] sm:$0xff]
    %v1312 = vld [vmem:[%s3 + $0xf8] sm:$0xff]
    %v1313 = vld [vmem:[%s3 + $0x100] sm:$0xff]
    %v1314 = vld [vmem:[%s3 + $0x108] sm:$0xff]
    %v1315 = vld [vmem:[%s3 + $0x110] sm:$0xff]
    %v1316 = vld [vmem:[%s3 + $0x118] sm:$0xff]
    %v1317 = vld [vmem:[%s3 + $0x120] sm:$0xff]
    %v1318 = vld [vmem:[%s3 + $0x128] sm:$0xff]
    %v1319 = vld [vmem:[%s3 + $0x130] sm:$0xff]
    %v1320 = vld [vmem:[%s3 + $0x138] sm:$0xff]
    %v1321 = vld [vmem:[%s3 + $0x140] sm:$0xff]
    %v1322 = vld [vmem:[%s3 + $0x148] sm:$0xff]
    %v1323 = vld [vmem:[%s3 + $0x150] sm:$0xff]
    %v1324 = vld [vmem:[%s3 + $0x158] sm:$0xff]
    %v1325 = vld [vmem:[%s3 + $0x160] sm:$0xff]
    %v1326 = vld [vmem:[%s3 + $0x168] sm:$0xff]
    %v1327 = vld [vmem:[%s3 + $0x170] sm:$0xff]
    %v1328 = vld [vmem:[%s3 + $0x178] sm:$0xff]
    %v1329 = vld [vmem:[%s3 + $0x180] sm:$0xff]
    %v1330 = vld [vmem:[%s3 + $0x188] sm:$0xff]
    %v1331 = vld [vmem:[%s3 + $0x190] sm:$0xff]
    %v1332 = vld [vmem:[%s3 + $0x198] sm:$0xff]
    %v1333 = vld [vmem:[%s3 + $0x1a0] sm:$0xff]
    %v1334 = vld [vmem:[%s3 + $0x1a8] sm:$0xff]
    %v1335 = vld [vmem:[%s3 + $0x1b0] sm:$0xff]
    %v1336 = vld [vmem:[%s3 + $0x1b8] sm:$0xff]
    %v1337 = vld [vmem:[%s3 + $0x1c0] sm:$0xff]
    %v1338 = vld [vmem:[%s3 + $0x1c8] sm:$0xff]
    %v1339 = vld [vmem:[%s3 + $0x1d0] sm:$0xff]
    %v1340 = vld [vmem:[%s3 + $0x1d8] sm:$0xff]
    %v1341 = vld [vmem:[%s3 + $0x1e0] sm:$0xff]
    %v1342 = vld [vmem:[%s3 + $0x1e8] sm:$0xff]
    %v1343 = vld [vmem:[%s3 + $0x1f0] sm:$0xff]
    %v1344 = vld [vmem:[%s3 + $0x1f8] sm:$0xff]
    %v1345 = vld [vmem:[%s3 + $0x200] sm:$0xff]
    %v1346 = vld [vmem:[%s3 + $0x208] sm:$0xff]
    %v1347 = vld [vmem:[%s3 + $0x210] sm:$0xff]
    %v1348 = vld [vmem:[%s3 + $0x218] sm:$0xff]
    %v1349 = vld [vmem:[%s3 + $0x220] sm:$0xff]
    %v1350 = vld [vmem:[%s3 + $0x228] sm:$0xff]
    %v1351 = vld [vmem:[%s3 + $0x230] sm:$0xff]
    %v1352 = vld [vmem:[%s3 + $0x238] sm:$0xff]
    %v1353 = vld [vmem:[%s3 + $0x240] sm:$0xff]
    %v1354 = vld [vmem:[%s3 + $0x248] sm:$0xff]
    %v1355 = vld [vmem:[%s3 + $0x250] sm:$0xff]
    %v1356 = vld [vmem:[%s3 + $0x258] sm:$0xff]
    %v1357 = vld [vmem:[%s3 + $0x260] sm:$0xff]
    %v1358 = vld [vmem:[%s3 + $0x268] sm:$0xff]
    %v1359 = vld [vmem:[%s3 + $0x270] sm:$0xff]
    %v1360 = vld [vmem:[%s3 + $0x278] sm:$0xff]
    %v1361 = vld [vmem:[%s3 + $0x280] sm:$0xff]
    %v1362 = vld [vmem:[%s3 + $0x288] sm:$0xff]
    %v1363 = vld [vmem:[%s3 + $0x290] sm:$0xff]
    %v1364 = vld [vmem:[%s3 + $0x298] sm:$0xff]
    %v1365 = vld [vmem:[%s3 + $0x2a0] sm:$0xff]
    %v1366 = vld [vmem:[%s3 + $0x2a8] sm:$0xff]
    %v1367 = vld [vmem:[%s3 + $0x2b0] sm:$0xff]
    %v1368 = vld [vmem:[%s3 + $0x2b8] sm:$0xff]
    %v1369 = vld [vmem:[%s3 + $0x2c0] sm:$0xff]
    %v1370 = vld [vmem:[%s3 + $0x2c8] sm:$0xff]
    %v1371 = vld [vmem:[%s3 + $0x2d0] sm:$0xff]
    %v1372 = vld [vmem:[%s3 + $0x2d8] sm:$0xff]
    %v1373 = vld [vmem:[%s3 + $0x2e0] sm:$0xff]
    %v1374 = vld [vmem:[%s3 + $0x2e8] sm:$0xff]
    %v1375 = vld [vmem:[%s3 + $0x2f0] sm:$0xff]
    %v1376 = vld [vmem:[%s3 + $0x2f8] sm:$0xff]
    %v1377 = vld [vmem:[%s3 + $0x300] sm:$0xff]
    %v1378 = vld [vmem:[%s3 + $0x308] sm:$0xff]
    %v1379 = vld [vmem:[%s3 + $0x310] sm:$0xff]
    %v1380 = vld [vmem:[%s3 + $0x318] sm:$0xff]
    %v1381 = vld [vmem:[%s3 + $0x320] sm:$0xff]
    %v1382 = vld [vmem:[%s3 + $0x328] sm:$0xff]
    %v1383 = vld [vmem:[%s3 + $0x330] sm:$0xff]
    %v1384 = vld [vmem:[%s3 + $0x338] sm:$0xff]
    %v1385 = vld [vmem:[%s3 + $0x340] sm:$0xff]
    %v1386 = vld [vmem:[%s3 + $0x348] sm:$0xff]
    %v1387 = vld [vmem:[%s3 + $0x350] sm:$0xff]
    %v1388 = vld [vmem:[%s3 + $0x358] sm:$0xff]
    %v1389 = vld [vmem:[%s3 + $0x360] sm:$0xff]
    %v1390 = vld [vmem:[%s3 + $0x368] sm:$0xff]
    %v1391 = vld [vmem:[%s3 + $0x370] sm:$0xff]
    %v1392 = vld [vmem:[%s3 + $0x378] sm:$0xff]
    %v1393 = vld [vmem:[%s3 + $0x380] sm:$0xff]
    %v1394 = vld [vmem:[%s3 + $0x388] sm:$0xff]
    %v1395 = vld [vmem:[%s3 + $0x390] sm:$0xff]
    %v1396 = vld [vmem:[%s3 + $0x398] sm:$0xff]
    %v1397 = vld [vmem:[%s3 + $0x3a0] sm:$0xff]
    %v1398 = vld [vmem:[%s3 + $0x3a8] sm:$0xff]
    %v1399 = vld [vmem:[%s3 + $0x3b0] sm:$0xff]
    %v1400 = vld [vmem:[%s3 + $0x3b8] sm:$0xff]
    %v1401 = vld [vmem:[%s3 + $0x3c0] sm:$0xff]
    %v1402 = vld [vmem:[%s3 + $0x3c8] sm:$0xff]
    %v1403 = vld [vmem:[%s3 + $0x3d0] sm:$0xff]
    %v1404 = vld [vmem:[%s3 + $0x3d8] sm:$0xff]
    %v1405 = vld [vmem:[%s3 + $0x3e0] sm:$0xff]
    %v1406 = vld [vmem:[%s3 + $0x3e8] sm:$0xff]
    %v1407 = vld [vmem:[%s3 + $0x3f0] sm:$0xff]
    %v1408 = vld [vmem:[%s3 + $0x3f8] sm:$0xff]
    %v1409 = vld [vmem:[%s3 + $0x400] sm:$0xff]
    %v1410 = vld [vmem:[%s3 + $0x408] sm:$0xff]
    %v1411 = vld [vmem:[%s3 + $0x410] sm:$0xff]
    %v1412 = vld [vmem:[%s3 + $0x418] sm:$0xff]
    %v1413 = vld [vmem:[%s3 + $0x420] sm:$0xff]
    %v1414 = vld [vmem:[%s3 + $0x428] sm:$0xff]
    %v1415 = vld [vmem:[%s3 + $0x430] sm:$0xff]
    %v1416 = vld [vmem:[%s3 + $0x438] sm:$0xff]
    %v1417 = vld [vmem:[%s3 + $0x440] sm:$0xff]
    %v1418 = vld [vmem:[%s3 + $0x448] sm:$0xff]
    %v1419 = vld [vmem:[%s3 + $0x450] sm:$0xff]
    %v1420 = vld [vmem:[%s3 + $0x458] sm:$0xff]
    %v1421 = vld [vmem:[%s3 + $0x460] sm:$0xff]
    %v1422 = vld [vmem:[%s3 + $0x468] sm:$0xff]
    %v1423 = vld [vmem:[%s3 + $0x470] sm:$0xff]
    %v1424 = vld [vmem:[%s3 + $0x478] sm:$0xff]
    %v1425 = vld [vmem:[%s3 + $0x480] sm:$0xff]
    %v1426 = vld [vmem:[%s3 + $0x488] sm:$0xff]
    %v1427 = vld [vmem:[%s3 + $0x490] sm:$0xff]
    %v1428 = vld [vmem:[%s3 + $0x498] sm:$0xff]
    %v1429 = vld [vmem:[%s3 + $0x4a0] sm:$0xff]
    %v1430 = vld [vmem:[%s3 + $0x4a8] sm:$0xff]
    %v1431 = vld [vmem:[%s3 + $0x4b0] sm:$0xff]
    %v1432 = vld [vmem:[%s3 + $0x4b8] sm:$0xff]
    %v1433 = vld [vmem:[%s3 + $0x4c0] sm:$0xff]
    %v1434 = vld [vmem:[%s3 + $0x4c8] sm:$0xff]
    %v1435 = vld [vmem:[%s3 + $0x4d0] sm:$0xff]
    %v1436 = vld [vmem:[%s3 + $0x4d8] sm:$0xff]
    %v1437 = vld [vmem:[%s3 + $0x4e0] sm:$0xff]
    %v1438 = vld [vmem:[%s3 + $0x4e8] sm:$0xff]
    %v1439 = vld [vmem:[%s3 + $0x4f0] sm:$0xff]
    %v1440 = vld [vmem:[%s3 + $0x4f8] sm:$0xff]
    %v1441 = vld [vmem:[%s3 + $0x500] sm:$0xff]
    %v1442 = vld [vmem:[%s3 + $0x508] sm:$0xff]
    %v1443 = vld [vmem:[%s3 + $0x510] sm:$0xff]
    %v1444 = vld [vmem:[%s3 + $0x518] sm:$0xff]
    %v1445 = vld [vmem:[%s3 + $0x520] sm:$0xff]
    %v1446 = vld [vmem:[%s3 + $0x528] sm:$0xff]
    %v1447 = vld [vmem:[%s3 + $0x530] sm:$0xff]
    %v1448 = vld [vmem:[%s3 + $0x538] sm:$0xff]
    %v1449 = vld [vmem:[%s3 + $0x540] sm:$0xff]
    %v1450 = vld [vmem:[%s3 + $0x548] sm:$0xff]
    %v1451 = vld [vmem:[%s3 + $0x550] sm:$0xff]
    %v1452 = vld [vmem:[%s3 + $0x558] sm:$0xff]
    %v1453 = vld [vmem:[%s3 + $0x560] sm:$0xff]
    %v1454 = vld [vmem:[%s3 + $0x568] sm:$0xff]
    %v1455 = vld [vmem:[%s3 + $0x570] sm:$0xff]
    %v1456 = vld [vmem:[%s3 + $0x578] sm:$0xff]
    %v1457 = vld [vmem:[%s3 + $0x580] sm:$0xff]
    %v1458 = vld [vmem:[%s3 + $0x588] sm:$0xff]
    %v1459 = vld [vmem:[%s3 + $0x590] sm:$0xff]
    %v1460 = vld [vmem:[%s3 + $0x598] sm:$0xff]
    %v1461 = vld [vmem:[%s3 + $0x5a0] sm:$0xff]
    %v1462 = vld [vmem:[%s3 + $0x5a8] sm:$0xff]
    %v1463 = vld [vmem:[%s3 + $0x5b0] sm:$0xff]
    %v1464 = vld [vmem:[%s3 + $0x5b8] sm:$0xff]
    %v1465 = vld [vmem:[%s3 + $0x5c0] sm:$0xff]
    %v1466 = vld [vmem:[%s3 + $0x5c8] sm:$0xff]
    %v1467 = vld [vmem:[%s3 + $0x5d0] sm:$0xff]
    %v1468 = vld [vmem:[%s3 + $0x5d8] sm:$0xff]
    %v1469 = vld [vmem:[%s3 + $0x5e0] sm:$0xff]
    %v1470 = vld [vmem:[%s3 + $0x5e8] sm:$0xff]
    %v1471 = vld [vmem:[%s3 + $0x5f0] sm:$0xff]
    %v1472 = vld [vmem:[%s3 + $0x5f8] sm:$0xff]
    %v1473 = vld [vmem:[%s3 + $0x600] sm:$0xff]
    %v1474 = vld [vmem:[%s3 + $0x608] sm:$0xff]
    %v1475 = vld [vmem:[%s3 + $0x610] sm:$0xff]
    %v1476 = vld [vmem:[%s3 + $0x618] sm:$0xff]
    %v1477 = vld [vmem:[%s3 + $0x620] sm:$0xff]
    %v1478 = vld [vmem:[%s3 + $0x628] sm:$0xff]
    %v1479 = vld [vmem:[%s3 + $0x630] sm:$0xff]
    %v1480 = vld [vmem:[%s3 + $0x638] sm:$0xff]
    %v1481 = vld [vmem:[%s3 + $0x640] sm:$0xff]
    %v1482 = vld [vmem:[%s3 + $0x648] sm:$0xff]
    %v1483 = vld [vmem:[%s3 + $0x650] sm:$0xff]
    %v1484 = vld [vmem:[%s3 + $0x658] sm:$0xff]
    %v1485 = vld [vmem:[%s3 + $0x660] sm:$0xff]
    %v1486 = vld [vmem:[%s3 + $0x668] sm:$0xff]
    %v1487 = vld [vmem:[%s3 + $0x670] sm:$0xff]
    %v1488 = vld [vmem:[%s3 + $0x678] sm:$0xff]
    %v1489 = vld [vmem:[%s3 + $0x680] sm:$0xff]
    %v1490 = vld [vmem:[%s3 + $0x688] sm:$0xff]
    %v1491 = vld [vmem:[%s3 + $0x690] sm:$0xff]
    %v1492 = vld [vmem:[%s3 + $0x698] sm:$0xff]
    %v1493 = vld [vmem:[%s3 + $0x6a0] sm:$0xff]
    %v1494 = vld [vmem:[%s3 + $0x6a8] sm:$0xff]
    %v1495 = vld [vmem:[%s3 + $0x6b0] sm:$0xff]
    %v1496 = vld [vmem:[%s3 + $0x6b8] sm:$0xff]
    %v1497 = vld [vmem:[%s3 + $0x6c0] sm:$0xff]
    %v1498 = vld [vmem:[%s3 + $0x6c8] sm:$0xff]
    %v1499 = vld [vmem:[%s3 + $0x6d0] sm:$0xff]
    %v1500 = vld [vmem:[%s3 + $0x6d8] sm:$0xff]
    %v1501 = vld [vmem:[%s3 + $0x6e0] sm:$0xff]
    %v1502 = vld [vmem:[%s3 + $0x6e8] sm:$0xff]
    %v1503 = vld [vmem:[%s3 + $0x6f0] sm:$0xff]
    %v1504 = vld [vmem:[%s3 + $0x6f8] sm:$0xff]
    %v1505 = vld [vmem:[%s3 + $0x700] sm:$0xff]
    %v1506 = vld [vmem:[%s3 + $0x708] sm:$0xff]
    %v1507 = vld [vmem:[%s3 + $0x710] sm:$0xff]
    %v1508 = vld [vmem:[%s3 + $0x718] sm:$0xff]
    %v1509 = vld [vmem:[%s3 + $0x720] sm:$0xff]
    %v1510 = vld [vmem:[%s3 + $0x728] sm:$0xff]
    %v1511 = vld [vmem:[%s3 + $0x730] sm:$0xff]
    %v1512 = vld [vmem:[%s3 + $0x738] sm:$0xff]
    %v1513 = vld [vmem:[%s3 + $0x740] sm:$0xff]
    %v1514 = vld [vmem:[%s3 + $0x748] sm:$0xff]
    %v1515 = vld [vmem:[%s3 + $0x750] sm:$0xff]
    %v1516 = vld [vmem:[%s3 + $0x758] sm:$0xff]
    %v1517 = vld [vmem:[%s3 + $0x760] sm:$0xff]
    %v1518 = vld [vmem:[%s3 + $0x768] sm:$0xff]
    %v1519 = vld [vmem:[%s3 + $0x770] sm:$0xff]
    %v1520 = vld [vmem:[%s3 + $0x778] sm:$0xff]
    %v1521 = vld [vmem:[%s3 + $0x780] sm:$0xff]
    %v1522 = vld [vmem:[%s3 + $0x788] sm:$0xff]
    %v1523 = vld [vmem:[%s3 + $0x790] sm:$0xff]
    %v1524 = vld [vmem:[%s3 + $0x798] sm:$0xff]
    %v1525 = vld [vmem:[%s3 + $0x7a0] sm:$0xff]
    %v1526 = vld [vmem:[%s3 + $0x7a8] sm:$0xff]
    %v1527 = vld [vmem:[%s3 + $0x7b0] sm:$0xff]
    %v1528 = vld [vmem:[%s3 + $0x7b8] sm:$0xff]
    %v1529 = vld [vmem:[%s3 + $0x7c0] sm:$0xff]
    %v1530 = vld [vmem:[%s3 + $0x7c8] sm:$0xff]
    %v1531 = vld [vmem:[%s3 + $0x7d0] sm:$0xff]
    %v1532 = vld [vmem:[%s3 + $0x7d8] sm:$0xff]
    %v1533 = vld [vmem:[%s3 + $0x7e0] sm:$0xff]
    %v1534 = vld [vmem:[%s3 + $0x7e8] sm:$0xff]
    %v1535 = vld [vmem:[%s3 + $0x7f0] sm:$0xff]
    %v1536 = vld [vmem:[%s3 + $0x7f8] sm:$0xff]
    %v1537 = vld [vmem:[%s3 + $0x800] sm:$0xff]
    %v1538 = vld [vmem:[%s3 + $0x808] sm:$0xff]
    %v1539 = vld [vmem:[%s3 + $0x810] sm:$0xff]
    %v1540 = vld [vmem:[%s3 + $0x818] sm:$0xff]
    %v1541 = vld [vmem:[%s3 + $0x820] sm:$0xff]
    %v1542 = vld [vmem:[%s3 + $0x828] sm:$0xff]
    %v1543 = vld [vmem:[%s3 + $0x830] sm:$0xff]
    %v1544 = vld [vmem:[%s3 + $0x838] sm:$0xff]
    %v1545 = vld [vmem:[%s3 + $0x840] sm:$0xff]
    %v1546 = vld [vmem:[%s3 + $0x848] sm:$0xff]
    %v1547 = vld [vmem:[%s3 + $0x850] sm:$0xff]
    %v1548 = vld [vmem:[%s3 + $0x858] sm:$0xff]
    %v1549 = vld [vmem:[%s3 + $0x860] sm:$0xff]
    %v1550 = vld [vmem:[%s3 + $0x868] sm:$0xff]
    %v1551 = vld [vmem:[%s3 + $0x870] sm:$0xff]
    %v1552 = vld [vmem:[%s3 + $0x878] sm:$0xff]
    %v1553 = vld [vmem:[%s3 + $0x880] sm:$0xff]
    %v1554 = vld [vmem:[%s3 + $0x888] sm:$0xff]
    %v1555 = vld [vmem:[%s3 + $0x890] sm:$0xff]
    %v1556 = vld [vmem:[%s3 + $0x898] sm:$0xff]
    %v1557 = vld [vmem:[%s3 + $0x8a0] sm:$0xff]
    %v1558 = vld [vmem:[%s3 + $0x8a8] sm:$0xff]
    %v1559 = vld [vmem:[%s3 + $0x8b0] sm:$0xff]
    %v1560 = vld [vmem:[%s3 + $0x8b8] sm:$0xff]
    %v1561 = vld [vmem:[%s3 + $0x8c0] sm:$0xff]
    %v1562 = vld [vmem:[%s3 + $0x8c8] sm:$0xff]
    %v1563 = vld [vmem:[%s3 + $0x8d0] sm:$0xff]
    %v1564 = vld [vmem:[%s3 + $0x8d8] sm:$0xff]
    %v1565 = vld [vmem:[%s3 + $0x8e0] sm:$0xff]
    %v1566 = vld [vmem:[%s3 + $0x8e8] sm:$0xff]
    %v1567 = vld [vmem:[%s3 + $0x8f0] sm:$0xff]
    %v1568 = vld [vmem:[%s3 + $0x8f8] sm:$0xff]
    %v1569 = vld [vmem:[%s3 + $0x900] sm:$0xff]
    %v1570 = vld [vmem:[%s3 + $0x908] sm:$0xff]
    %v1571 = vld [vmem:[%s3 + $0x910] sm:$0xff]
    %v1572 = vld [vmem:[%s3 + $0x918] sm:$0xff]
    %v1573 = vld [vmem:[%s3 + $0x920] sm:$0xff]
    %v1574 = vld [vmem:[%s3 + $0x928] sm:$0xff]
    %v1575 = vld [vmem:[%s3 + $0x930] sm:$0xff]
    %v1576 = vld [vmem:[%s3 + $0x938] sm:$0xff]
    %v1577 = vld [vmem:[%s3 + $0x940] sm:$0xff]
    %v1578 = vld [vmem:[%s3 + $0x948] sm:$0xff]
    %v1579 = vld [vmem:[%s3 + $0x950] sm:$0xff]
    %v1580 = vld [vmem:[%s3 + $0x958] sm:$0xff]
    %v1581 = vld [vmem:[%s3 + $0x960] sm:$0xff]
    %v1582 = vld [vmem:[%s3 + $0x968] sm:$0xff]
    %v1583 = vld [vmem:[%s3 + $0x970] sm:$0xff]
    %v1584 = vld [vmem:[%s3 + $0x978] sm:$0xff]
    %v1585 = vld [vmem:[%s3 + $0x980] sm:$0xff]
    %v1586 = vld [vmem:[%s3 + $0x988] sm:$0xff]
    %v1587 = vld [vmem:[%s3 + $0x990] sm:$0xff]
    %v1588 = vld [vmem:[%s3 + $0x998] sm:$0xff]
    %v1589 = vld [vmem:[%s3 + $0x9a0] sm:$0xff]
    %v1590 = vld [vmem:[%s3 + $0x9a8] sm:$0xff]
    %v1591 = vld [vmem:[%s3 + $0x9b0] sm:$0xff]
    %v1592 = vld [vmem:[%s3 + $0x9b8] sm:$0xff]
    %v1593 = vld [vmem:[%s3 + $0x9c0] sm:$0xff]
    %v1594 = vld [vmem:[%s3 + $0x9c8] sm:$0xff]
    %v1595 = vld [vmem:[%s3 + $0x9d0] sm:$0xff]
    %v1596 = vld [vmem:[%s3 + $0x9d8] sm:$0xff]
    %v1597 = vld [vmem:[%s3 + $0x9e0] sm:$0xff]
    %v1598 = vld [vmem:[%s3 + $0x9e8] sm:$0xff]
    %v1599 = vld [vmem:[%s3 + $0x9f0] sm:$0xff]
    %v1600 = vld [vmem:[%s3 + $0x9f8] sm:$0xff]
    %v1601 = vld [vmem:[%s3 + $0xa00] sm:$0xff]
    %v1602 = vld [vmem:[%s3 + $0xa08] sm:$0xff]
    %v1603 = vld [vmem:[%s3 + $0xa10] sm:$0xff]
    %v1604 = vld [vmem:[%s3 + $0xa18] sm:$0xff]
    %v1605 = vld [vmem:[%s3 + $0xa20] sm:$0xff]
    %v1606 = vld [vmem:[%s3 + $0xa28] sm:$0xff]
    %v1607 = vld [vmem:[%s3 + $0xa30] sm:$0xff]
    %v1608 = vld [vmem:[%s3 + $0xa38] sm:$0xff]
    %v1609 = vld [vmem:[%s3 + $0xa40] sm:$0xff]
    %v1610 = vld [vmem:[%s3 + $0xa48] sm:$0xff]
    %v1611 = vld [vmem:[%s3 + $0xa50] sm:$0xff]
    %v1612 = vld [vmem:[%s3 + $0xa58] sm:$0xff]
    %v1613 = vld [vmem:[%s3 + $0xa60] sm:$0xff]
    %v1614 = vld [vmem:[%s3 + $0xa68] sm:$0xff]
    %v1615 = vld [vmem:[%s3 + $0xa70] sm:$0xff]
    %v1616 = vld [vmem:[%s3 + $0xa78] sm:$0xff]
    %v1617 = vld [vmem:[%s3 + $0xa80] sm:$0xff]
    %v1618 = vld [vmem:[%s3 + $0xa88] sm:$0xff]
    %v1619 = vld [vmem:[%s3 + $0xa90] sm:$0xff]
    %v1620 = vld [vmem:[%s3 + $0xa98] sm:$0xff]
    %v1621 = vld [vmem:[%s3 + $0xaa0] sm:$0xff]
    %v1622 = vld [vmem:[%s3 + $0xaa8] sm:$0xff]
    %v1623 = vld [vmem:[%s3 + $0xab0] sm:$0xff]
    %v1624 = vld [vmem:[%s3 + $0xab8] sm:$0xff]
    %v1625 = vld [vmem:[%s3 + $0xac0] sm:$0xff]
    %v1626 = vld [vmem:[%s3 + $0xac8] sm:$0xff]
    %v1627 = vld [vmem:[%s3 + $0xad0] sm:$0xff]
    %v1628 = vld [vmem:[%s3 + $0xad8] sm:$0xff]
    %v1629 = vld [vmem:[%s3 + $0xae0] sm:$0xff]
    %v1630 = vld [vmem:[%s3 + $0xae8] sm:$0xff]
    %v1631 = vld [vmem:[%s3 + $0xaf0] sm:$0xff]
    %v1632 = vld [vmem:[%s3 + $0xaf8] sm:$0xff]
    %v1633 = vld [vmem:[%s3 + $0xb00] sm:$0xff]
    %v1634 = vld [vmem:[%s3 + $0xb08] sm:$0xff]
    %v1635 = vld [vmem:[%s3 + $0xb10] sm:$0xff]
    %v1636 = vld [vmem:[%s3 + $0xb18] sm:$0xff]
    %v1637 = vld [vmem:[%s3 + $0xb20] sm:$0xff]
    %v1638 = vld [vmem:[%s3 + $0xb28] sm:$0xff]
    %v1639 = vld [vmem:[%s3 + $0xb30] sm:$0xff]
    %v1640 = vld [vmem:[%s3 + $0xb38] sm:$0xff]
    %v1641 = vld [vmem:[%s3 + $0xb40] sm:$0xff]
    %v1642 = vld [vmem:[%s3 + $0xb48] sm:$0xff]
    %v1643 = vld [vmem:[%s3 + $0xb50] sm:$0xff]
    %v1644 = vld [vmem:[%s3 + $0xb58] sm:$0xff]
    %v1645 = vld [vmem:[%s3 + $0xb60] sm:$0xff]
    %v1646 = vld [vmem:[%s3 + $0xb68] sm:$0xff]
    %v1647 = vld [vmem:[%s3 + $0xb70] sm:$0xff]
    %v1648 = vld [vmem:[%s3 + $0xb78] sm:$0xff]
    %v1649 = vld [vmem:[%s3 + $0xb80] sm:$0xff]
    %v1650 = vld [vmem:[%s3 + $0xb88] sm:$0xff]
    %v1651 = vld [vmem:[%s3 + $0xb90] sm:$0xff]
    %v1652 = vld [vmem:[%s3 + $0xb98] sm:$0xff]
    %v1653 = vld [vmem:[%s3 + $0xba0] sm:$0xff]
    %v1654 = vld [vmem:[%s3 + $0xba8] sm:$0xff]
    %v1655 = vld [vmem:[%s3 + $0xbb0] sm:$0xff]
    %v1656 = vld [vmem:[%s3 + $0xbb8] sm:$0xff]
    %v1657 = vld [vmem:[%s3 + $0xbc0] sm:$0xff]
    %v1658 = vld [vmem:[%s3 + $0xbc8] sm:$0xff]
    %v1659 = vld [vmem:[%s3 + $0xbd0] sm:$0xff]
    %v1660 = vld [vmem:[%s3 + $0xbd8] sm:$0xff]
    %v1661 = vld [vmem:[%s3 + $0xbe0] sm:$0xff]
    %v1662 = vld [vmem:[%s3 + $0xbe8] sm:$0xff]
    %v1663 = vld [vmem:[%s3 + $0xbf0] sm:$0xff]
    %v1664 = vld [vmem:[%s3 + $0xbf8] sm:$0xff]
    %v1667 = vcombine.high %v1279, %v1279
    %v1669 = vunpack.c.l.s4 1966171168
    %v1670 = vunpack.c.0.s8 %v1669
    %v1671 = vlaneseq
    %v1672 = vshrl.u32 %v1671, 7
    %v1673 = vsub.s32 %v1670, %v1672
    %v1674 = vrot.slane %v1279, %v1673
    %v1676 = vunpack.c.l.s4 1966171168
    %v1677 = vunpack.c.0.s8 %v1676
    %v1678 = vlaneseq
    %v1679 = vshrl.u32 %v1678, 7
    %v1680 = vsub.s32 %v1677, %v1679
    %v1681 = vrot.slane %v1667, %v1680
    %v1682 = vcombine.high %v1674, %v1674
    %v1683 = vcombine.high %v1681, %v1681
    %v1685 = vunpack.c.l.s4 1966171168
    %v1686 = vunpack.c.0.s8 %v1685
    %v1687 = vlaneseq
    %v1688 = vshrl.u32 %v1687, 7
    %v1689 = vsub.s32 %v1686, %v1688
    %v1690 = vrot.slane %v1674, %v1689
    %v1692 = vunpack.c.l.s4 1966171168
    %v1693 = vunpack.c.0.s8 %v1692
    %v1694 = vlaneseq
    %v1695 = vshrl.u32 %v1694, 7
    %v1696 = vsub.s32 %v1693, %v1695
    %v1697 = vrot.slane %v1681, %v1696
    %v1699 = vunpack.c.l.s4 1966171168
    %v1700 = vunpack.c.0.s8 %v1699
    %v1701 = vlaneseq
    %v1702 = vshrl.u32 %v1701, 7
    %v1703 = vsub.s32 %v1700, %v1702
    %v1704 = vrot.slane %v1682, %v1703
    %v1706 = vunpack.c.l.s4 1966171168
    %v1707 = vunpack.c.0.s8 %v1706
    %v1708 = vlaneseq
    %v1709 = vshrl.u32 %v1708, 7
    %v1710 = vsub.s32 %v1707, %v1709
    %v1711 = vrot.slane %v1683, %v1710
    %v1712 = vcombine.high %v1690, %v1690
    %v1713 = vcombine.high %v1697, %v1697
    %v1714 = vcombine.high %v1704, %v1704
    %v1715 = vcombine.high %v1711, %v1711
    %v1717 = vunpack.c.l.s4 1966171168
    %v1718 = vunpack.c.0.s8 %v1717
    %v1719 = vlaneseq
    %v1720 = vshrl.u32 %v1719, 7
    %v1721 = vsub.s32 %v1718, %v1720
    %v1722 = vrot.slane %v1280, %v1721
    %v1723 = vcombine.high %v1722, %v1722
    %v1725 = vunpack.c.l.s4 1966171168
    %v1726 = vunpack.c.0.s8 %v1725
    %v1727 = vlaneseq
    %v1728 = vshrl.u32 %v1727, 7
    %v1729 = vsub.s32 %v1726, %v1728
    %v1730 = vrot.slane %v1722, %v1729
    %v1732 = vunpack.c.l.s4 1966171168
    %v1733 = vunpack.c.0.s8 %v1732
    %v1734 = vlaneseq
    %v1735 = vshrl.u32 %v1734, 7
    %v1736 = vsub.s32 %v1733, %v1735
    %v1737 = vrot.slane %v1723, %v1736
    %v1738 = vcombine.high %v1730, %v1730
    %v1739 = vcombine.high %v1737, %v1737
    %v2136 = vunpack.c.l.b16 %v1281
    %v2137 = vunpack.c.h.b16 %v1281
    %v2138 = vunpack.c.l.b16 %v1282
    %v2139 = vunpack.c.h.b16 %v1282
    %v2140 = vunpack.c.l.b16 %v1283
    %v2141 = vunpack.c.h.b16 %v1283
    %v2142 = vunpack.c.l.b16 %v1284
    %v2143 = vunpack.c.h.b16 %v1284
    %v2144 = vunpack.c.l.b16 %v1285
    %v2145 = vunpack.c.h.b16 %v1285
    %v2146 = vunpack.c.l.b16 %v1286
    %v2147 = vunpack.c.h.b16 %v1286
    %v2148 = vunpack.c.l.b16 %v1287
    %v2149 = vunpack.c.h.b16 %v1287
    %v2150 = vunpack.c.l.b16 %v1288
    %v2151 = vunpack.c.h.b16 %v1288
    %v2152 = vunpack.c.l.b16 %v1289
    %v2153 = vunpack.c.h.b16 %v1289
    %v2154 = vunpack.c.l.b16 %v1290
    %v2155 = vunpack.c.h.b16 %v1290
    %v2156 = vunpack.c.l.b16 %v1291
    %v2157 = vunpack.c.h.b16 %v1291
    %v2158 = vunpack.c.l.b16 %v1292
    %v2159 = vunpack.c.h.b16 %v1292
    %v2160 = vunpack.c.l.b16 %v1293
    %v2161 = vunpack.c.h.b16 %v1293
    %v2162 = vunpack.c.l.b16 %v1294
    %v2163 = vunpack.c.h.b16 %v1294
    %v2164 = vunpack.c.l.b16 %v1295
    %v2165 = vunpack.c.h.b16 %v1295
    %v2166 = vunpack.c.l.b16 %v1296
    %v2167 = vunpack.c.h.b16 %v1296
    %v2168 = vunpack.c.l.b16 %v1297
    %v2169 = vunpack.c.h.b16 %v1297
    %v2170 = vunpack.c.l.b16 %v1298
    %v2171 = vunpack.c.h.b16 %v1298
    %v2172 = vunpack.c.l.b16 %v1299
    %v2173 = vunpack.c.h.b16 %v1299
    %v2174 = vunpack.c.l.b16 %v1300
    %v2175 = vunpack.c.h.b16 %v1300
    %v2176 = vunpack.c.l.b16 %v1301
    %v2177 = vunpack.c.h.b16 %v1301
    %v2178 = vunpack.c.l.b16 %v1302
    %v2179 = vunpack.c.h.b16 %v1302
    %v2180 = vunpack.c.l.b16 %v1303
    %v2181 = vunpack.c.h.b16 %v1303
    %v2182 = vunpack.c.l.b16 %v1304
    %v2183 = vunpack.c.h.b16 %v1304
    %v2184 = vunpack.c.l.b16 %v1305
    %v2185 = vunpack.c.h.b16 %v1305
    %v2186 = vunpack.c.l.b16 %v1306
    %v2187 = vunpack.c.h.b16 %v1306
    %v2188 = vunpack.c.l.b16 %v1307
    %v2189 = vunpack.c.h.b16 %v1307
    %v2190 = vunpack.c.l.b16 %v1308
    %v2191 = vunpack.c.h.b16 %v1308
    %v2192 = vunpack.c.l.b16 %v1309
    %v2193 = vunpack.c.h.b16 %v1309
    %v2194 = vunpack.c.l.b16 %v1310
    %v2195 = vunpack.c.h.b16 %v1310
    %v2196 = vunpack.c.l.b16 %v1311
    %v2197 = vunpack.c.h.b16 %v1311
    %v2198 = vunpack.c.l.b16 %v1312
    %v2199 = vunpack.c.h.b16 %v1312
    %v2200 = vunpack.c.l.b16 %v1313
    %v2201 = vunpack.c.h.b16 %v1313
    %v2202 = vunpack.c.l.b16 %v1314
    %v2203 = vunpack.c.h.b16 %v1314
    %v2204 = vunpack.c.l.b16 %v1315
    %v2205 = vunpack.c.h.b16 %v1315
    %v2206 = vunpack.c.l.b16 %v1316
    %v2207 = vunpack.c.h.b16 %v1316
    %v2208 = vunpack.c.l.b16 %v1317
    %v2209 = vunpack.c.h.b16 %v1317
    %v2210 = vunpack.c.l.b16 %v1318
    %v2211 = vunpack.c.h.b16 %v1318
    %v2212 = vunpack.c.l.b16 %v1319
    %v2213 = vunpack.c.h.b16 %v1319
    %v2214 = vunpack.c.l.b16 %v1320
    %v2215 = vunpack.c.h.b16 %v1320
    %v2216 = vunpack.c.l.b16 %v1321
    %v2217 = vunpack.c.h.b16 %v1321
    %v2218 = vunpack.c.l.b16 %v1322
    %v2219 = vunpack.c.h.b16 %v1322
    %v2220 = vunpack.c.l.b16 %v1323
    %v2221 = vunpack.c.h.b16 %v1323
    %v2222 = vunpack.c.l.b16 %v1324
    %v2223 = vunpack.c.h.b16 %v1324
    %v2224 = vunpack.c.l.b16 %v1325
    %v2225 = vunpack.c.h.b16 %v1325
    %v2226 = vunpack.c.l.b16 %v1326
    %v2227 = vunpack.c.h.b16 %v1326
    %v2228 = vunpack.c.l.b16 %v1327
    %v2229 = vunpack.c.h.b16 %v1327
    %v2230 = vunpack.c.l.b16 %v1328
    %v2231 = vunpack.c.h.b16 %v1328
    %v2232 = vunpack.c.l.b16 %v1329
    %v2233 = vunpack.c.h.b16 %v1329
    %v2234 = vunpack.c.l.b16 %v1330
    %v2235 = vunpack.c.h.b16 %v1330
    %v2236 = vunpack.c.l.b16 %v1331
    %v2237 = vunpack.c.h.b16 %v1331
    %v2238 = vunpack.c.l.b16 %v1332
    %v2239 = vunpack.c.h.b16 %v1332
    %v2240 = vunpack.c.l.b16 %v1333
    %v2241 = vunpack.c.h.b16 %v1333
    %v2242 = vunpack.c.l.b16 %v1334
    %v2243 = vunpack.c.h.b16 %v1334
    %v2244 = vunpack.c.l.b16 %v1335
    %v2245 = vunpack.c.h.b16 %v1335
    %v2246 = vunpack.c.l.b16 %v1336
    %v2247 = vunpack.c.h.b16 %v1336
    %v2248 = vunpack.c.l.b16 %v1337
    %v2249 = vunpack.c.h.b16 %v1337
    %v2250 = vunpack.c.l.b16 %v1338
    %v2251 = vunpack.c.h.b16 %v1338
    %v2252 = vunpack.c.l.b16 %v1339
    %v2253 = vunpack.c.h.b16 %v1339
    %v2254 = vunpack.c.l.b16 %v1340
    %v2255 = vunpack.c.h.b16 %v1340
    %v2256 = vunpack.c.l.b16 %v1341
    %v2257 = vunpack.c.h.b16 %v1341
    %v2258 = vunpack.c.l.b16 %v1342
    %v2259 = vunpack.c.h.b16 %v1342
    %v2260 = vunpack.c.l.b16 %v1343
    %v2261 = vunpack.c.h.b16 %v1343
    %v2262 = vunpack.c.l.b16 %v1344
    %v2263 = vunpack.c.h.b16 %v1344
    %v2264 = vunpack.c.l.b16 %v1345
    %v2265 = vunpack.c.h.b16 %v1345
    %v2266 = vunpack.c.l.b16 %v1346
    %v2267 = vunpack.c.h.b16 %v1346
    %v2268 = vunpack.c.l.b16 %v1347
    %v2269 = vunpack.c.h.b16 %v1347
    %v2270 = vunpack.c.l.b16 %v1348
    %v2271 = vunpack.c.h.b16 %v1348
    %v2272 = vunpack.c.l.b16 %v1349
    %v2273 = vunpack.c.h.b16 %v1349
    %v2274 = vunpack.c.l.b16 %v1350
    %v2275 = vunpack.c.h.b16 %v1350
    %v2276 = vunpack.c.l.b16 %v1351
    %v2277 = vunpack.c.h.b16 %v1351
    %v2278 = vunpack.c.l.b16 %v1352
    %v2279 = vunpack.c.h.b16 %v1352
    %v2280 = vunpack.c.l.b16 %v1353
    %v2281 = vunpack.c.h.b16 %v1353
    %v2282 = vunpack.c.l.b16 %v1354
    %v2283 = vunpack.c.h.b16 %v1354
    %v2284 = vunpack.c.l.b16 %v1355
    %v2285 = vunpack.c.h.b16 %v1355
    %v2286 = vunpack.c.l.b16 %v1356
    %v2287 = vunpack.c.h.b16 %v1356
    %v2288 = vunpack.c.l.b16 %v1357
    %v2289 = vunpack.c.h.b16 %v1357
    %v2290 = vunpack.c.l.b16 %v1358
    %v2291 = vunpack.c.h.b16 %v1358
    %v2292 = vunpack.c.l.b16 %v1359
    %v2293 = vunpack.c.h.b16 %v1359
    %v2294 = vunpack.c.l.b16 %v1360
    %v2295 = vunpack.c.h.b16 %v1360
    %v2296 = vunpack.c.l.b16 %v1361
    %v2297 = vunpack.c.h.b16 %v1361
    %v2298 = vunpack.c.l.b16 %v1362
    %v2299 = vunpack.c.h.b16 %v1362
    %v2300 = vunpack.c.l.b16 %v1363
    %v2301 = vunpack.c.h.b16 %v1363
    %v2302 = vunpack.c.l.b16 %v1364
    %v2303 = vunpack.c.h.b16 %v1364
    %v2304 = vunpack.c.l.b16 %v1365
    %v2305 = vunpack.c.h.b16 %v1365
    %v2306 = vunpack.c.l.b16 %v1366
    %v2307 = vunpack.c.h.b16 %v1366
    %v2308 = vunpack.c.l.b16 %v1367
    %v2309 = vunpack.c.h.b16 %v1367
    %v2310 = vunpack.c.l.b16 %v1368
    %v2311 = vunpack.c.h.b16 %v1368
    %v2312 = vunpack.c.l.b16 %v1369
    %v2313 = vunpack.c.h.b16 %v1369
    %v2314 = vunpack.c.l.b16 %v1370
    %v2315 = vunpack.c.h.b16 %v1370
    %v2316 = vunpack.c.l.b16 %v1371
    %v2317 = vunpack.c.h.b16 %v1371
    %v2318 = vunpack.c.l.b16 %v1372
    %v2319 = vunpack.c.h.b16 %v1372
    %v2320 = vunpack.c.l.b16 %v1373
    %v2321 = vunpack.c.h.b16 %v1373
    %v2322 = vunpack.c.l.b16 %v1374
    %v2323 = vunpack.c.h.b16 %v1374
    %v2324 = vunpack.c.l.b16 %v1375
    %v2325 = vunpack.c.h.b16 %v1375
    %v2326 = vunpack.c.l.b16 %v1376
    %v2327 = vunpack.c.h.b16 %v1376
    %v2328 = vunpack.c.l.b16 %v1377
    %v2329 = vunpack.c.h.b16 %v1377
    %v2330 = vunpack.c.l.b16 %v1378
    %v2331 = vunpack.c.h.b16 %v1378
    %v2332 = vunpack.c.l.b16 %v1379
    %v2333 = vunpack.c.h.b16 %v1379
    %v2334 = vunpack.c.l.b16 %v1380
    %v2335 = vunpack.c.h.b16 %v1380
    %v2336 = vunpack.c.l.b16 %v1381
    %v2337 = vunpack.c.h.b16 %v1381
    %v2338 = vunpack.c.l.b16 %v1382
    %v2339 = vunpack.c.h.b16 %v1382
    %v2340 = vunpack.c.l.b16 %v1383
    %v2341 = vunpack.c.h.b16 %v1383
    %v2342 = vunpack.c.l.b16 %v1384
    %v2343 = vunpack.c.h.b16 %v1384
    %v2344 = vunpack.c.l.b16 %v1385
    %v2345 = vunpack.c.h.b16 %v1385
    %v2346 = vunpack.c.l.b16 %v1386
    %v2347 = vunpack.c.h.b16 %v1386
    %v2348 = vunpack.c.l.b16 %v1387
    %v2349 = vunpack.c.h.b16 %v1387
    %v2350 = vunpack.c.l.b16 %v1388
    %v2351 = vunpack.c.h.b16 %v1388
    %v2352 = vunpack.c.l.b16 %v1389
    %v2353 = vunpack.c.h.b16 %v1389
    %v2354 = vunpack.c.l.b16 %v1390
    %v2355 = vunpack.c.h.b16 %v1390
    %v2356 = vunpack.c.l.b16 %v1391
    %v2357 = vunpack.c.h.b16 %v1391
    %v2358 = vunpack.c.l.b16 %v1392
    %v2359 = vunpack.c.h.b16 %v1392
    %v2360 = vunpack.c.l.b16 %v1393
    %v2361 = vunpack.c.h.b16 %v1393
    %v2362 = vunpack.c.l.b16 %v1394
    %v2363 = vunpack.c.h.b16 %v1394
    %v2364 = vunpack.c.l.b16 %v1395
    %v2365 = vunpack.c.h.b16 %v1395
    %v2366 = vunpack.c.l.b16 %v1396
    %v2367 = vunpack.c.h.b16 %v1396
    %v2368 = vunpack.c.l.b16 %v1397
    %v2369 = vunpack.c.h.b16 %v1397
    %v2370 = vunpack.c.l.b16 %v1398
    %v2371 = vunpack.c.h.b16 %v1398
    %v2372 = vunpack.c.l.b16 %v1399
    %v2373 = vunpack.c.h.b16 %v1399
    %v2374 = vunpack.c.l.b16 %v1400
    %v2375 = vunpack.c.h.b16 %v1400
    %v2376 = vunpack.c.l.b16 %v1401
    %v2377 = vunpack.c.h.b16 %v1401
    %v2378 = vunpack.c.l.b16 %v1402
    %v2379 = vunpack.c.h.b16 %v1402
    %v2380 = vunpack.c.l.b16 %v1403
    %v2381 = vunpack.c.h.b16 %v1403
    %v2382 = vunpack.c.l.b16 %v1404
    %v2383 = vunpack.c.h.b16 %v1404
    %v2384 = vunpack.c.l.b16 %v1405
    %v2385 = vunpack.c.h.b16 %v1405
    %v2386 = vunpack.c.l.b16 %v1406
    %v2387 = vunpack.c.h.b16 %v1406
    %v2388 = vunpack.c.l.b16 %v1407
    %v2389 = vunpack.c.h.b16 %v1407
    %v2390 = vunpack.c.l.b16 %v1408
    %v2391 = vunpack.c.h.b16 %v1408
    %v2392 = vunpack.c.l.b16 %v1409
    %v2393 = vunpack.c.h.b16 %v1409
    %v2394 = vunpack.c.l.b16 %v1410
    %v2395 = vunpack.c.h.b16 %v1410
    %v2396 = vunpack.c.l.b16 %v1411
    %v2397 = vunpack.c.h.b16 %v1411
    %v2398 = vunpack.c.l.b16 %v1412
    %v2399 = vunpack.c.h.b16 %v1412
    %v2400 = vunpack.c.l.b16 %v1413
    %v2401 = vunpack.c.h.b16 %v1413
    %v2402 = vunpack.c.l.b16 %v1414
    %v2403 = vunpack.c.h.b16 %v1414
    %v2404 = vunpack.c.l.b16 %v1415
    %v2405 = vunpack.c.h.b16 %v1415
    %v2406 = vunpack.c.l.b16 %v1416
    %v2407 = vunpack.c.h.b16 %v1416
    %v2408 = vunpack.c.l.b16 %v1417
    %v2409 = vunpack.c.h.b16 %v1417
    %v2410 = vunpack.c.l.b16 %v1418
    %v2411 = vunpack.c.h.b16 %v1418
    %v2412 = vunpack.c.l.b16 %v1419
    %v2413 = vunpack.c.h.b16 %v1419
    %v2414 = vunpack.c.l.b16 %v1420
    %v2415 = vunpack.c.h.b16 %v1420
    %v2416 = vunpack.c.l.b16 %v1421
    %v2417 = vunpack.c.h.b16 %v1421
    %v2418 = vunpack.c.l.b16 %v1422
    %v2419 = vunpack.c.h.b16 %v1422
    %v2420 = vunpack.c.l.b16 %v1423
    %v2421 = vunpack.c.h.b16 %v1423
    %v2422 = vunpack.c.l.b16 %v1424
    %v2423 = vunpack.c.h.b16 %v1424
    %v2424 = vunpack.c.l.b16 %v1425
    %v2425 = vunpack.c.h.b16 %v1425
    %v2426 = vunpack.c.l.b16 %v1426
    %v2427 = vunpack.c.h.b16 %v1426
    %v2428 = vunpack.c.l.b16 %v1427
    %v2429 = vunpack.c.h.b16 %v1427
    %v2430 = vunpack.c.l.b16 %v1428
    %v2431 = vunpack.c.h.b16 %v1428
    %v2432 = vunpack.c.l.b16 %v1429
    %v2433 = vunpack.c.h.b16 %v1429
    %v2434 = vunpack.c.l.b16 %v1430
    %v2435 = vunpack.c.h.b16 %v1430
    %v2436 = vunpack.c.l.b16 %v1431
    %v2437 = vunpack.c.h.b16 %v1431
    %v2438 = vunpack.c.l.b16 %v1432
    %v2439 = vunpack.c.h.b16 %v1432
    %v2440 = vunpack.c.l.b16 %v1433
    %v2441 = vunpack.c.h.b16 %v1433
    %v2442 = vunpack.c.l.b16 %v1434
    %v2443 = vunpack.c.h.b16 %v1434
    %v2444 = vunpack.c.l.b16 %v1435
    %v2445 = vunpack.c.h.b16 %v1435
    %v2446 = vunpack.c.l.b16 %v1436
    %v2447 = vunpack.c.h.b16 %v1436
    %v2448 = vunpack.c.l.b16 %v1437
    %v2449 = vunpack.c.h.b16 %v1437
    %v2450 = vunpack.c.l.b16 %v1438
    %v2451 = vunpack.c.h.b16 %v1438
    %v2452 = vunpack.c.l.b16 %v1439
    %v2453 = vunpack.c.h.b16 %v1439
    %v2454 = vunpack.c.l.b16 %v1440
    %v2455 = vunpack.c.h.b16 %v1440
    %v2456 = vunpack.c.l.b16 %v1441
    %v2457 = vunpack.c.h.b16 %v1441
    %v2458 = vunpack.c.l.b16 %v1442
    %v2459 = vunpack.c.h.b16 %v1442
    %v2460 = vunpack.c.l.b16 %v1443
    %v2461 = vunpack.c.h.b16 %v1443
    %v2462 = vunpack.c.l.b16 %v1444
    %v2463 = vunpack.c.h.b16 %v1444
    %v2464 = vunpack.c.l.b16 %v1445
    %v2465 = vunpack.c.h.b16 %v1445
    %v2466 = vunpack.c.l.b16 %v1446
    %v2467 = vunpack.c.h.b16 %v1446
    %v2468 = vunpack.c.l.b16 %v1447
    %v2469 = vunpack.c.h.b16 %v1447
    %v2470 = vunpack.c.l.b16 %v1448
    %v2471 = vunpack.c.h.b16 %v1448
    %v2472 = vunpack.c.l.b16 %v1449
    %v2473 = vunpack.c.h.b16 %v1449
    %v2474 = vunpack.c.l.b16 %v1450
    %v2475 = vunpack.c.h.b16 %v1450
    %v2476 = vunpack.c.l.b16 %v1451
    %v2477 = vunpack.c.h.b16 %v1451
    %v2478 = vunpack.c.l.b16 %v1452
    %v2479 = vunpack.c.h.b16 %v1452
    %v2480 = vunpack.c.l.b16 %v1453
    %v2481 = vunpack.c.h.b16 %v1453
    %v2482 = vunpack.c.l.b16 %v1454
    %v2483 = vunpack.c.h.b16 %v1454
    %v2484 = vunpack.c.l.b16 %v1455
    %v2485 = vunpack.c.h.b16 %v1455
    %v2486 = vunpack.c.l.b16 %v1456
    %v2487 = vunpack.c.h.b16 %v1456
    %v2488 = vunpack.c.l.b16 %v1457
    %v2489 = vunpack.c.h.b16 %v1457
    %v2490 = vunpack.c.l.b16 %v1458
    %v2491 = vunpack.c.h.b16 %v1458
    %v2492 = vunpack.c.l.b16 %v1459
    %v2493 = vunpack.c.h.b16 %v1459
    %v2494 = vunpack.c.l.b16 %v1460
    %v2495 = vunpack.c.h.b16 %v1460
    %v2496 = vunpack.c.l.b16 %v1461
    %v2497 = vunpack.c.h.b16 %v1461
    %v2498 = vunpack.c.l.b16 %v1462
    %v2499 = vunpack.c.h.b16 %v1462
    %v2500 = vunpack.c.l.b16 %v1463
    %v2501 = vunpack.c.h.b16 %v1463
    %v2502 = vunpack.c.l.b16 %v1464
    %v2503 = vunpack.c.h.b16 %v1464
    %v2504 = vunpack.c.l.b16 %v1465
    %v2505 = vunpack.c.h.b16 %v1465
    %v2506 = vunpack.c.l.b16 %v1466
    %v2507 = vunpack.c.h.b16 %v1466
    %v2508 = vunpack.c.l.b16 %v1467
    %v2509 = vunpack.c.h.b16 %v1467
    %v2510 = vunpack.c.l.b16 %v1468
    %v2511 = vunpack.c.h.b16 %v1468
    %v2512 = vunpack.c.l.b16 %v1469
    %v2513 = vunpack.c.h.b16 %v1469
    %v2514 = vunpack.c.l.b16 %v1470
    %v2515 = vunpack.c.h.b16 %v1470
    %v2516 = vunpack.c.l.b16 %v1471
    %v2517 = vunpack.c.h.b16 %v1471
    %v2518 = vunpack.c.l.b16 %v1472
    %v2519 = vunpack.c.h.b16 %v1472
    %v2520 = vunpack.c.l.b16 %v1473
    %v2521 = vunpack.c.h.b16 %v1473
    %v2522 = vunpack.c.l.b16 %v1474
    %v2523 = vunpack.c.h.b16 %v1474
    %v2524 = vunpack.c.l.b16 %v1475
    %v2525 = vunpack.c.h.b16 %v1475
    %v2526 = vunpack.c.l.b16 %v1476
    %v2527 = vunpack.c.h.b16 %v1476
    %v2528 = vunpack.c.l.b16 %v1477
    %v2529 = vunpack.c.h.b16 %v1477
    %v2530 = vunpack.c.l.b16 %v1478
    %v2531 = vunpack.c.h.b16 %v1478
    %v2532 = vunpack.c.l.b16 %v1479
    %v2533 = vunpack.c.h.b16 %v1479
    %v2534 = vunpack.c.l.b16 %v1480
    %v2535 = vunpack.c.h.b16 %v1480
    %v2536 = vunpack.c.l.b16 %v1481
    %v2537 = vunpack.c.h.b16 %v1481
    %v2538 = vunpack.c.l.b16 %v1482
    %v2539 = vunpack.c.h.b16 %v1482
    %v2540 = vunpack.c.l.b16 %v1483
    %v2541 = vunpack.c.h.b16 %v1483
    %v2542 = vunpack.c.l.b16 %v1484
    %v2543 = vunpack.c.h.b16 %v1484
    %v2544 = vunpack.c.l.b16 %v1485
    %v2545 = vunpack.c.h.b16 %v1485
    %v2546 = vunpack.c.l.b16 %v1486
    %v2547 = vunpack.c.h.b16 %v1486
    %v2548 = vunpack.c.l.b16 %v1487
    %v2549 = vunpack.c.h.b16 %v1487
    %v2550 = vunpack.c.l.b16 %v1488
    %v2551 = vunpack.c.h.b16 %v1488
    %v2552 = vunpack.c.l.b16 %v1489
    %v2553 = vunpack.c.h.b16 %v1489
    %v2554 = vunpack.c.l.b16 %v1490
    %v2555 = vunpack.c.h.b16 %v1490
    %v2556 = vunpack.c.l.b16 %v1491
    %v2557 = vunpack.c.h.b16 %v1491
    %v2558 = vunpack.c.l.b16 %v1492
    %v2559 = vunpack.c.h.b16 %v1492
    %v2560 = vunpack.c.l.b16 %v1493
    %v2561 = vunpack.c.h.b16 %v1493
    %v2562 = vunpack.c.l.b16 %v1494
    %v2563 = vunpack.c.h.b16 %v1494
    %v2564 = vunpack.c.l.b16 %v1495
    %v2565 = vunpack.c.h.b16 %v1495
    %v2566 = vunpack.c.l.b16 %v1496
    %v2567 = vunpack.c.h.b16 %v1496
    %v2568 = vunpack.c.l.b16 %v1497
    %v2569 = vunpack.c.h.b16 %v1497
    %v2570 = vunpack.c.l.b16 %v1498
    %v2571 = vunpack.c.h.b16 %v1498
    %v2572 = vunpack.c.l.b16 %v1499
    %v2573 = vunpack.c.h.b16 %v1499
    %v2574 = vunpack.c.l.b16 %v1500
    %v2575 = vunpack.c.h.b16 %v1500
    %v2576 = vunpack.c.l.b16 %v1501
    %v2577 = vunpack.c.h.b16 %v1501
    %v2578 = vunpack.c.l.b16 %v1502
    %v2579 = vunpack.c.h.b16 %v1502
    %v2580 = vunpack.c.l.b16 %v1503
    %v2581 = vunpack.c.h.b16 %v1503
    %v2582 = vunpack.c.l.b16 %v1504
    %v2583 = vunpack.c.h.b16 %v1504
    %v2584 = vunpack.c.l.b16 %v1505
    %v2585 = vunpack.c.h.b16 %v1505
    %v2586 = vunpack.c.l.b16 %v1506
    %v2587 = vunpack.c.h.b16 %v1506
    %v2588 = vunpack.c.l.b16 %v1507
    %v2589 = vunpack.c.h.b16 %v1507
    %v2590 = vunpack.c.l.b16 %v1508
    %v2591 = vunpack.c.h.b16 %v1508
    %v2592 = vunpack.c.l.b16 %v1509
    %v2593 = vunpack.c.h.b16 %v1509
    %v2594 = vunpack.c.l.b16 %v1510
    %v2595 = vunpack.c.h.b16 %v1510
    %v2596 = vunpack.c.l.b16 %v1511
    %v2597 = vunpack.c.h.b16 %v1511
    %v2598 = vunpack.c.l.b16 %v1512
    %v2599 = vunpack.c.h.b16 %v1512
    %v2600 = vunpack.c.l.b16 %v1513
    %v2601 = vunpack.c.h.b16 %v1513
    %v2602 = vunpack.c.l.b16 %v1514
    %v2603 = vunpack.c.h.b16 %v1514
    %v2604 = vunpack.c.l.b16 %v1515
    %v2605 = vunpack.c.h.b16 %v1515
    %v2606 = vunpack.c.l.b16 %v1516
    %v2607 = vunpack.c.h.b16 %v1516
    %v2608 = vunpack.c.l.b16 %v1517
    %v2609 = vunpack.c.h.b16 %v1517
    %v2610 = vunpack.c.l.b16 %v1518
    %v2611 = vunpack.c.h.b16 %v1518
    %v2612 = vunpack.c.l.b16 %v1519
    %v2613 = vunpack.c.h.b16 %v1519
    %v2614 = vunpack.c.l.b16 %v1520
    %v2615 = vunpack.c.h.b16 %v1520
    %v2616 = vunpack.c.l.b16 %v1521
    %v2617 = vunpack.c.h.b16 %v1521
    %v2618 = vunpack.c.l.b16 %v1522
    %v2619 = vunpack.c.h.b16 %v1522
    %v2620 = vunpack.c.l.b16 %v1523
    %v2621 = vunpack.c.h.b16 %v1523
    %v2622 = vunpack.c.l.b16 %v1524
    %v2623 = vunpack.c.h.b16 %v1524
    %v2624 = vunpack.c.l.b16 %v1525
    %v2625 = vunpack.c.h.b16 %v1525
    %v2626 = vunpack.c.l.b16 %v1526
    %v2627 = vunpack.c.h.b16 %v1526
    %v2628 = vunpack.c.l.b16 %v1527
    %v2629 = vunpack.c.h.b16 %v1527
    %v2630 = vunpack.c.l.b16 %v1528
    %v2631 = vunpack.c.h.b16 %v1528
    %v2632 = vunpack.c.l.b16 %v1529
    %v2633 = vunpack.c.h.b16 %v1529
    %v2634 = vunpack.c.l.b16 %v1530
    %v2635 = vunpack.c.h.b16 %v1530
    %v2636 = vunpack.c.l.b16 %v1531
    %v2637 = vunpack.c.h.b16 %v1531
    %v2638 = vunpack.c.l.b16 %v1532
    %v2639 = vunpack.c.h.b16 %v1532
    %v2640 = vunpack.c.l.b16 %v1533
    %v2641 = vunpack.c.h.b16 %v1533
    %v2642 = vunpack.c.l.b16 %v1534
    %v2643 = vunpack.c.h.b16 %v1534
    %v2644 = vunpack.c.l.b16 %v1535
    %v2645 = vunpack.c.h.b16 %v1535
    %v2646 = vunpack.c.l.b16 %v1536
    %v2647 = vunpack.c.h.b16 %v1536
    %v2648 = vunpack.c.l.b16 %v1537
    %v2649 = vunpack.c.h.b16 %v1537
    %v2650 = vunpack.c.l.b16 %v1538
    %v2651 = vunpack.c.h.b16 %v1538
    %v2652 = vunpack.c.l.b16 %v1539
    %v2653 = vunpack.c.h.b16 %v1539
    %v2654 = vunpack.c.l.b16 %v1540
    %v2655 = vunpack.c.h.b16 %v1540
    %v2656 = vunpack.c.l.b16 %v1541
    %v2657 = vunpack.c.h.b16 %v1541
    %v2658 = vunpack.c.l.b16 %v1542
    %v2659 = vunpack.c.h.b16 %v1542
    %v2660 = vunpack.c.l.b16 %v1543
    %v2661 = vunpack.c.h.b16 %v1543
    %v2662 = vunpack.c.l.b16 %v1544
    %v2663 = vunpack.c.h.b16 %v1544
    %v2664 = vunpack.c.l.b16 %v1545
    %v2665 = vunpack.c.h.b16 %v1545
    %v2666 = vunpack.c.l.b16 %v1546
    %v2667 = vunpack.c.h.b16 %v1546
    %v2668 = vunpack.c.l.b16 %v1547
    %v2669 = vunpack.c.h.b16 %v1547
    %v2670 = vunpack.c.l.b16 %v1548
    %v2671 = vunpack.c.h.b16 %v1548
    %v2672 = vunpack.c.l.b16 %v1549
    %v2673 = vunpack.c.h.b16 %v1549
    %v2674 = vunpack.c.l.b16 %v1550
    %v2675 = vunpack.c.h.b16 %v1550
    %v2676 = vunpack.c.l.b16 %v1551
    %v2677 = vunpack.c.h.b16 %v1551
    %v2678 = vunpack.c.l.b16 %v1552
    %v2679 = vunpack.c.h.b16 %v1552
    %v2680 = vunpack.c.l.b16 %v1553
    %v2681 = vunpack.c.h.b16 %v1553
    %v2682 = vunpack.c.l.b16 %v1554
    %v2683 = vunpack.c.h.b16 %v1554
    %v2684 = vunpack.c.l.b16 %v1555
    %v2685 = vunpack.c.h.b16 %v1555
    %v2686 = vunpack.c.l.b16 %v1556
    %v2687 = vunpack.c.h.b16 %v1556
    %v2688 = vunpack.c.l.b16 %v1557
    %v2689 = vunpack.c.h.b16 %v1557
    %v2690 = vunpack.c.l.b16 %v1558
    %v2691 = vunpack.c.h.b16 %v1558
    %v2692 = vunpack.c.l.b16 %v1559
    %v2693 = vunpack.c.h.b16 %v1559
    %v2694 = vunpack.c.l.b16 %v1560
    %v2695 = vunpack.c.h.b16 %v1560
    %v2696 = vunpack.c.l.b16 %v1561
    %v2697 = vunpack.c.h.b16 %v1561
    %v2698 = vunpack.c.l.b16 %v1562
    %v2699 = vunpack.c.h.b16 %v1562
    %v2700 = vunpack.c.l.b16 %v1563
    %v2701 = vunpack.c.h.b16 %v1563
    %v2702 = vunpack.c.l.b16 %v1564
    %v2703 = vunpack.c.h.b16 %v1564
    %v2704 = vunpack.c.l.b16 %v1565
    %v2705 = vunpack.c.h.b16 %v1565
    %v2706 = vunpack.c.l.b16 %v1566
    %v2707 = vunpack.c.h.b16 %v1566
    %v2708 = vunpack.c.l.b16 %v1567
    %v2709 = vunpack.c.h.b16 %v1567
    %v2710 = vunpack.c.l.b16 %v1568
    %v2711 = vunpack.c.h.b16 %v1568
    %v2712 = vunpack.c.l.b16 %v1569
    %v2713 = vunpack.c.h.b16 %v1569
    %v2714 = vunpack.c.l.b16 %v1570
    %v2715 = vunpack.c.h.b16 %v1570
    %v2716 = vunpack.c.l.b16 %v1571
    %v2717 = vunpack.c.h.b16 %v1571
    %v2718 = vunpack.c.l.b16 %v1572
    %v2719 = vunpack.c.h.b16 %v1572
    %v2720 = vunpack.c.l.b16 %v1573
    %v2721 = vunpack.c.h.b16 %v1573
    %v2722 = vunpack.c.l.b16 %v1574
    %v2723 = vunpack.c.h.b16 %v1574
    %v2724 = vunpack.c.l.b16 %v1575
    %v2725 = vunpack.c.h.b16 %v1575
    %v2726 = vunpack.c.l.b16 %v1576
    %v2727 = vunpack.c.h.b16 %v1576
    %v2728 = vunpack.c.l.b16 %v1577
    %v2729 = vunpack.c.h.b16 %v1577
    %v2730 = vunpack.c.l.b16 %v1578
    %v2731 = vunpack.c.h.b16 %v1578
    %v2732 = vunpack.c.l.b16 %v1579
    %v2733 = vunpack.c.h.b16 %v1579
    %v2734 = vunpack.c.l.b16 %v1580
    %v2735 = vunpack.c.h.b16 %v1580
    %v2736 = vunpack.c.l.b16 %v1581
    %v2737 = vunpack.c.h.b16 %v1581
    %v2738 = vunpack.c.l.b16 %v1582
    %v2739 = vunpack.c.h.b16 %v1582
    %v2740 = vunpack.c.l.b16 %v1583
    %v2741 = vunpack.c.h.b16 %v1583
    %v2742 = vunpack.c.l.b16 %v1584
    %v2743 = vunpack.c.h.b16 %v1584
    %v2744 = vunpack.c.l.b16 %v1585
    %v2745 = vunpack.c.h.b16 %v1585
    %v2746 = vunpack.c.l.b16 %v1586
    %v2747 = vunpack.c.h.b16 %v1586
    %v2748 = vunpack.c.l.b16 %v1587
    %v2749 = vunpack.c.h.b16 %v1587
    %v2750 = vunpack.c.l.b16 %v1588
    %v2751 = vunpack.c.h.b16 %v1588
    %v2752 = vunpack.c.l.b16 %v1589
    %v2753 = vunpack.c.h.b16 %v1589
    %v2754 = vunpack.c.l.b16 %v1590
    %v2755 = vunpack.c.h.b16 %v1590
    %v2756 = vunpack.c.l.b16 %v1591
    %v2757 = vunpack.c.h.b16 %v1591
    %v2758 = vunpack.c.l.b16 %v1592
    %v2759 = vunpack.c.h.b16 %v1592
    %v2760 = vunpack.c.l.b16 %v1593
    %v2761 = vunpack.c.h.b16 %v1593
    %v2762 = vunpack.c.l.b16 %v1594
    %v2763 = vunpack.c.h.b16 %v1594
    %v2764 = vunpack.c.l.b16 %v1595
    %v2765 = vunpack.c.h.b16 %v1595
    %v2766 = vunpack.c.l.b16 %v1596
    %v2767 = vunpack.c.h.b16 %v1596
    %v2768 = vunpack.c.l.b16 %v1597
    %v2769 = vunpack.c.h.b16 %v1597
    %v2770 = vunpack.c.l.b16 %v1598
    %v2771 = vunpack.c.h.b16 %v1598
    %v2772 = vunpack.c.l.b16 %v1599
    %v2773 = vunpack.c.h.b16 %v1599
    %v2774 = vunpack.c.l.b16 %v1600
    %v2775 = vunpack.c.h.b16 %v1600
    %v2776 = vunpack.c.l.b16 %v1601
    %v2777 = vunpack.c.h.b16 %v1601
    %v2778 = vunpack.c.l.b16 %v1602
    %v2779 = vunpack.c.h.b16 %v1602
    %v2780 = vunpack.c.l.b16 %v1603
    %v2781 = vunpack.c.h.b16 %v1603
    %v2782 = vunpack.c.l.b16 %v1604
    %v2783 = vunpack.c.h.b16 %v1604
    %v2784 = vunpack.c.l.b16 %v1605
    %v2785 = vunpack.c.h.b16 %v1605
    %v2786 = vunpack.c.l.b16 %v1606
    %v2787 = vunpack.c.h.b16 %v1606
    %v2788 = vunpack.c.l.b16 %v1607
    %v2789 = vunpack.c.h.b16 %v1607
    %v2790 = vunpack.c.l.b16 %v1608
    %v2791 = vunpack.c.h.b16 %v1608
    %v2792 = vunpack.c.l.b16 %v1609
    %v2793 = vunpack.c.h.b16 %v1609
    %v2794 = vunpack.c.l.b16 %v1610
    %v2795 = vunpack.c.h.b16 %v1610
    %v2796 = vunpack.c.l.b16 %v1611
    %v2797 = vunpack.c.h.b16 %v1611
    %v2798 = vunpack.c.l.b16 %v1612
    %v2799 = vunpack.c.h.b16 %v1612
    %v2800 = vunpack.c.l.b16 %v1613
    %v2801 = vunpack.c.h.b16 %v1613
    %v2802 = vunpack.c.l.b16 %v1614
    %v2803 = vunpack.c.h.b16 %v1614
    %v2804 = vunpack.c.l.b16 %v1615
    %v2805 = vunpack.c.h.b16 %v1615
    %v2806 = vunpack.c.l.b16 %v1616
    %v2807 = vunpack.c.h.b16 %v1616
    %v2808 = vunpack.c.l.b16 %v1617
    %v2809 = vunpack.c.h.b16 %v1617
    %v2810 = vunpack.c.l.b16 %v1618
    %v2811 = vunpack.c.h.b16 %v1618
    %v2812 = vunpack.c.l.b16 %v1619
    %v2813 = vunpack.c.h.b16 %v1619
    %v2814 = vunpack.c.l.b16 %v1620
    %v2815 = vunpack.c.h.b16 %v1620
    %v2816 = vunpack.c.l.b16 %v1621
    %v2817 = vunpack.c.h.b16 %v1621
    %v2818 = vunpack.c.l.b16 %v1622
    %v2819 = vunpack.c.h.b16 %v1622
    %v2820 = vunpack.c.l.b16 %v1623
    %v2821 = vunpack.c.h.b16 %v1623
    %v2822 = vunpack.c.l.b16 %v1624
    %v2823 = vunpack.c.h.b16 %v1624
    %v2824 = vunpack.c.l.b16 %v1625
    %v2825 = vunpack.c.h.b16 %v1625
    %v2826 = vunpack.c.l.b16 %v1626
    %v2827 = vunpack.c.h.b16 %v1626
    %v2828 = vunpack.c.l.b16 %v1627
    %v2829 = vunpack.c.h.b16 %v1627
    %v2830 = vunpack.c.l.b16 %v1628
    %v2831 = vunpack.c.h.b16 %v1628
    %v2832 = vunpack.c.l.b16 %v1629
    %v2833 = vunpack.c.h.b16 %v1629
    %v2834 = vunpack.c.l.b16 %v1630
    %v2835 = vunpack.c.h.b16 %v1630
    %v2836 = vunpack.c.l.b16 %v1631
    %v2837 = vunpack.c.h.b16 %v1631
    %v2838 = vunpack.c.l.b16 %v1632
    %v2839 = vunpack.c.h.b16 %v1632
    %v2840 = vunpack.c.l.b16 %v1633
    %v2841 = vunpack.c.h.b16 %v1633
    %v2842 = vunpack.c.l.b16 %v1634
    %v2843 = vunpack.c.h.b16 %v1634
    %v2844 = vunpack.c.l.b16 %v1635
    %v2845 = vunpack.c.h.b16 %v1635
    %v2846 = vunpack.c.l.b16 %v1636
    %v2847 = vunpack.c.h.b16 %v1636
    %v2848 = vunpack.c.l.b16 %v1637
    %v2849 = vunpack.c.h.b16 %v1637
    %v2850 = vunpack.c.l.b16 %v1638
    %v2851 = vunpack.c.h.b16 %v1638
    %v2852 = vunpack.c.l.b16 %v1639
    %v2853 = vunpack.c.h.b16 %v1639
    %v2854 = vunpack.c.l.b16 %v1640
    %v2855 = vunpack.c.h.b16 %v1640
    %v2856 = vunpack.c.l.b16 %v1641
    %v2857 = vunpack.c.h.b16 %v1641
    %v2858 = vunpack.c.l.b16 %v1642
    %v2859 = vunpack.c.h.b16 %v1642
    %v2860 = vunpack.c.l.b16 %v1643
    %v2861 = vunpack.c.h.b16 %v1643
    %v2862 = vunpack.c.l.b16 %v1644
    %v2863 = vunpack.c.h.b16 %v1644
    %v2864 = vunpack.c.l.b16 %v1645
    %v2865 = vunpack.c.h.b16 %v1645
    %v2866 = vunpack.c.l.b16 %v1646
    %v2867 = vunpack.c.h.b16 %v1646
    %v2868 = vunpack.c.l.b16 %v1647
    %v2869 = vunpack.c.h.b16 %v1647
    %v2870 = vunpack.c.l.b16 %v1648
    %v2871 = vunpack.c.h.b16 %v1648
    %v2872 = vunpack.c.l.b16 %v1649
    %v2873 = vunpack.c.h.b16 %v1649
    %v2874 = vunpack.c.l.b16 %v1650
    %v2875 = vunpack.c.h.b16 %v1650
    %v2876 = vunpack.c.l.b16 %v1651
    %v2877 = vunpack.c.h.b16 %v1651
    %v2878 = vunpack.c.l.b16 %v1652
    %v2879 = vunpack.c.h.b16 %v1652
    %v2880 = vunpack.c.l.b16 %v1653
    %v2881 = vunpack.c.h.b16 %v1653
    %v2882 = vunpack.c.l.b16 %v1654
    %v2883 = vunpack.c.h.b16 %v1654
    %v2884 = vunpack.c.l.b16 %v1655
    %v2885 = vunpack.c.h.b16 %v1655
    %v2886 = vunpack.c.l.b16 %v1656
    %v2887 = vunpack.c.h.b16 %v1656
    %v2888 = vunpack.c.l.b16 %v1657
    %v2889 = vunpack.c.h.b16 %v1657
    %v2890 = vunpack.c.l.b16 %v1658
    %v2891 = vunpack.c.h.b16 %v1658
    %v2892 = vunpack.c.l.b16 %v1659
    %v2893 = vunpack.c.h.b16 %v1659
    %v2894 = vunpack.c.l.b16 %v1660
    %v2895 = vunpack.c.h.b16 %v1660
    %v2896 = vunpack.c.l.b16 %v1661
    %v2897 = vunpack.c.h.b16 %v1661
    %v2898 = vunpack.c.l.b16 %v1662
    %v2899 = vunpack.c.h.b16 %v1662
    %v2900 = vunpack.c.l.b16 %v1663
    %v2901 = vunpack.c.h.b16 %v1663
    %v2902 = vunpack.c.l.b16 %v1664
    %v2903 = vunpack.c.h.b16 %v1664
    %v2904 = vpack.c.b16 %v2140, %v2136
    %v2905 = vpack.c.b16 %v2141, %v2137
    %v2906 = vpack.c.b16 %v2142, %v2138
    %v2907 = vpack.c.b16 %v2143, %v2139
    %v2908 = vpack.c.b16 %v2148, %v2144
    %v2909 = vpack.c.b16 %v2149, %v2145
    %v2910 = vpack.c.b16 %v2150, %v2146
    %v2911 = vpack.c.b16 %v2151, %v2147
    %v2912 = vpack.c.b16 %v2156, %v2152
    %v2913 = vpack.c.b16 %v2157, %v2153
    %v2914 = vpack.c.b16 %v2158, %v2154
    %v2915 = vpack.c.b16 %v2159, %v2155
    %v2916 = vpack.c.b16 %v2164, %v2160
    %v2917 = vpack.c.b16 %v2165, %v2161
    %v2918 = vpack.c.b16 %v2166, %v2162
    %v2919 = vpack.c.b16 %v2167, %v2163
    %v2920 = vpack.c.b16 %v2172, %v2168
    %v2921 = vpack.c.b16 %v2173, %v2169
    %v2922 = vpack.c.b16 %v2174, %v2170
    %v2923 = vpack.c.b16 %v2175, %v2171
    %v2924 = vpack.c.b16 %v2180, %v2176
    %v2925 = vpack.c.b16 %v2181, %v2177
    %v2926 = vpack.c.b16 %v2182, %v2178
    %v2927 = vpack.c.b16 %v2183, %v2179
    %v2928 = vpack.c.b16 %v2188, %v2184
    %v2929 = vpack.c.b16 %v2189, %v2185
    %v2930 = vpack.c.b16 %v2190, %v2186
    %v2931 = vpack.c.b16 %v2191, %v2187
    %v2932 = vpack.c.b16 %v2196, %v2192
    %v2933 = vpack.c.b16 %v2197, %v2193
    %v2934 = vpack.c.b16 %v2198, %v2194
    %v2935 = vpack.c.b16 %v2199, %v2195
    %v2936 = vpack.c.b16 %v2204, %v2200
    %v2937 = vpack.c.b16 %v2205, %v2201
    %v2938 = vpack.c.b16 %v2206, %v2202
    %v2939 = vpack.c.b16 %v2207, %v2203
    %v2940 = vpack.c.b16 %v2212, %v2208
    %v2941 = vpack.c.b16 %v2213, %v2209
    %v2942 = vpack.c.b16 %v2214, %v2210
    %v2943 = vpack.c.b16 %v2215, %v2211
    %v2944 = vpack.c.b16 %v2220, %v2216
    %v2945 = vpack.c.b16 %v2221, %v2217
    %v2946 = vpack.c.b16 %v2222, %v2218
    %v2947 = vpack.c.b16 %v2223, %v2219
    %v2948 = vpack.c.b16 %v2228, %v2224
    %v2949 = vpack.c.b16 %v2229, %v2225
    %v2950 = vpack.c.b16 %v2230, %v2226
    %v2951 = vpack.c.b16 %v2231, %v2227
    %v2952 = vpack.c.b16 %v2236, %v2232
    %v2953 = vpack.c.b16 %v2237, %v2233
    %v2954 = vpack.c.b16 %v2238, %v2234
    %v2955 = vpack.c.b16 %v2239, %v2235
    %v2956 = vpack.c.b16 %v2244, %v2240
    %v2957 = vpack.c.b16 %v2245, %v2241
    %v2958 = vpack.c.b16 %v2246, %v2242
    %v2959 = vpack.c.b16 %v2247, %v2243
    %v2960 = vpack.c.b16 %v2252, %v2248
    %v2961 = vpack.c.b16 %v2253, %v2249
    %v2962 = vpack.c.b16 %v2254, %v2250
    %v2963 = vpack.c.b16 %v2255, %v2251
    %v2964 = vpack.c.b16 %v2260, %v2256
    %v2965 = vpack.c.b16 %v2261, %v2257
    %v2966 = vpack.c.b16 %v2262, %v2258
    %v2967 = vpack.c.b16 %v2263, %v2259
    %v2968 = vpack.c.b16 %v2268, %v2264
    %v2969 = vpack.c.b16 %v2269, %v2265
    %v2970 = vpack.c.b16 %v2270, %v2266
    %v2971 = vpack.c.b16 %v2271, %v2267
    %v2972 = vpack.c.b16 %v2276, %v2272
    %v2973 = vpack.c.b16 %v2277, %v2273
    %v2974 = vpack.c.b16 %v2278, %v2274
    %v2975 = vpack.c.b16 %v2279, %v2275
    %v2976 = vpack.c.b16 %v2284, %v2280
    %v2977 = vpack.c.b16 %v2285, %v2281
    %v2978 = vpack.c.b16 %v2286, %v2282
    %v2979 = vpack.c.b16 %v2287, %v2283
    %v2980 = vpack.c.b16 %v2292, %v2288
    %v2981 = vpack.c.b16 %v2293, %v2289
    %v2982 = vpack.c.b16 %v2294, %v2290
    %v2983 = vpack.c.b16 %v2295, %v2291
    %v2984 = vpack.c.b16 %v2300, %v2296
    %v2985 = vpack.c.b16 %v2301, %v2297
    %v2986 = vpack.c.b16 %v2302, %v2298
    %v2987 = vpack.c.b16 %v2303, %v2299
    %v2988 = vpack.c.b16 %v2308, %v2304
    %v2989 = vpack.c.b16 %v2309, %v2305
    %v2990 = vpack.c.b16 %v2310, %v2306
    %v2991 = vpack.c.b16 %v2311, %v2307
    %v2992 = vpack.c.b16 %v2316, %v2312
    %v2993 = vpack.c.b16 %v2317, %v2313
    %v2994 = vpack.c.b16 %v2318, %v2314
    %v2995 = vpack.c.b16 %v2319, %v2315
    %v2996 = vpack.c.b16 %v2324, %v2320
    %v2997 = vpack.c.b16 %v2325, %v2321
    %v2998 = vpack.c.b16 %v2326, %v2322
    %v2999 = vpack.c.b16 %v2327, %v2323
    %v3000 = vpack.c.b16 %v2332, %v2328
    %v3001 = vpack.c.b16 %v2333, %v2329
    %v3002 = vpack.c.b16 %v2334, %v2330
    %v3003 = vpack.c.b16 %v2335, %v2331
    %v3004 = vpack.c.b16 %v2340, %v2336
    %v3005 = vpack.c.b16 %v2341, %v2337
    %v3006 = vpack.c.b16 %v2342, %v2338
    %v3007 = vpack.c.b16 %v2343, %v2339
    %v3008 = vpack.c.b16 %v2348, %v2344
    %v3009 = vpack.c.b16 %v2349, %v2345
    %v3010 = vpack.c.b16 %v2350, %v2346
    %v3011 = vpack.c.b16 %v2351, %v2347
    %v3012 = vpack.c.b16 %v2356, %v2352
    %v3013 = vpack.c.b16 %v2357, %v2353
    %v3014 = vpack.c.b16 %v2358, %v2354
    %v3015 = vpack.c.b16 %v2359, %v2355
    %v3016 = vpack.c.b16 %v2364, %v2360
    %v3017 = vpack.c.b16 %v2365, %v2361
    %v3018 = vpack.c.b16 %v2366, %v2362
    %v3019 = vpack.c.b16 %v2367, %v2363
    %v3020 = vpack.c.b16 %v2372, %v2368
    %v3021 = vpack.c.b16 %v2373, %v2369
    %v3022 = vpack.c.b16 %v2374, %v2370
    %v3023 = vpack.c.b16 %v2375, %v2371
    %v3024 = vpack.c.b16 %v2380, %v2376
    %v3025 = vpack.c.b16 %v2381, %v2377
    %v3026 = vpack.c.b16 %v2382, %v2378
    %v3027 = vpack.c.b16 %v2383, %v2379
    %v3028 = vpack.c.b16 %v2388, %v2384
    %v3029 = vpack.c.b16 %v2389, %v2385
    %v3030 = vpack.c.b16 %v2390, %v2386
    %v3031 = vpack.c.b16 %v2391, %v2387
    %v3032 = vpack.c.b16 %v2396, %v2392
    %v3033 = vpack.c.b16 %v2397, %v2393
    %v3034 = vpack.c.b16 %v2398, %v2394
    %v3035 = vpack.c.b16 %v2399, %v2395
    %v3036 = vpack.c.b16 %v2404, %v2400
    %v3037 = vpack.c.b16 %v2405, %v2401
    %v3038 = vpack.c.b16 %v2406, %v2402
    %v3039 = vpack.c.b16 %v2407, %v2403
    %v3040 = vpack.c.b16 %v2412, %v2408
    %v3041 = vpack.c.b16 %v2413, %v2409
    %v3042 = vpack.c.b16 %v2414, %v2410
    %v3043 = vpack.c.b16 %v2415, %v2411
    %v3044 = vpack.c.b16 %v2420, %v2416
    %v3045 = vpack.c.b16 %v2421, %v2417
    %v3046 = vpack.c.b16 %v2422, %v2418
    %v3047 = vpack.c.b16 %v2423, %v2419
    %v3048 = vpack.c.b16 %v2428, %v2424
    %v3049 = vpack.c.b16 %v2429, %v2425
    %v3050 = vpack.c.b16 %v2430, %v2426
    %v3051 = vpack.c.b16 %v2431, %v2427
    %v3052 = vpack.c.b16 %v2436, %v2432
    %v3053 = vpack.c.b16 %v2437, %v2433
    %v3054 = vpack.c.b16 %v2438, %v2434
    %v3055 = vpack.c.b16 %v2439, %v2435
    %v3056 = vpack.c.b16 %v2444, %v2440
    %v3057 = vpack.c.b16 %v2445, %v2441
    %v3058 = vpack.c.b16 %v2446, %v2442
    %v3059 = vpack.c.b16 %v2447, %v2443
    %v3060 = vpack.c.b16 %v2452, %v2448
    %v3061 = vpack.c.b16 %v2453, %v2449
    %v3062 = vpack.c.b16 %v2454, %v2450
    %v3063 = vpack.c.b16 %v2455, %v2451
    %v3064 = vpack.c.b16 %v2460, %v2456
    %v3065 = vpack.c.b16 %v2461, %v2457
    %v3066 = vpack.c.b16 %v2462, %v2458
    %v3067 = vpack.c.b16 %v2463, %v2459
    %v3068 = vpack.c.b16 %v2468, %v2464
    %v3069 = vpack.c.b16 %v2469, %v2465
    %v3070 = vpack.c.b16 %v2470, %v2466
    %v3071 = vpack.c.b16 %v2471, %v2467
    %v3072 = vpack.c.b16 %v2476, %v2472
    %v3073 = vpack.c.b16 %v2477, %v2473
    %v3074 = vpack.c.b16 %v2478, %v2474
    %v3075 = vpack.c.b16 %v2479, %v2475
    %v3076 = vpack.c.b16 %v2484, %v2480
    %v3077 = vpack.c.b16 %v2485, %v2481
    %v3078 = vpack.c.b16 %v2486, %v2482
    %v3079 = vpack.c.b16 %v2487, %v2483
    %v3080 = vpack.c.b16 %v2492, %v2488
    %v3081 = vpack.c.b16 %v2493, %v2489
    %v3082 = vpack.c.b16 %v2494, %v2490
    %v3083 = vpack.c.b16 %v2495, %v2491
    %v3084 = vpack.c.b16 %v2500, %v2496
    %v3085 = vpack.c.b16 %v2501, %v2497
    %v3086 = vpack.c.b16 %v2502, %v2498
    %v3087 = vpack.c.b16 %v2503, %v2499
    %v3088 = vpack.c.b16 %v2508, %v2504
    %v3089 = vpack.c.b16 %v2509, %v2505
    %v3090 = vpack.c.b16 %v2510, %v2506
    %v3091 = vpack.c.b16 %v2511, %v2507
    %v3092 = vpack.c.b16 %v2516, %v2512
    %v3093 = vpack.c.b16 %v2517, %v2513
    %v3094 = vpack.c.b16 %v2518, %v2514
    %v3095 = vpack.c.b16 %v2519, %v2515
    %v3096 = vpack.c.b16 %v2524, %v2520
    %v3097 = vpack.c.b16 %v2525, %v2521
    %v3098 = vpack.c.b16 %v2526, %v2522
    %v3099 = vpack.c.b16 %v2527, %v2523
    %v3100 = vpack.c.b16 %v2532, %v2528
    %v3101 = vpack.c.b16 %v2533, %v2529
    %v3102 = vpack.c.b16 %v2534, %v2530
    %v3103 = vpack.c.b16 %v2535, %v2531
    %v3104 = vpack.c.b16 %v2540, %v2536
    %v3105 = vpack.c.b16 %v2541, %v2537
    %v3106 = vpack.c.b16 %v2542, %v2538
    %v3107 = vpack.c.b16 %v2543, %v2539
    %v3108 = vpack.c.b16 %v2548, %v2544
    %v3109 = vpack.c.b16 %v2549, %v2545
    %v3110 = vpack.c.b16 %v2550, %v2546
    %v3111 = vpack.c.b16 %v2551, %v2547
    %v3112 = vpack.c.b16 %v2556, %v2552
    %v3113 = vpack.c.b16 %v2557, %v2553
    %v3114 = vpack.c.b16 %v2558, %v2554
    %v3115 = vpack.c.b16 %v2559, %v2555
    %v3116 = vpack.c.b16 %v2564, %v2560
    %v3117 = vpack.c.b16 %v2565, %v2561
    %v3118 = vpack.c.b16 %v2566, %v2562
    %v3119 = vpack.c.b16 %v2567, %v2563
    %v3120 = vpack.c.b16 %v2572, %v2568
    %v3121 = vpack.c.b16 %v2573, %v2569
    %v3122 = vpack.c.b16 %v2574, %v2570
    %v3123 = vpack.c.b16 %v2575, %v2571
    %v3124 = vpack.c.b16 %v2580, %v2576
    %v3125 = vpack.c.b16 %v2581, %v2577
    %v3126 = vpack.c.b16 %v2582, %v2578
    %v3127 = vpack.c.b16 %v2583, %v2579
    %v3128 = vpack.c.b16 %v2588, %v2584
    %v3129 = vpack.c.b16 %v2589, %v2585
    %v3130 = vpack.c.b16 %v2590, %v2586
    %v3131 = vpack.c.b16 %v2591, %v2587
    %v3132 = vpack.c.b16 %v2596, %v2592
    %v3133 = vpack.c.b16 %v2597, %v2593
    %v3134 = vpack.c.b16 %v2598, %v2594
    %v3135 = vpack.c.b16 %v2599, %v2595
    %v3136 = vpack.c.b16 %v2604, %v2600
    %v3137 = vpack.c.b16 %v2605, %v2601
    %v3138 = vpack.c.b16 %v2606, %v2602
    %v3139 = vpack.c.b16 %v2607, %v2603
    %v3140 = vpack.c.b16 %v2612, %v2608
    %v3141 = vpack.c.b16 %v2613, %v2609
    %v3142 = vpack.c.b16 %v2614, %v2610
    %v3143 = vpack.c.b16 %v2615, %v2611
    %v3144 = vpack.c.b16 %v2620, %v2616
    %v3145 = vpack.c.b16 %v2621, %v2617
    %v3146 = vpack.c.b16 %v2622, %v2618
    %v3147 = vpack.c.b16 %v2623, %v2619
    %v3148 = vpack.c.b16 %v2628, %v2624
    %v3149 = vpack.c.b16 %v2629, %v2625
    %v3150 = vpack.c.b16 %v2630, %v2626
    %v3151 = vpack.c.b16 %v2631, %v2627
    %v3152 = vpack.c.b16 %v2636, %v2632
    %v3153 = vpack.c.b16 %v2637, %v2633
    %v3154 = vpack.c.b16 %v2638, %v2634
    %v3155 = vpack.c.b16 %v2639, %v2635
    %v3156 = vpack.c.b16 %v2644, %v2640
    %v3157 = vpack.c.b16 %v2645, %v2641
    %v3158 = vpack.c.b16 %v2646, %v2642
    %v3159 = vpack.c.b16 %v2647, %v2643
    %v3160 = vpack.c.b16 %v2652, %v2648
    %v3161 = vpack.c.b16 %v2653, %v2649
    %v3162 = vpack.c.b16 %v2654, %v2650
    %v3163 = vpack.c.b16 %v2655, %v2651
    %v3164 = vpack.c.b16 %v2660, %v2656
    %v3165 = vpack.c.b16 %v2661, %v2657
    %v3166 = vpack.c.b16 %v2662, %v2658
    %v3167 = vpack.c.b16 %v2663, %v2659
    %v3168 = vpack.c.b16 %v2668, %v2664
    %v3169 = vpack.c.b16 %v2669, %v2665
    %v3170 = vpack.c.b16 %v2670, %v2666
    %v3171 = vpack.c.b16 %v2671, %v2667
    %v3172 = vpack.c.b16 %v2676, %v2672
    %v3173 = vpack.c.b16 %v2677, %v2673
    %v3174 = vpack.c.b16 %v2678, %v2674
    %v3175 = vpack.c.b16 %v2679, %v2675
    %v3176 = vpack.c.b16 %v2684, %v2680
    %v3177 = vpack.c.b16 %v2685, %v2681
    %v3178 = vpack.c.b16 %v2686, %v2682
    %v3179 = vpack.c.b16 %v2687, %v2683
    %v3180 = vpack.c.b16 %v2692, %v2688
    %v3181 = vpack.c.b16 %v2693, %v2689
    %v3182 = vpack.c.b16 %v2694, %v2690
    %v3183 = vpack.c.b16 %v2695, %v2691
    %v3184 = vpack.c.b16 %v2700, %v2696
    %v3185 = vpack.c.b16 %v2701, %v2697
    %v3186 = vpack.c.b16 %v2702, %v2698
    %v3187 = vpack.c.b16 %v2703, %v2699
    %v3188 = vpack.c.b16 %v2708, %v2704
    %v3189 = vpack.c.b16 %v2709, %v2705
    %v3190 = vpack.c.b16 %v2710, %v2706
    %v3191 = vpack.c.b16 %v2711, %v2707
    %v3192 = vpack.c.b16 %v2716, %v2712
    %v3193 = vpack.c.b16 %v2717, %v2713
    %v3194 = vpack.c.b16 %v2718, %v2714
    %v3195 = vpack.c.b16 %v2719, %v2715
    %v3196 = vpack.c.b16 %v2724, %v2720
    %v3197 = vpack.c.b16 %v2725, %v2721
    %v3198 = vpack.c.b16 %v2726, %v2722
    %v3199 = vpack.c.b16 %v2727, %v2723
    %v3200 = vpack.c.b16 %v2732, %v2728
    %v3201 = vpack.c.b16 %v2733, %v2729
    %v3202 = vpack.c.b16 %v2734, %v2730
    %v3203 = vpack.c.b16 %v2735, %v2731
    %v3204 = vpack.c.b16 %v2740, %v2736
    %v3205 = vpack.c.b16 %v2741, %v2737
    %v3206 = vpack.c.b16 %v2742, %v2738
    %v3207 = vpack.c.b16 %v2743, %v2739
    %v3208 = vpack.c.b16 %v2748, %v2744
    %v3209 = vpack.c.b16 %v2749, %v2745
    %v3210 = vpack.c.b16 %v2750, %v2746
    %v3211 = vpack.c.b16 %v2751, %v2747
    %v3212 = vpack.c.b16 %v2756, %v2752
    %v3213 = vpack.c.b16 %v2757, %v2753
    %v3214 = vpack.c.b16 %v2758, %v2754
    %v3215 = vpack.c.b16 %v2759, %v2755
    %v3216 = vpack.c.b16 %v2764, %v2760
    %v3217 = vpack.c.b16 %v2765, %v2761
    %v3218 = vpack.c.b16 %v2766, %v2762
    %v3219 = vpack.c.b16 %v2767, %v2763
    %v3220 = vpack.c.b16 %v2772, %v2768
    %v3221 = vpack.c.b16 %v2773, %v2769
    %v3222 = vpack.c.b16 %v2774, %v2770
    %v3223 = vpack.c.b16 %v2775, %v2771
    %v3224 = vpack.c.b16 %v2780, %v2776
    %v3225 = vpack.c.b16 %v2781, %v2777
    %v3226 = vpack.c.b16 %v2782, %v2778
    %v3227 = vpack.c.b16 %v2783, %v2779
    %v3228 = vpack.c.b16 %v2788, %v2784
    %v3229 = vpack.c.b16 %v2789, %v2785
    %v3230 = vpack.c.b16 %v2790, %v2786
    %v3231 = vpack.c.b16 %v2791, %v2787
    %v3232 = vpack.c.b16 %v2796, %v2792
    %v3233 = vpack.c.b16 %v2797, %v2793
    %v3234 = vpack.c.b16 %v2798, %v2794
    %v3235 = vpack.c.b16 %v2799, %v2795
    %v3236 = vpack.c.b16 %v2804, %v2800
    %v3237 = vpack.c.b16 %v2805, %v2801
    %v3238 = vpack.c.b16 %v2806, %v2802
    %v3239 = vpack.c.b16 %v2807, %v2803
    %v3240 = vpack.c.b16 %v2812, %v2808
    %v3241 = vpack.c.b16 %v2813, %v2809
    %v3242 = vpack.c.b16 %v2814, %v2810
    %v3243 = vpack.c.b16 %v2815, %v2811
    %v3244 = vpack.c.b16 %v2820, %v2816
    %v3245 = vpack.c.b16 %v2821, %v2817
    %v3246 = vpack.c.b16 %v2822, %v2818
    %v3247 = vpack.c.b16 %v2823, %v2819
    %v3248 = vpack.c.b16 %v2828, %v2824
    %v3249 = vpack.c.b16 %v2829, %v2825
    %v3250 = vpack.c.b16 %v2830, %v2826
    %v3251 = vpack.c.b16 %v2831, %v2827
    %v3252 = vpack.c.b16 %v2836, %v2832
    %v3253 = vpack.c.b16 %v2837, %v2833
    %v3254 = vpack.c.b16 %v2838, %v2834
    %v3255 = vpack.c.b16 %v2839, %v2835
    %v3256 = vpack.c.b16 %v2844, %v2840
    %v3257 = vpack.c.b16 %v2845, %v2841
    %v3258 = vpack.c.b16 %v2846, %v2842
    %v3259 = vpack.c.b16 %v2847, %v2843
    %v3260 = vpack.c.b16 %v2852, %v2848
    %v3261 = vpack.c.b16 %v2853, %v2849
    %v3262 = vpack.c.b16 %v2854, %v2850
    %v3263 = vpack.c.b16 %v2855, %v2851
    %v3264 = vpack.c.b16 %v2860, %v2856
    %v3265 = vpack.c.b16 %v2861, %v2857
    %v3266 = vpack.c.b16 %v2862, %v2858
    %v3267 = vpack.c.b16 %v2863, %v2859
    %v3268 = vpack.c.b16 %v2868, %v2864
    %v3269 = vpack.c.b16 %v2869, %v2865
    %v3270 = vpack.c.b16 %v2870, %v2866
    %v3271 = vpack.c.b16 %v2871, %v2867
    %v3272 = vpack.c.b16 %v2876, %v2872
    %v3273 = vpack.c.b16 %v2877, %v2873
    %v3274 = vpack.c.b16 %v2878, %v2874
    %v3275 = vpack.c.b16 %v2879, %v2875
    %v3276 = vpack.c.b16 %v2884, %v2880
    %v3277 = vpack.c.b16 %v2885, %v2881
    %v3278 = vpack.c.b16 %v2886, %v2882
    %v3279 = vpack.c.b16 %v2887, %v2883
    %v3280 = vpack.c.b16 %v2892, %v2888
    %v3281 = vpack.c.b16 %v2893, %v2889
    %v3282 = vpack.c.b16 %v2894, %v2890
    %v3283 = vpack.c.b16 %v2895, %v2891
    %v3284 = vpack.c.b16 %v2900, %v2896
    %v3285 = vpack.c.b16 %v2901, %v2897
    %v3286 = vpack.c.b16 %v2902, %v2898
    %v3287 = vpack.c.b16 %v2903, %v2899
    %3672 = vmatprep.subr.bf16.mxu0 %v2905
    %3673 = vmatpush1.bf16.msra.mxu0 %v2904
    %3674 = vmatprep.subr.bf16.mxu0 %v2909
    %3675 = vmatpush1.bf16.msra.mxu0 %v2908
    %3676 = vmatprep.subr.bf16.mxu0 %v2913
    %3677 = vmatpush1.bf16.msra.mxu0 %v2912
    %3678 = vmatprep.subr.bf16.mxu0 %v2917
    %3679 = vmatpush1.bf16.msra.mxu0 %v2916
    %3680 = vmatprep.subr.bf16.mxu0 %v2921
    %3681 = vmatpush1.bf16.msra.mxu0 %v2920
    %3682 = vmatprep.subr.bf16.mxu0 %v2925
    %3683 = vmatpush1.bf16.msra.mxu0 %v2924
    %3684 = vmatprep.subr.bf16.mxu0 %v2929
    %3685 = vmatpush1.bf16.msra.mxu0 %v2928
    %3686 = vmatprep.subr.bf16.mxu0 %v2933
    %3687 = vmatpush1.bf16.msra.mxu0 %v2932
    %3688 = vmatprep.subr.bf16.mxu0 %v2937
    %3689 = vmatpush1.bf16.msra.mxu0 %v2936
    %3690 = vmatprep.subr.bf16.mxu0 %v2941
    %3691 = vmatpush1.bf16.msra.mxu0 %v2940
    %3692 = vmatprep.subr.bf16.mxu0 %v2945
    %3693 = vmatpush1.bf16.msra.mxu0 %v2944
    %3694 = vmatprep.subr.bf16.mxu0 %v2949
    %3695 = vmatpush1.bf16.msra.mxu0 %v2948
    %3696 = vmatprep.subr.bf16.mxu0 %v2953
    %3697 = vmatpush1.bf16.msra.mxu0 %v2952
    %3698 = vmatprep.subr.bf16.mxu0 %v2957
    %3699 = vmatpush1.bf16.msra.mxu0 %v2956
    %3700 = vmatprep.subr.bf16.mxu0 %v2961
    %3701 = vmatpush1.bf16.msra.mxu0 %v2960
    %3702 = vmatprep.subr.bf16.mxu0 %v2965
    %3703 = vmatpush1.bf16.msra.mxu0 %v2964
    %3704 = vmatprep.mubr.bf16.mxu0 %v1704
    %3705 = vmatmul.mubr.bf16.gmra.mrb[0].mxu0 %v1690
    %v3706 = vpop.f32.mrb[0].mxu0
    %v3707 = vadd.f32 0.0, %v3706
    %v3708 = vpop.f32.mrb[0].mxu0
    %v3709 = vadd.f32 0.0, %v3708
    %v3710 = vpop.f32.mrb[0].mxu0
    %v3711 = vpop.f32.mrb[0].mxu0
    %3712 = vdwg.mxu0
    %3713 = vmatprep.subr.bf16.mxu0 %v2969
    %3714 = vmatpush1.bf16.msra.mxu0 %v2968
    %3715 = vmatprep.subr.bf16.mxu0 %v2973
    %3716 = vmatpush1.bf16.msra.mxu0 %v2972
    %3717 = vmatprep.subr.bf16.mxu0 %v2977
    %3718 = vmatpush1.bf16.msra.mxu0 %v2976
    %3719 = vmatprep.subr.bf16.mxu0 %v2981
    %3720 = vmatpush1.bf16.msra.mxu0 %v2980
    %3721 = vmatprep.subr.bf16.mxu0 %v2985
    %3722 = vmatpush1.bf16.msra.mxu0 %v2984
    %3723 = vmatprep.subr.bf16.mxu0 %v2989
    %3724 = vmatpush1.bf16.msra.mxu0 %v2988
    %3725 = vmatprep.subr.bf16.mxu0 %v2993
    %3726 = vmatpush1.bf16.msra.mxu0 %v2992
    %3727 = vmatprep.subr.bf16.mxu0 %v2997
    %3728 = vmatpush1.bf16.msra.mxu0 %v2996
    %3729 = vmatprep.subr.bf16.mxu0 %v3001
    %3730 = vmatpush1.bf16.msra.mxu0 %v3000
    %3731 = vmatprep.subr.bf16.mxu0 %v3005
    %3732 = vmatpush1.bf16.msra.mxu0 %v3004
    %3733 = vmatprep.subr.bf16.mxu0 %v3009
    %3734 = vmatpush1.bf16.msra.mxu0 %v3008
    %3735 = vmatprep.subr.bf16.mxu0 %v3013
    %3736 = vmatpush1.bf16.msra.mxu0 %v3012
    %3737 = vmatprep.subr.bf16.mxu0 %v3017
    %3738 = vmatpush1.bf16.msra.mxu0 %v3016
    %3739 = vmatprep.subr.bf16.mxu0 %v3021
    %3740 = vmatpush1.bf16.msra.mxu0 %v3020
    %3741 = vmatprep.subr.bf16.mxu0 %v3025
    %3742 = vmatpush1.bf16.msra.mxu0 %v3024
    %3743 = vmatprep.subr.bf16.mxu0 %v3029
    %3744 = vmatpush1.bf16.msra.mxu0 %v3028
    %3745 = vmatprep.mubr.bf16.mxu0 %v1714
    %3746 = vmatmul.mubr.bf16.gmra.mrb[0].mxu0 %v1712
    %v3747 = vpop.f32.mrb[0].mxu0
    %v3748 = vadd.f32 %v3707, %v3747
    %v3749 = vpop.f32.mrb[0].mxu0
    %v3750 = vadd.f32 %v3709, %v3749
    %v3751 = vpop.f32.mrb[0].mxu0
    %v3752 = vpop.f32.mrb[0].mxu0
    %3753 = vdwg.mxu0
    %3754 = vmatprep.subr.bf16.mxu0 %v3033
    %3755 = vmatpush1.bf16.msra.mxu0 %v3032
    %3756 = vmatprep.subr.bf16.mxu0 %v3037
    %3757 = vmatpush1.bf16.msra.mxu0 %v3036
    %3758 = vmatprep.subr.bf16.mxu0 %v3041
    %3759 = vmatpush1.bf16.msra.mxu0 %v3040
    %3760 = vmatprep.subr.bf16.mxu0 %v3045
    %3761 = vmatpush1.bf16.msra.mxu0 %v3044
    %3762 = vmatprep.subr.bf16.mxu0 %v3049
    %3763 = vmatpush1.bf16.msra.mxu0 %v3048
    %3764 = vmatprep.subr.bf16.mxu0 %v3053
    %3765 = vmatpush1.bf16.msra.mxu0 %v3052
    %3766 = vmatprep.subr.bf16.mxu0 %v3057
    %3767 = vmatpush1.bf16.msra.mxu0 %v3056
    %3768 = vmatprep.subr.bf16.mxu0 %v3061
    %3769 = vmatpush1.bf16.msra.mxu0 %v3060
    %3770 = vmatprep.subr.bf16.mxu0 %v3065
    %3771 = vmatpush1.bf16.msra.mxu0 %v3064
    %3772 = vmatprep.subr.bf16.mxu0 %v3069
    %3773 = vmatpush1.bf16.msra.mxu0 %v3068
    %3774 = vmatprep.subr.bf16.mxu0 %v3073
    %3775 = vmatpush1.bf16.msra.mxu0 %v3072
    %3776 = vmatprep.subr.bf16.mxu0 %v3077
    %3777 = vmatpush1.bf16.msra.mxu0 %v3076
    %3778 = vmatprep.subr.bf16.mxu0 %v3081
    %3779 = vmatpush1.bf16.msra.mxu0 %v3080
    %3780 = vmatprep.subr.bf16.mxu0 %v3085
    %3781 = vmatpush1.bf16.msra.mxu0 %v3084
    %3782 = vmatprep.subr.bf16.mxu0 %v3089
    %3783 = vmatpush1.bf16.msra.mxu0 %v3088
    %3784 = vmatprep.subr.bf16.mxu0 %v3093
    %3785 = vmatpush1.bf16.msra.mxu0 %v3092
    %3786 = vmatprep.mubr.bf16.mxu0 %v1711
    %3787 = vmatmul.mubr.bf16.gmra.mrb[0].mxu0 %v1697
    %v3788 = vpop.f32.mrb[0].mxu0
    %v3789 = vadd.f32 %v3748, %v3788
    %v3790 = vpop.f32.mrb[0].mxu0
    %v3791 = vadd.f32 %v3750, %v3790
    %v3792 = vpop.f32.mrb[0].mxu0
    %v3793 = vpop.f32.mrb[0].mxu0
    %3794 = vdwg.mxu0
    %3795 = vmatprep.subr.bf16.mxu0 %v3097
    %3796 = vmatpush1.bf16.msra.mxu0 %v3096
    %3797 = vmatprep.subr.bf16.mxu0 %v3101
    %3798 = vmatpush1.bf16.msra.mxu0 %v3100
    %3799 = vmatprep.subr.bf16.mxu0 %v3105
    %3800 = vmatpush1.bf16.msra.mxu0 %v3104
    %3801 = vmatprep.subr.bf16.mxu0 %v3109
    %3802 = vmatpush1.bf16.msra.mxu0 %v3108
    %3803 = vmatprep.subr.bf16.mxu0 %v3113
    %3804 = vmatpush1.bf16.msra.mxu0 %v3112
    %3805 = vmatprep.subr.bf16.mxu0 %v3117
    %3806 = vmatpush1.bf16.msra.mxu0 %v3116
    %3807 = vmatprep.subr.bf16.mxu0 %v3121
    %3808 = vmatpush1.bf16.msra.mxu0 %v3120
    %3809 = vmatprep.subr.bf16.mxu0 %v3125
    %3810 = vmatpush1.bf16.msra.mxu0 %v3124
    %3811 = vmatprep.subr.bf16.mxu0 %v3129
    %3812 = vmatpush1.bf16.msra.mxu0 %v3128
    %3813 = vmatprep.subr.bf16.mxu0 %v3133
    %3814 = vmatpush1.bf16.msra.mxu0 %v3132
    %3815 = vmatprep.subr.bf16.mxu0 %v3137
    %3816 = vmatpush1.bf16.msra.mxu0 %v3136
    %3817 = vmatprep.subr.bf16.mxu0 %v3141
    %3818 = vmatpush1.bf16.msra.mxu0 %v3140
    %3819 = vmatprep.subr.bf16.mxu0 %v3145
    %3820 = vmatpush1.bf16.msra.mxu0 %v3144
    %3821 = vmatprep.subr.bf16.mxu0 %v3149
    %3822 = vmatpush1.bf16.msra.mxu0 %v3148
    %3823 = vmatprep.subr.bf16.mxu0 %v3153
    %3824 = vmatpush1.bf16.msra.mxu0 %v3152
    %3825 = vmatprep.subr.bf16.mxu0 %v3157
    %3826 = vmatpush1.bf16.msra.mxu0 %v3156
    %3827 = vmatprep.mubr.bf16.mxu0 %v1715
    %3828 = vmatmul.mubr.bf16.gmra.mrb[0].mxu0 %v1713
    %v3829 = vpop.f32.mrb[0].mxu0
    %v3830 = vadd.f32 %v3789, %v3829
    %v3831 = vpop.f32.mrb[0].mxu0
    %v3832 = vadd.f32 %v3791, %v3831
    %v3833 = vpop.f32.mrb[0].mxu0
    %v3834 = vpop.f32.mrb[0].mxu0
    %3835 = vdwg.mxu0
    %3836 = vmatprep.subr.bf16.mxu0 %v3161
    %3837 = vmatpush1.bf16.msra.mxu0 %v3160
    %3838 = vmatprep.subr.bf16.mxu0 %v3165
    %3839 = vmatpush1.bf16.msra.mxu0 %v3164
    %3840 = vmatprep.subr.bf16.mxu0 %v3169
    %3841 = vmatpush1.bf16.msra.mxu0 %v3168
    %3842 = vmatprep.subr.bf16.mxu0 %v3173
    %3843 = vmatpush1.bf16.msra.mxu0 %v3172
    %3844 = vmatprep.subr.bf16.mxu0 %v3177
    %3845 = vmatpush1.bf16.msra.mxu0 %v3176
    %3846 = vmatprep.subr.bf16.mxu0 %v3181
    %3847 = vmatpush1.bf16.msra.mxu0 %v3180
    %3848 = vmatprep.subr.bf16.mxu0 %v3185
    %3849 = vmatpush1.bf16.msra.mxu0 %v3184
    %3850 = vmatprep.subr.bf16.mxu0 %v3189
    %3851 = vmatpush1.bf16.msra.mxu0 %v3188
    %3852 = vmatprep.subr.bf16.mxu0 %v3193
    %3853 = vmatpush1.bf16.msra.mxu0 %v3192
    %3854 = vmatprep.subr.bf16.mxu0 %v3197
    %3855 = vmatpush1.bf16.msra.mxu0 %v3196
    %3856 = vmatprep.subr.bf16.mxu0 %v3201
    %3857 = vmatpush1.bf16.msra.mxu0 %v3200
    %3858 = vmatprep.subr.bf16.mxu0 %v3205
    %3859 = vmatpush1.bf16.msra.mxu0 %v3204
    %3860 = vmatprep.subr.bf16.mxu0 %v3209
    %3861 = vmatpush1.bf16.msra.mxu0 %v3208
    %3862 = vmatprep.subr.bf16.mxu0 %v3213
    %3863 = vmatpush1.bf16.msra.mxu0 %v3212
    %3864 = vmatprep.subr.bf16.mxu0 %v3217
    %3865 = vmatpush1.bf16.msra.mxu0 %v3216
    %3866 = vmatprep.subr.bf16.mxu0 %v3221
    %3867 = vmatpush1.bf16.msra.mxu0 %v3220
    %3868 = vmatprep.mubr.bf16.mxu0 %v1737
    %3869 = vmatmul.mubr.bf16.gmra.mrb[0].mxu0 %v1730
    %v3870 = vpop.f32.mrb[0].mxu0
    %v3871 = vadd.f32 %v3830, %v3870
    %v3872 = vpop.f32.mrb[0].mxu0
    %v3873 = vadd.f32 %v3832, %v3872
    %v3874 = vpop.f32.mrb[0].mxu0
    %v3875 = vpop.f32.mrb[0].mxu0
    %3876 = vdwg.mxu0
    %3877 = vmatprep.subr.bf16.mxu0 %v3225
    %3878 = vmatpush1.bf16.msra.mxu0 %v3224
    %3879 = vmatprep.subr.bf16.mxu0 %v3229
    %3880 = vmatpush1.bf16.msra.mxu0 %v3228
    %3881 = vmatprep.subr.bf16.mxu0 %v3233
    %3882 = vmatpush1.bf16.msra.mxu0 %v3232
    %3883 = vmatprep.subr.bf16.mxu0 %v3237
    %3884 = vmatpush1.bf16.msra.mxu0 %v3236
    %3885 = vmatprep.subr.bf16.mxu0 %v3241
    %3886 = vmatpush1.bf16.msra.mxu0 %v3240
    %3887 = vmatprep.subr.bf16.mxu0 %v3245
    %3888 = vmatpush1.bf16.msra.mxu0 %v3244
    %3889 = vmatprep.subr.bf16.mxu0 %v3249
    %3890 = vmatpush1.bf16.msra.mxu0 %v3248
    %3891 = vmatprep.subr.bf16.mxu0 %v3253
    %3892 = vmatpush1.bf16.msra.mxu0 %v3252
    %3893 = vmatprep.subr.bf16.mxu0 %v3257
    %3894 = vmatpush1.bf16.msra.mxu0 %v3256
    %3895 = vmatprep.subr.bf16.mxu0 %v3261
    %3896 = vmatpush1.bf16.msra.mxu0 %v3260
    %3897 = vmatprep.subr.bf16.mxu0 %v3265
    %3898 = vmatpush1.bf16.msra.mxu0 %v3264
    %3899 = vmatprep.subr.bf16.mxu0 %v3269
    %3900 = vmatpush1.bf16.msra.mxu0 %v3268
    %3901 = vmatprep.subr.bf16.mxu0 %v3273
    %3902 = vmatpush1.bf16.msra.mxu0 %v3272
    %3903 = vmatprep.subr.bf16.mxu0 %v3277
    %3904 = vmatpush1.bf16.msra.mxu0 %v3276
    %3905 = vmatprep.subr.bf16.mxu0 %v3281
    %3906 = vmatpush1.bf16.msra.mxu0 %v3280
    %3907 = vmatprep.subr.bf16.mxu0 %v3285
    %3908 = vmatpush1.bf16.msra.mxu0 %v3284
    %3909 = vmatprep.mubr.bf16.mxu0 %v1739
    %3910 = vmatmul.mubr.bf16.gmra.mrb[0].mxu0 %v1738
    %v3911 = vpop.f32.mrb[0].mxu0
    %v3912 = vadd.f32 %v3871, %v3911
    %v3913 = vpop.f32.mrb[0].mxu0
    %v3914 = vadd.f32 %v3873, %v3913
    %v3915 = vpop.f32.mrb[0].mxu0
    %v3916 = vpop.f32.mrb[0].mxu0
    %3917 = vdwg.mxu0
    %3918 = vmatprep.subr.bf16.mxu0 %v2907
    %3919 = vmatpush1.bf16.msra.mxu0 %v2906
    %3920 = vmatprep.subr.bf16.mxu0 %v2911
    %3921 = vmatpush1.bf16.msra.mxu0 %v2910
    %3922 = vmatprep.subr.bf16.mxu0 %v2915
    %3923 = vmatpush1.bf16.msra.mxu0 %v2914
    %3924 = vmatprep.subr.bf16.mxu0 %v2919
    %3925 = vmatpush1.bf16.msra.mxu0 %v2918
    %3926 = vmatprep.subr.bf16.mxu0 %v2923
    %3927 = vmatpush1.bf16.msra.mxu0 %v2922
    %3928 = vmatprep.subr.bf16.mxu0 %v2927
    %3929 = vmatpush1.bf16.msra.mxu0 %v2926
    %3930 = vmatprep.subr.bf16.mxu0 %v2931
    %3931 = vmatpush1.bf16.msra.mxu0 %v2930
    %3932 = vmatprep.subr.bf16.mxu0 %v2935
    %3933 = vmatpush1.bf16.msra.mxu0 %v2934
    %3934 = vmatprep.subr.bf16.mxu0 %v2939
    %3935 = vmatpush1.bf16.msra.mxu0 %v2938
    %3936 = vmatprep.subr.bf16.mxu0 %v2943
    %3937 = vmatpush1.bf16.msra.mxu0 %v2942
    %3938 = vmatprep.subr.bf16.mxu0 %v2947
    %3939 = vmatpush1.bf16.msra.mxu0 %v2946
    %3940 = vmatprep.subr.bf16.mxu0 %v2951
    %3941 = vmatpush1.bf16.msra.mxu0 %v2950
    %3942 = vmatprep.subr.bf16.mxu0 %v2955
    %3943 = vmatpush1.bf16.msra.mxu0 %v2954
    %3944 = vmatprep.subr.bf16.mxu0 %v2959
    %3945 = vmatpush1.bf16.msra.mxu0 %v2958
    %3946 = vmatprep.subr.bf16.mxu0 %v2963
    %3947 = vmatpush1.bf16.msra.mxu0 %v2962
    %3948 = vmatprep.subr.bf16.mxu0 %v2967
    %3949 = vmatpush1.bf16.msra.mxu0 %v2966
    %3950 = vmatprep.mubr.bf16.mxu0 %v1704
    %3951 = vmatmul.mubr.bf16.gmra.mrb[0].mxu0 %v1690
    %v3952 = vpop.f32.mrb[0].mxu0
    %v3953 = vadd.f32 0.0, %v3952
    %v3954 = vpop.f32.mrb[0].mxu0
    %v3955 = vadd.f32 0.0, %v3954
    %v3956 = vpop.f32.mrb[0].mxu0
    %v3957 = vpop.f32.mrb[0].mxu0
    %3958 = vdwg.mxu0
    %3959 = vmatprep.subr.bf16.mxu0 %v2971
    %3960 = vmatpush1.bf16.msra.mxu0 %v2970
    %3961 = vmatprep.subr.bf16.mxu0 %v2975
    %3962 = vmatpush1.bf16.msra.mxu0 %v2974
    %3963 = vmatprep.subr.bf16.mxu0 %v2979
    %3964 = vmatpush1.bf16.msra.mxu0 %v2978
    %3965 = vmatprep.subr.bf16.mxu0 %v2983
    %3966 = vmatpush1.bf16.msra.mxu0 %v2982
    %3967 = vmatprep.subr.bf16.mxu0 %v2987
    %3968 = vmatpush1.bf16.msra.mxu0 %v2986
    %3969 = vmatprep.subr.bf16.mxu0 %v2991
    %3970 = vmatpush1.bf16.msra.mxu0 %v2990
    %3971 = vmatprep.subr.bf16.mxu0 %v2995
    %3972 = vmatpush1.bf16.msra.mxu0 %v2994
    %3973 = vmatprep.subr.bf16.mxu0 %v2999
    %3974 = vmatpush1.bf16.msra.mxu0 %v2998
    %3975 = vmatprep.subr.bf16.mxu0 %v3003
    %3976 = vmatpush1.bf16.msra.mxu0 %v3002
    %3977 = vmatprep.subr.bf16.mxu0 %v3007
    %3978 = vmatpush1.bf16.msra.mxu0 %v3006
    %3979 = vmatprep.subr.bf16.mxu0 %v3011
    %3980 = vmatpush1.bf16.msra.mxu0 %v3010
    %3981 = vmatprep.subr.bf16.mxu0 %v3015
    %3982 = vmatpush1.bf16.msra.mxu0 %v3014
    %3983 = vmatprep.subr.bf16.mxu0 %v3019
    %3984 = vmatpush1.bf16.msra.mxu0 %v3018
    %3985 = vmatprep.subr.bf16.mxu0 %v3023
    %3986 = vmatpush1.bf16.msra.mxu0 %v3022
    %3987 = vmatprep.subr.bf16.mxu0 %v3027
    %3988 = vmatpush1.bf16.msra.mxu0 %v3026
    %3989 = vmatprep.subr.bf16.mxu0 %v3031
    %3990 = vmatpush1.bf16.msra.mxu0 %v3030
    %3991 = vmatprep.mubr.bf16.mxu0 %v1714
    %3992 = vmatmul.mubr.bf16.gmra.mrb[0].mxu0 %v1712
    %v3993 = vpop.f32.mrb[0].mxu0
    %v3994 = vadd.f32 %v3953, %v3993
    %v3995 = vpop.f32.mrb[0].mxu0
    %v3996 = vadd.f32 %v3955, %v3995
    %v3997 = vpop.f32.mrb[0].mxu0
    %v3998 = vpop.f32.mrb[0].mxu0
    %3999 = vdwg.mxu0
    %4000 = vmatprep.subr.bf16.mxu0 %v3035
    %4001 = vmatpush1.bf16.msra.mxu0 %v3034
    %4002 = vmatprep.subr.bf16.mxu0 %v3039
    %4003 = vmatpush1.bf16.msra.mxu0 %v3038
    %4004 = vmatprep.subr.bf16.mxu0 %v3043
    %4005 = vmatpush1.bf16.msra.mxu0 %v3042
    %4006 = vmatprep.subr.bf16.mxu0 %v3047
    %4007 = vmatpush1.bf16.msra.mxu0 %v3046
    %4008 = vmatprep.subr.bf16.mxu0 %v3051
    %4009 = vmatpush1.bf16.msra.mxu0 %v3050
    %4010 = vmatprep.subr.bf16.mxu0 %v3055
    %4011 = vmatpush1.bf16.msra.mxu0 %v3054
    %4012 = vmatprep.subr.bf16.mxu0 %v3059
    %4013 = vmatpush1.bf16.msra.mxu0 %v3058
    %4014 = vmatprep.subr.bf16.mxu0 %v3063
    %4015 = vmatpush1.bf16.msra.mxu0 %v3062
    %4016 = vmatprep.subr.bf16.mxu0 %v3067
    %4017 = vmatpush1.bf16.msra.mxu0 %v3066
    %4018 = vmatprep.subr.bf16.mxu0 %v3071
    %4019 = vmatpush1.bf16.msra.mxu0 %v3070
    %4020 = vmatprep.subr.bf16.mxu0 %v3075
    %4021 = vmatpush1.bf16.msra.mxu0 %v3074
    %4022 = vmatprep.subr.bf16.mxu0 %v3079
    %4023 = vmatpush1.bf16.msra.mxu0 %v3078
    %4024 = vmatprep.subr.bf16.mxu0 %v3083
    %4025 = vmatpush1.bf16.msra.mxu0 %v3082
    %4026 = vmatprep.subr.bf16.mxu0 %v3087
    %4027 = vmatpush1.bf16.msra.mxu0 %v3086
    %4028 = vmatprep.subr.bf16.mxu0 %v3091
    %4029 = vmatpush1.bf16.msra.mxu0 %v3090
    %4030 = vmatprep.subr.bf16.mxu0 %v3095
    %4031 = vmatpush1.bf16.msra.mxu0 %v3094
    %4032 = vmatprep.mubr.bf16.mxu0 %v1711
    %4033 = vmatmul.mubr.bf16.gmra.mrb[0].mxu0 %v1697
    %v4034 = vpop.f32.mrb[0].mxu0
    %v4035 = vadd.f32 %v3994, %v4034
    %v4036 = vpop.f32.mrb[0].mxu0
    %v4037 = vadd.f32 %v3996, %v4036
    %v4038 = vpop.f32.mrb[0].mxu0
    %v4039 = vpop.f32.mrb[0].mxu0
    %4040 = vdwg.mxu0
    %4041 = vmatprep.subr.bf16.mxu0 %v3099
    %4042 = vmatpush1.bf16.msra.mxu0 %v3098
    %4043 = vmatprep.subr.bf16.mxu0 %v3103
    %4044 = vmatpush1.bf16.msra.mxu0 %v3102
    %4045 = vmatprep.subr.bf16.mxu0 %v3107
    %4046 = vmatpush1.bf16.msra.mxu0 %v3106
    %4047 = vmatprep.subr.bf16.mxu0 %v3111
    %4048 = vmatpush1.bf16.msra.mxu0 %v3110
    %4049 = vmatprep.subr.bf16.mxu0 %v3115
    %4050 = vmatpush1.bf16.msra.mxu0 %v3114
    %4051 = vmatprep.subr.bf16.mxu0 %v3119
    %4052 = vmatpush1.bf16.msra.mxu0 %v3118
    %4053 = vmatprep.subr.bf16.mxu0 %v3123
    %4054 = vmatpush1.bf16.msra.mxu0 %v3122
    %4055 = vmatprep.subr.bf16.mxu0 %v3127
    %4056 = vmatpush1.bf16.msra.mxu0 %v3126
    %4057 = vmatprep.subr.bf16.mxu0 %v3131
    %4058 = vmatpush1.bf16.msra.mxu0 %v3130
    %4059 = vmatprep.subr.bf16.mxu0 %v3135
    %4060 = vmatpush1.bf16.msra.mxu0 %v3134
    %4061 = vmatprep.subr.bf16.mxu0 %v3139
    %4062 = vmatpush1.bf16.msra.mxu0 %v3138
    %4063 = vmatprep.subr.bf16.mxu0 %v3143
    %4064 = vmatpush1.bf16.msra.mxu0 %v3142
    %4065 = vmatprep.subr.bf16.mxu0 %v3147
    %4066 = vmatpush1.bf16.msra.mxu0 %v3146
    %4067 = vmatprep.subr.bf16.mxu0 %v3151
    %4068 = vmatpush1.bf16.msra.mxu0 %v3150
    %4069 = vmatprep.subr.bf16.mxu0 %v3155
    %4070 = vmatpush1.bf16.msra.mxu0 %v3154
    %4071 = vmatprep.subr.bf16.mxu0 %v3159
    %4072 = vmatpush1.bf16.msra.mxu0 %v3158
    %4073 = vmatprep.mubr.bf16.mxu0 %v1715
    %4074 = vmatmul.mubr.bf16.gmra.mrb[0].mxu0 %v1713
    %v4075 = vpop.f32.mrb[0].mxu0
    %v4076 = vadd.f32 %v4035, %v4075
    %v4077 = vpop.f32.mrb[0].mxu0
    %v4078 = vadd.f32 %v4037, %v4077
    %v4079 = vpop.f32.mrb[0].mxu0
    %v4080 = vpop.f32.mrb[0].mxu0
    %4081 = vdwg.mxu0
    %4082 = vmatprep.subr.bf16.mxu0 %v3163
    %4083 = vmatpush1.bf16.msra.mxu0 %v3162
    %4084 = vmatprep.subr.bf16.mxu0 %v3167
    %4085 = vmatpush1.bf16.msra.mxu0 %v3166
    %4086 = vmatprep.subr.bf16.mxu0 %v3171
    %4087 = vmatpush1.bf16.msra.mxu0 %v3170
    %4088 = vmatprep.subr.bf16.mxu0 %v3175
    %4089 = vmatpush1.bf16.msra.mxu0 %v3174
    %4090 = vmatprep.subr.bf16.mxu0 %v3179
    %4091 = vmatpush1.bf16.msra.mxu0 %v3178
    %4092 = vmatprep.subr.bf16.mxu0 %v3183
    %4093 = vmatpush1.bf16.msra.mxu0 %v3182
    %4094 = vmatprep.subr.bf16.mxu0 %v3187
    %4095 = vmatpush1.bf16.msra.mxu0 %v3186
    %4096 = vmatprep.subr.bf16.mxu0 %v3191
    %4097 = vmatpush1.bf16.msra.mxu0 %v3190
    %4098 = vmatprep.subr.bf16.mxu0 %v3195
    %4099 = vmatpush1.bf16.msra.mxu0 %v3194
    %4100 = vmatprep.subr.bf16.mxu0 %v3199
    %4101 = vmatpush1.bf16.msra.mxu0 %v3198
    %4102 = vmatprep.subr.bf16.mxu0 %v3203
    %4103 = vmatpush1.bf16.msra.mxu0 %v3202
    %4104 = vmatprep.subr.bf16.mxu0 %v3207
    %4105 = vmatpush1.bf16.msra.mxu0 %v3206
    %4106 = vmatprep.subr.bf16.mxu0 %v3211
    %4107 = vmatpush1.bf16.msra.mxu0 %v3210
    %4108 = vmatprep.subr.bf16.mxu0 %v3215
    %4109 = vmatpush1.bf16.msra.mxu0 %v3214
    %4110 = vmatprep.subr.bf16.mxu0 %v3219
    %4111 = vmatpush1.bf16.msra.mxu0 %v3218
    %4112 = vmatprep.subr.bf16.mxu0 %v3223
    %4113 = vmatpush1.bf16.msra.mxu0 %v3222
    %4114 = vmatprep.mubr.bf16.mxu0 %v1737
    %4115 = vmatmul.mubr.bf16.gmra.mrb[0].mxu0 %v1730
    %v4116 = vpop.f32.mrb[0].mxu0
    %v4117 = vadd.f32 %v4076, %v4116
    %v4118 = vpop.f32.mrb[0].mxu0
    %v4119 = vadd.f32 %v4078, %v4118
    %v4120 = vpop.f32.mrb[0].mxu0
    %v4121 = vpop.f32.mrb[0].mxu0
    %4122 = vdwg.mxu0
    %4123 = vmatprep.subr.bf16.mxu0 %v3227
    %4124 = vmatpush1.bf16.msra.mxu0 %v3226
    %4125 = vmatprep.subr.bf16.mxu0 %v3231
    %4126 = vmatpush1.bf16.msra.mxu0 %v3230
    %4127 = vmatprep.subr.bf16.mxu0 %v3235
    %4128 = vmatpush1.bf16.msra.mxu0 %v3234
    %4129 = vmatprep.subr.bf16.mxu0 %v3239
    %4130 = vmatpush1.bf16.msra.mxu0 %v3238
    %4131 = vmatprep.subr.bf16.mxu0 %v3243
    %4132 = vmatpush1.bf16.msra.mxu0 %v3242
    %4133 = vmatprep.subr.bf16.mxu0 %v3247
    %4134 = vmatpush1.bf16.msra.mxu0 %v3246
    %4135 = vmatprep.subr.bf16.mxu0 %v3251
    %4136 = vmatpush1.bf16.msra.mxu0 %v3250
    %4137 = vmatprep.subr.bf16.mxu0 %v3255
    %4138 = vmatpush1.bf16.msra.mxu0 %v3254
    %4139 = vmatprep.subr.bf16.mxu0 %v3259
    %4140 = vmatpush1.bf16.msra.mxu0 %v3258
    %4141 = vmatprep.subr.bf16.mxu0 %v3263
    %4142 = vmatpush1.bf16.msra.mxu0 %v3262
    %4143 = vmatprep.subr.bf16.mxu0 %v3267
    %4144 = vmatpush1.bf16.msra.mxu0 %v3266
    %4145 = vmatprep.subr.bf16.mxu0 %v3271
    %4146 = vmatpush1.bf16.msra.mxu0 %v3270
    %4147 = vmatprep.subr.bf16.mxu0 %v3275
    %4148 = vmatpush1.bf16.msra.mxu0 %v3274
    %4149 = vmatprep.subr.bf16.mxu0 %v3279
    %4150 = vmatpush1.bf16.msra.mxu0 %v3278
    %4151 = vmatprep.subr.bf16.mxu0 %v3283
    %4152 = vmatpush1.bf16.msra.mxu0 %v3282
    %4153 = vmatprep.subr.bf16.mxu0 %v3287
    %4154 = vmatpush1.bf16.msra.mxu0 %v3286
    %4155 = vmatprep.mubr.bf16.mxu0 %v1739
    %4156 = vmatmul.mubr.bf16.gmra.mrb[0].mxu0 %v1738
    %v4157 = vpop.f32.mrb[0].mxu0
    %v4158 = vadd.f32 %v4117, %v4157
    %v4159 = vpop.f32.mrb[0].mxu0
    %v4160 = vadd.f32 %v4119, %v4159
    %v4161 = vpop.f32.mrb[0].mxu0
    %v4162 = vpop.f32.mrb[0].mxu0
    %4163 = vdwg.mxu0
    %v4164 = vmax.f32 %v3912, %v3914
    %v4165 = vmax.f32 %v4158, %v4160
    %v4166 = vmax.f32 %v4164, %v4165
    %v4167 = vld [vmem:[%s4] sm:$0x1]
    %v4169 = vlaneseq
    %v4170 = vshrl.u32 %v4169, 7
    %v4171 = vsub.s32 0, %v4170
    %v4172 = vrot.slane %v4167, %v4171
    %v4174 = vadd.f32 %v4166, %v4172
    %v4175 = vmax.f32 %v4174, 0.0
    %v4176 = vld [vmem:[%s5] sm:$0xff]
    %v4177 = vld [vmem:[%s5 + $0x8] sm:$0xff]
    %v4178 = vld [vmem:[%s5 + $0x10] sm:$0xff]
    %v4179 = vld [vmem:[%s5 + $0x18] sm:$0xff]
    %v4180 = vld [vmem:[%s5 + $0x20] sm:$0xff]
    %v4181 = vld [vmem:[%s5 + $0x28] sm:$0xff]
    %v4182 = vld [vmem:[%s5 + $0x30] sm:$0xff]
    %v4183 = vld [vmem:[%s5 + $0x38] sm:$0xff]
    %v4184 = vld [vmem:[%s5 + $0x40] sm:$0xff]
    %v4185 = vld [vmem:[%s5 + $0x48] sm:$0xff]
    %v4186 = vld [vmem:[%s5 + $0x50] sm:$0xff]
    %v4187 = vld [vmem:[%s5 + $0x58] sm:$0xff]
    %v4188 = vld [vmem:[%s5 + $0x60] sm:$0xff]
    %v4189 = vld [vmem:[%s5 + $0x68] sm:$0xff]
    %v4190 = vld [vmem:[%s5 + $0x70] sm:$0xff]
    %v4191 = vld [vmem:[%s5 + $0x78] sm:$0xff]
    %v4192 = vld [vmem:[%s6] sm:$0x1]
    %v4194 = vlaneseq
    %v4195 = vshrl.u32 %v4194, 7
    %v4196 = vsub.s32 0, %v4195
    %v4197 = vrot.slane %v4192, %v4196
    %4199 = vmatprep.subr.mxu0 0.0
    %4200 = vmatpush1.msra.mxu0 %v4176
    %4201 = vmatprep.subr.mxu0 0.0
    %4202 = vmatpush1.msra.mxu0 %v4177
    %4203 = vmatprep.subr.mxu0 0.0
    %4204 = vmatpush1.msra.mxu0 %v4178
    %4205 = vmatprep.subr.mxu0 0.0
    %4206 = vmatpush1.msra.mxu0 %v4179
    %4207 = vmatprep.subr.mxu0 0.0
    %4208 = vmatpush1.msra.mxu0 %v4180
    %4209 = vmatprep.subr.mxu0 0.0
    %4210 = vmatpush1.msra.mxu0 %v4181
    %4211 = vmatprep.subr.mxu0 0.0
    %4212 = vmatpush1.msra.mxu0 %v4182
    %4213 = vmatprep.subr.mxu0 0.0
    %4214 = vmatpush1.msra.mxu0 %v4183
    %4215 = vmatprep.subr.mxu0 0.0
    %4216 = vmatpush1.msra.mxu0 %v4184
    %4217 = vmatprep.subr.mxu0 0.0
    %4218 = vmatpush1.msra.mxu0 %v4185
    %4219 = vmatprep.subr.mxu0 0.0
    %4220 = vmatpush1.msra.mxu0 %v4186
    %4221 = vmatprep.subr.mxu0 0.0
    %4222 = vmatpush1.msra.mxu0 %v4187
    %4223 = vmatprep.subr.mxu0 0.0
    %4224 = vmatpush1.msra.mxu0 %v4188
    %4225 = vmatprep.subr.mxu0 0.0
    %4226 = vmatpush1.msra.mxu0 %v4189
    %4227 = vmatprep.subr.mxu0 0.0
    %4228 = vmatpush1.msra.mxu0 %v4190
    %4229 = vmatprep.subr.mxu0 0.0
    %4230 = vmatpush1.msra.mxu0 %v4191
    %4231 = vmatprep.subr.mxu0 0.0
    %4232 = vmatpush1.msra.mxu0 0.0
    %4233 = vmatprep.subr.mxu0 0.0
    %4234 = vmatpush1.msra.mxu0 0.0
    %4235 = vmatprep.subr.mxu0 0.0
    %4236 = vmatpush1.msra.mxu0 0.0
    %4237 = vmatprep.subr.mxu0 0.0
    %4238 = vmatpush1.msra.mxu0 0.0
    %4239 = vmatprep.subr.mxu0 0.0
    %4240 = vmatpush1.msra.mxu0 0.0
    %4241 = vmatprep.subr.mxu0 0.0
    %4242 = vmatpush1.msra.mxu0 0.0
    %4243 = vmatprep.subr.mxu0 0.0
    %4244 = vmatpush1.msra.mxu0 0.0
    %4245 = vmatprep.subr.mxu0 0.0
    %4246 = vmatpush1.msra.mxu0 0.0
    %4247 = vmatprep.subr.mxu0 0.0
    %4248 = vmatpush1.msra.mxu0 0.0
    %4249 = vmatprep.subr.mxu0 0.0
    %4250 = vmatpush1.msra.mxu0 0.0
    %4251 = vmatprep.subr.mxu0 0.0
    %4252 = vmatpush1.msra.mxu0 0.0
    %4253 = vmatprep.subr.mxu0 0.0
    %4254 = vmatpush1.msra.mxu0 0.0
    %4255 = vmatprep.subr.mxu0 0.0
    %4256 = vmatpush1.msra.mxu0 0.0
    %4257 = vmatprep.subr.mxu0 0.0
    %4258 = vmatpush1.msra.mxu0 0.0
    %4259 = vmatprep.subr.mxu0 0.0
    %4260 = vmatpush1.msra.mxu0 0.0
    %4261 = vmatprep.subr.mxu0 0.0
    %4262 = vmatpush1.msra.mxu0 0.0
    %4263 = vmatprep.mubr.f32.mxu0 0.0
    %4264 = vmatmul.mubr.f32.gmra.mrb[0].mxu0 %v4175
    %v4265 = vpop.f32.mrb[0].mxu0
    %v4266 = vadd.f32 %v4197, %v4265
    %v4267 = vpop.f32.mrb[0].mxu0
    %4268 = vdwg.mxu0
    %vm4269 = vcmask 91136
    %4270 = vst.msk [vmem:[#allocation3] sm:$0x3] %vm4269, %v4266
    // Predicated region
    $region30: #{student_net9_forward.1} parent=1 // pred_check
      _
    $region31: #{student_net9_forward.1} parent=1 // pred_check_branch
      %4272 = sbr.rel (0) target = $region33
    $region32: #{student_net9_forward.1} parent=1 // pred_region
      %s4274 = ssub.s32 32, 32
      %4275 = vsyncadd [#allocation4], %s4274
      %s4277 = sshll.u32 [#allocation3], 4
      %s4278 = int_to_ptr.vmem [resolvable:$true] %s4277
      %4280 = dma.vmem_to_hbm [thread:$0]  %s4278, 32, %s7, [#allocation4]
    $region33: #{student_net9_forward.1} parent=1 // pred_fallthru
      _
    // Predicated region
    $region34: #{student_net9_forward.1} parent=1 // pred_check
      _
    $region35: #{student_net9_forward.1} parent=1 // pred_check_branch
      %4282 = sbr.rel (0) target = $region37
    $region36: #{student_net9_forward.1} parent=1 // pred_region
      %4283 = dma.done [#allocation4], 32
    $region37: #{student_net9_forward.1} parent=1 // pred_fallthru
      _
    %4284 = vsyncpa [#allocation4], 1

</llo_original>
